<compile_context>
chip_gen: v7x
topology: tpu7x:2x2x1
jax: 0.10.0
libtpu: 0.0.40
codegen_flags: <defaults>
</compile_context>

<pallas_src>
import functools

import jax
import jax.numpy as jnp
from jax.experimental import pallas as pl
from jax.experimental.pallas import tpu as pltpu


def gcn_kernel(L_ref, x_ref, wT_ref, b_ref, out_ref, *,
               layers, resnet, out_cols_pad):
    """Processes Bt batch elements per grid step.

    L_ref  : (Bt, N, N)   f32
    x_ref  : (Bt, N, F)   f32
    wT_ref : (F_in, F_out) pre-transposed Linear weight
    b_ref  : (1, F_out)
    out_ref: (Bt, 2, out_cols_pad)  -- [:,0,:] node-0 slab, [:,1,:] node-1 slab
    """
    bt, n, f_in = x_ref.shape
    f_out = wT_ref.shape[1]

    x = x_ref[...]                                     # (Bt, N, F) f32
    Lv = L_ref[...]                                    # (Bt, N, N) f32, loaded once
    wT = wT_ref[...]                                   # (F_in, F_out)

    # Hoisted out of the unrolled layer loop (JAX does not CSE broadcast_in_dim):
    bias = jnp.broadcast_to(b_ref[...], (bt * n, f_out))          # (Bt*N, F_out)
    L_cols = [Lv[:, :, j:j + 1] for j in range(n)]                # each (Bt, N, 1)

    # Collected node-0/node-1 rows (layer 0 = Z_zero), one slice per layer.
    collected = [x[:, 0:2, :]]                                    # each (Bt, 2, F)

    for _ in range(layers):
        # Message passing L @ x on the VPU: N broadcast-FMAs (MXU stays free).
        lx = L_cols[0] * x[:, 0:1, :]                             # (Bt, N, F)
        for j in range(1, n):
            lx = lx + L_cols[j] * x[:, j:j + 1, :]
        # Linear fused across batch+node: one (Bt*N, F_in) x (F_in, F_out) matmul.
        a = jnp.dot(lx.reshape(bt * n, f_in), wT,
                    preferred_element_type=jnp.float32) + bias    # (Bt*N, F_out)
        a = jnp.maximum(a, 0.0)                                   # outAct: ReLU
        # outDp: dropout in eval mode == identity.
        a = a.reshape(bt, n, f_out)
        if resnet and a.shape == x.shape:                         # static gate
            a = a + x
        x = a
        collected.append(x[:, 0:2, :])

    # One lane-dense writeback: (Bt, 2, (layers+1)*F) -> padded to out_cols_pad.
    slab = jnp.concatenate(collected, axis=-1)
    pad = out_cols_pad - slab.shape[-1]
    if pad:
        slab = jnp.concatenate(
            [slab, jnp.zeros((bt, 2, pad), jnp.float32)], axis=-1)
    out_ref[...] = slab


def gcn_forward(x, L, W, b, *, layers, resnet=True, grid_steps=2):
    """grid_steps=2 keeps the batch axis shardable across v7x's 2 TensorCores;
    use grid_steps=1 on v5e/v6e for the absolute minimum pipeline overhead."""
    B, N, F_in = x.shape
    F_out, F_in_w = W.shape
    assert F_in_w == F_in
    # torch.cat of per-layer rows (and the output slab layout) need in==out size.
    assert F_in == F_out, "GCN row-collection semantics require inSize == outSize"

    grid_steps = max(1, min(grid_steps, B))
    Bt = pl.cdiv(B, grid_steps)
    B_pad = Bt * grid_steps
    if B_pad != B:
        pad = B_pad - B
        x = jnp.pad(x, ((0, pad), (0, 0), (0, 0)))
        L = jnp.pad(L, ((0, pad), (0, 0), (0, 0)))

    wT = W.T                                   # pre-transpose once, outside kernel
    b2 = b.reshape(1, F_out)

    out_cols = (layers + 1) * F_out
    out_cols_pad = ((out_cols + 127) // 128) * 128     # lane-dense output slab

    kernel = functools.partial(gcn_kernel, layers=layers, resnet=resnet,
                               out_cols_pad=out_cols_pad)

    flops = 2 * layers * B_pad * N * F_in * (N + F_out)
    bytes_accessed = 4 * (B_pad * N * N + B_pad * N * F_in + F_in * F_out
                          + F_out + B_pad * 2 * out_cols_pad)

    md = pl.pallas_call(
        kernel,
        out_shape=jax.ShapeDtypeStruct((B_pad, 2, out_cols_pad), jnp.float32),
        grid=(grid_steps,),
        in_specs=[
            pl.BlockSpec((Bt, N, N), lambda bi: (bi, 0, 0)),       # L
            pl.BlockSpec((Bt, N, F_in), lambda bi: (bi, 0, 0)),    # x
            pl.BlockSpec((F_in, F_out), lambda bi: (0, 0)),        # W.T (shared)
            pl.BlockSpec((1, F_out), lambda bi: (0, 0)),           # b   (shared)
        ],
        out_specs=pl.BlockSpec((Bt, 2, out_cols_pad), lambda bi: (bi, 0, 0)),
        compiler_params=pltpu.CompilerParams(
            dimension_semantics=("parallel",)),
        cost_estimate=pl.CostEstimate(flops=flops, transcendentals=0,
                                      bytes_accessed=bytes_accessed),
    )(L, x, wT, b2)

    m_all = md[:B, 0, :out_cols].reshape(B, layers + 1, F_out)
    d_all = md[:B, 1, :out_cols].reshape(B, layers + 1, F_out)
    return m_all, d_all


def gcn_reference(x, L, W, b, *, layers, resnet=True):
    """Pure-JAX reference replicating the PyTorch forward (eval mode)."""
    hp = jax.lax.Precision.HIGHEST
    m_all = x[:, 0:1, :]
    d_all = x[:, 1:2, :]
    for _ in range(layers):
        lx = jnp.einsum("bij,bjf->bif", L, x, precision=hp)
        a = jnp.einsum("bnf,fg->bng", lx, W.T, precision=hp) + b
        a = jnp.maximum(a, 0.0)
        if resnet and a.shape == x.shape:
            a = a + x
        x = a
        m_all = jnp.concatenate([m_all, x[:, 0:1, :]], axis=1)
        d_all = jnp.concatenate([d_all, x[:, 1:2, :]], axis=1)
    return m_all, d_all


if __name__ == "__main__":
    B, N, F = 64, 8, 32          # batch, nodes, feature size (inSize == outSize)
    LAYERS = 3
    RESNET = True

    key = jax.random.PRNGKey(0)
    kx, kl, kw, kb = jax.random.split(key, 4)

    x = jax.random.normal(kx, (B, N, F), dtype=jnp.float32)
    L = jax.random.normal(kl, (B, N, N), dtype=jnp.float32) / jnp.sqrt(N)

    # nn.Linear(inSize, outSize) init: U(-1/sqrt(inSize), 1/sqrt(inSize)).
    bound = 1.0 / jnp.sqrt(jnp.float32(F))
    W = jax.random.uniform(kw, (F, F), dtype=jnp.float32, minval=-bound, maxval=bound)
    b = jax.random.uniform(kb, (F,), dtype=jnp.float32, minval=-bound, maxval=bound)

    m_all, d_all = gcn_forward(x, L, W, b, layers=LAYERS, resnet=RESNET,
                               grid_steps=2)
    jax.block_until_ready((m_all, d_all))

    m_ref, d_ref = gcn_reference(x, L, W, b, layers=LAYERS, resnet=RESNET)
    assert m_all.shape == (B, LAYERS + 1, F) and d_all.shape == (B, LAYERS + 1, F)
    assert jnp.allclose(m_all, m_ref, atol=1e-4, rtol=1e-4)
    assert jnp.allclose(d_all, d_ref, atol=1e-4, rtol=1e-4)

    print("KERNEL_OK")
</pallas_src>

<mosaic_0001>
module attributes {stable_mosaic.version = 11 : i64} {
  func.func @gcn_kernel(%arg0: i32, %arg1: memref<32x8x8xf32, #tpu.memory_space<vmem>>, %arg2: memref<32x8x32xf32, #tpu.memory_space<vmem>>, %arg3: memref<32x32xf32, #tpu.memory_space<vmem>>, %arg4: memref<1x32xf32, #tpu.memory_space<vmem>>, %arg5: memref<32x2x128xf32, #tpu.memory_space<vmem>>) attributes {dimension_semantics = [#tpu.dimension_semantics<parallel>], iteration_bounds = array<i64: 2>, scalar_prefetch = 0 : i64, scratch_operands = 0 : i64, tpu.core_type = #tpu.core_type<tc>, window_params = [{transform_indices = @transform_0, window_bounds = array<i64: 32, 8, 8>}, {transform_indices = @transform_1, window_bounds = array<i64: 32, 8, 32>}, {pipeline_mode = #tpu.pipeline_mode<synchronous>, transform_indices = @transform_2, window_bounds = array<i64: 32, 32>}, {pipeline_mode = #tpu.pipeline_mode<synchronous>, transform_indices = @transform_3, window_bounds = array<i64: 1, 32>}, {transform_indices = @transform_4, window_bounds = array<i64: 32, 2, 128>}]} {
    %c0 = arith.constant 0 : index
    %c0_0 = arith.constant 0 : index
    %c0_1 = arith.constant 0 : index
    %0 = vector.load %arg2[%c0, %c0_0, %c0_1] : memref<32x8x32xf32, #tpu.memory_space<vmem>>, vector<32x8x32xf32>
    %c0_2 = arith.constant 0 : index
    %c0_3 = arith.constant 0 : index
    %c0_4 = arith.constant 0 : index
    %1 = vector.load %arg1[%c0_2, %c0_3, %c0_4] : memref<32x8x8xf32, #tpu.memory_space<vmem>>, vector<32x8x8xf32>
    %c0_5 = arith.constant 0 : index
    %c0_6 = arith.constant 0 : index
    %2 = vector.load %arg3[%c0_5, %c0_6] : memref<32x32xf32, #tpu.memory_space<vmem>>, vector<32x32xf32>
    %c0_7 = arith.constant 0 : index
    %c0_8 = arith.constant 0 : index
    %3 = vector.load %arg4[%c0_7, %c0_8] : memref<1x32xf32, #tpu.memory_space<vmem>>, vector<1x32xf32>
    %4 = vector.shape_cast %3 : vector<1x32xf32> to vector<1x32xf32>
    %5 = vector.broadcast %4 : vector<1x32xf32> to vector<256x32xf32>
    %6 = vector.extract_strided_slice %1 {offsets = [0, 0, 0], sizes = [32, 8, 1], strides = [1, 1, 1]} : vector<32x8x8xf32> to vector<32x8x1xf32>
    %7 = vector.extract_strided_slice %1 {offsets = [0, 0, 1], sizes = [32, 8, 1], strides = [1, 1, 1]} : vector<32x8x8xf32> to vector<32x8x1xf32>
    %8 = vector.extract_strided_slice %1 {offsets = [0, 0, 2], sizes = [32, 8, 1], strides = [1, 1, 1]} : vector<32x8x8xf32> to vector<32x8x1xf32>
    %9 = vector.extract_strided_slice %1 {offsets = [0, 0, 3], sizes = [32, 8, 1], strides = [1, 1, 1]} : vector<32x8x8xf32> to vector<32x8x1xf32>
    %10 = vector.extract_strided_slice %1 {offsets = [0, 0, 4], sizes = [32, 8, 1], strides = [1, 1, 1]} : vector<32x8x8xf32> to vector<32x8x1xf32>
    %11 = vector.extract_strided_slice %1 {offsets = [0, 0, 5], sizes = [32, 8, 1], strides = [1, 1, 1]} : vector<32x8x8xf32> to vector<32x8x1xf32>
    %12 = vector.extract_strided_slice %1 {offsets = [0, 0, 6], sizes = [32, 8, 1], strides = [1, 1, 1]} : vector<32x8x8xf32> to vector<32x8x1xf32>
    %13 = vector.extract_strided_slice %1 {offsets = [0, 0, 7], sizes = [32, 8, 1], strides = [1, 1, 1]} : vector<32x8x8xf32> to vector<32x8x1xf32>
    %14 = vector.extract_strided_slice %0 {offsets = [0, 0, 0], sizes = [32, 2, 32], strides = [1, 1, 1]} : vector<32x8x32xf32> to vector<32x2x32xf32>
    %15 = vector.extract_strided_slice %0 {offsets = [0, 0, 0], sizes = [32, 1, 32], strides = [1, 1, 1]} : vector<32x8x32xf32> to vector<32x1x32xf32>
    %16 = vector.broadcast %6 : vector<32x8x1xf32> to vector<32x8x32xf32>
    %17 = vector.broadcast %15 : vector<32x1x32xf32> to vector<32x8x32xf32>
    %18 = arith.mulf %16, %17 : vector<32x8x32xf32>
    %19 = vector.extract_strided_slice %0 {offsets = [0, 1, 0], sizes = [32, 1, 32], strides = [1, 1, 1]} : vector<32x8x32xf32> to vector<32x1x32xf32>
    %20 = vector.broadcast %7 : vector<32x8x1xf32> to vector<32x8x32xf32>
    %21 = vector.broadcast %19 : vector<32x1x32xf32> to vector<32x8x32xf32>
    %22 = arith.mulf %20, %21 : vector<32x8x32xf32>
    %23 = arith.addf %18, %22 : vector<32x8x32xf32>
    %24 = vector.extract_strided_slice %0 {offsets = [0, 2, 0], sizes = [32, 1, 32], strides = [1, 1, 1]} : vector<32x8x32xf32> to vector<32x1x32xf32>
    %25 = vector.broadcast %8 : vector<32x8x1xf32> to vector<32x8x32xf32>
    %26 = vector.broadcast %24 : vector<32x1x32xf32> to vector<32x8x32xf32>
    %27 = arith.mulf %25, %26 : vector<32x8x32xf32>
    %28 = arith.addf %23, %27 : vector<32x8x32xf32>
    %29 = vector.extract_strided_slice %0 {offsets = [0, 3, 0], sizes = [32, 1, 32], strides = [1, 1, 1]} : vector<32x8x32xf32> to vector<32x1x32xf32>
    %30 = vector.broadcast %9 : vector<32x8x1xf32> to vector<32x8x32xf32>
    %31 = vector.broadcast %29 : vector<32x1x32xf32> to vector<32x8x32xf32>
    %32 = arith.mulf %30, %31 : vector<32x8x32xf32>
    %33 = arith.addf %28, %32 : vector<32x8x32xf32>
    %34 = vector.extract_strided_slice %0 {offsets = [0, 4, 0], sizes = [32, 1, 32], strides = [1, 1, 1]} : vector<32x8x32xf32> to vector<32x1x32xf32>
    %35 = vector.broadcast %10 : vector<32x8x1xf32> to vector<32x8x32xf32>
    %36 = vector.broadcast %34 : vector<32x1x32xf32> to vector<32x8x32xf32>
    %37 = arith.mulf %35, %36 : vector<32x8x32xf32>
    %38 = arith.addf %33, %37 : vector<32x8x32xf32>
    %39 = vector.extract_strided_slice %0 {offsets = [0, 5, 0], sizes = [32, 1, 32], strides = [1, 1, 1]} : vector<32x8x32xf32> to vector<32x1x32xf32>
    %40 = vector.broadcast %11 : vector<32x8x1xf32> to vector<32x8x32xf32>
    %41 = vector.broadcast %39 : vector<32x1x32xf32> to vector<32x8x32xf32>
    %42 = arith.mulf %40, %41 : vector<32x8x32xf32>
    %43 = arith.addf %38, %42 : vector<32x8x32xf32>
    %44 = vector.extract_strided_slice %0 {offsets = [0, 6, 0], sizes = [32, 1, 32], strides = [1, 1, 1]} : vector<32x8x32xf32> to vector<32x1x32xf32>
    %45 = vector.broadcast %12 : vector<32x8x1xf32> to vector<32x8x32xf32>
    %46 = vector.broadcast %44 : vector<32x1x32xf32> to vector<32x8x32xf32>
    %47 = arith.mulf %45, %46 : vector<32x8x32xf32>
    %48 = arith.addf %43, %47 : vector<32x8x32xf32>
    %49 = vector.extract_strided_slice %0 {offsets = [0, 7, 0], sizes = [32, 1, 32], strides = [1, 1, 1]} : vector<32x8x32xf32> to vector<32x1x32xf32>
    %50 = vector.broadcast %13 : vector<32x8x1xf32> to vector<32x8x32xf32>
    %51 = vector.broadcast %49 : vector<32x1x32xf32> to vector<32x8x32xf32>
    %52 = arith.mulf %50, %51 : vector<32x8x32xf32>
    %53 = arith.addf %48, %52 : vector<32x8x32xf32>
    %54 = vector.shape_cast %53 : vector<32x8x32xf32> to vector<256x32xf32>
    %cst = arith.constant dense<0.000000e+00> : vector<256x32xf32>
    %55 = tpu.matmul %54, %2, %cst {dimension_numbers = #tpu.dot_dimension_numbers<[1], [0], [0], [1], [0, 0, 1, 1], [], []>} : vector<256x32xf32>, vector<32x32xf32>, vector<256x32xf32> -> vector<256x32xf32>
    %56 = arith.addf %55, %5 : vector<256x32xf32>
    %cst_9 = arith.constant 0.000000e+00 : f32
    %57 = vector.broadcast %cst_9 : f32 to vector<256x32xf32>
    %58 = arith.maximumf %56, %57 : vector<256x32xf32>
    %59 = vector.shape_cast %58 : vector<256x32xf32> to vector<32x8x32xf32>
    %60 = arith.addf %59, %0 : vector<32x8x32xf32>
    %61 = vector.extract_strided_slice %60 {offsets = [0, 0, 0], sizes = [32, 2, 32], strides = [1, 1, 1]} : vector<32x8x32xf32> to vector<32x2x32xf32>
    %62 = vector.extract_strided_slice %60 {offsets = [0, 0, 0], sizes = [32, 1, 32], strides = [1, 1, 1]} : vector<32x8x32xf32> to vector<32x1x32xf32>
    %63 = vector.broadcast %6 : vector<32x8x1xf32> to vector<32x8x32xf32>
    %64 = vector.broadcast %62 : vector<32x1x32xf32> to vector<32x8x32xf32>
    %65 = arith.mulf %63, %64 : vector<32x8x32xf32>
    %66 = vector.extract_strided_slice %60 {offsets = [0, 1, 0], sizes = [32, 1, 32], strides = [1, 1, 1]} : vector<32x8x32xf32> to vector<32x1x32xf32>
    %67 = vector.broadcast %7 : vector<32x8x1xf32> to vector<32x8x32xf32>
    %68 = vector.broadcast %66 : vector<32x1x32xf32> to vector<32x8x32xf32>
    %69 = arith.mulf %67, %68 : vector<32x8x32xf32>
    %70 = arith.addf %65, %69 : vector<32x8x32xf32>
    %71 = vector.extract_strided_slice %60 {offsets = [0, 2, 0], sizes = [32, 1, 32], strides = [1, 1, 1]} : vector<32x8x32xf32> to vector<32x1x32xf32>
    %72 = vector.broadcast %8 : vector<32x8x1xf32> to vector<32x8x32xf32>
    %73 = vector.broadcast %71 : vector<32x1x32xf32> to vector<32x8x32xf32>
    %74 = arith.mulf %72, %73 : vector<32x8x32xf32>
    %75 = arith.addf %70, %74 : vector<32x8x32xf32>
    %76 = vector.extract_strided_slice %60 {offsets = [0, 3, 0], sizes = [32, 1, 32], strides = [1, 1, 1]} : vector<32x8x32xf32> to vector<32x1x32xf32>
    %77 = vector.broadcast %9 : vector<32x8x1xf32> to vector<32x8x32xf32>
    %78 = vector.broadcast %76 : vector<32x1x32xf32> to vector<32x8x32xf32>
    %79 = arith.mulf %77, %78 : vector<32x8x32xf32>
    %80 = arith.addf %75, %79 : vector<32x8x32xf32>
    %81 = vector.extract_strided_slice %60 {offsets = [0, 4, 0], sizes = [32, 1, 32], strides = [1, 1, 1]} : vector<32x8x32xf32> to vector<32x1x32xf32>
    %82 = vector.broadcast %10 : vector<32x8x1xf32> to vector<32x8x32xf32>
    %83 = vector.broadcast %81 : vector<32x1x32xf32> to vector<32x8x32xf32>
    %84 = arith.mulf %82, %83 : vector<32x8x32xf32>
    %85 = arith.addf %80, %84 : vector<32x8x32xf32>
    %86 = vector.extract_strided_slice %60 {offsets = [0, 5, 0], sizes = [32, 1, 32], strides = [1, 1, 1]} : vector<32x8x32xf32> to vector<32x1x32xf32>
    %87 = vector.broadcast %11 : vector<32x8x1xf32> to vector<32x8x32xf32>
    %88 = vector.broadcast %86 : vector<32x1x32xf32> to vector<32x8x32xf32>
    %89 = arith.mulf %87, %88 : vector<32x8x32xf32>
    %90 = arith.addf %85, %89 : vector<32x8x32xf32>
    %91 = vector.extract_strided_slice %60 {offsets = [0, 6, 0], sizes = [32, 1, 32], strides = [1, 1, 1]} : vector<32x8x32xf32> to vector<32x1x32xf32>
    %92 = vector.broadcast %12 : vector<32x8x1xf32> to vector<32x8x32xf32>
    %93 = vector.broadcast %91 : vector<32x1x32xf32> to vector<32x8x32xf32>
    %94 = arith.mulf %92, %93 : vector<32x8x32xf32>
    %95 = arith.addf %90, %94 : vector<32x8x32xf32>
    %96 = vector.extract_strided_slice %60 {offsets = [0, 7, 0], sizes = [32, 1, 32], strides = [1, 1, 1]} : vector<32x8x32xf32> to vector<32x1x32xf32>
    %97 = vector.broadcast %13 : vector<32x8x1xf32> to vector<32x8x32xf32>
    %98 = vector.broadcast %96 : vector<32x1x32xf32> to vector<32x8x32xf32>
    %99 = arith.mulf %97, %98 : vector<32x8x32xf32>
    %100 = arith.addf %95, %99 : vector<32x8x32xf32>
    %101 = vector.shape_cast %100 : vector<32x8x32xf32> to vector<256x32xf32>
    %cst_10 = arith.constant dense<0.000000e+00> : vector<256x32xf32>
    %102 = tpu.matmul %101, %2, %cst_10 {dimension_numbers = #tpu.dot_dimension_numbers<[1], [0], [0], [1], [0, 0, 1, 1], [], []>} : vector<256x32xf32>, vector<32x32xf32>, vector<256x32xf32> -> vector<256x32xf32>
    %103 = arith.addf %102, %5 : vector<256x32xf32>
    %cst_11 = arith.constant 0.000000e+00 : f32
    %104 = vector.broadcast %cst_11 : f32 to vector<256x32xf32>
    %105 = arith.maximumf %103, %104 : vector<256x32xf32>
    %106 = vector.shape_cast %105 : vector<256x32xf32> to vector<32x8x32xf32>
    %107 = arith.addf %106, %60 : vector<32x8x32xf32>
    %108 = vector.extract_strided_slice %107 {offsets = [0, 0, 0], sizes = [32, 2, 32], strides = [1, 1, 1]} : vector<32x8x32xf32> to vector<32x2x32xf32>
    %109 = vector.extract_strided_slice %107 {offsets = [0, 0, 0], sizes = [32, 1, 32], strides = [1, 1, 1]} : vector<32x8x32xf32> to vector<32x1x32xf32>
    %110 = vector.broadcast %6 : vector<32x8x1xf32> to vector<32x8x32xf32>
    %111 = vector.broadcast %109 : vector<32x1x32xf32> to vector<32x8x32xf32>
    %112 = arith.mulf %110, %111 : vector<32x8x32xf32>
    %113 = vector.extract_strided_slice %107 {offsets = [0, 1, 0], sizes = [32, 1, 32], strides = [1, 1, 1]} : vector<32x8x32xf32> to vector<32x1x32xf32>
    %114 = vector.broadcast %7 : vector<32x8x1xf32> to vector<32x8x32xf32>
    %115 = vector.broadcast %113 : vector<32x1x32xf32> to vector<32x8x32xf32>
    %116 = arith.mulf %114, %115 : vector<32x8x32xf32>
    %117 = arith.addf %112, %116 : vector<32x8x32xf32>
    %118 = vector.extract_strided_slice %107 {offsets = [0, 2, 0], sizes = [32, 1, 32], strides = [1, 1, 1]} : vector<32x8x32xf32> to vector<32x1x32xf32>
    %119 = vector.broadcast %8 : vector<32x8x1xf32> to vector<32x8x32xf32>
    %120 = vector.broadcast %118 : vector<32x1x32xf32> to vector<32x8x32xf32>
    %121 = arith.mulf %119, %120 : vector<32x8x32xf32>
    %122 = arith.addf %117, %121 : vector<32x8x32xf32>
    %123 = vector.extract_strided_slice %107 {offsets = [0, 3, 0], sizes = [32, 1, 32], strides = [1, 1, 1]} : vector<32x8x32xf32> to vector<32x1x32xf32>
    %124 = vector.broadcast %9 : vector<32x8x1xf32> to vector<32x8x32xf32>
    %125 = vector.broadcast %123 : vector<32x1x32xf32> to vector<32x8x32xf32>
    %126 = arith.mulf %124, %125 : vector<32x8x32xf32>
    %127 = arith.addf %122, %126 : vector<32x8x32xf32>
    %128 = vector.extract_strided_slice %107 {offsets = [0, 4, 0], sizes = [32, 1, 32], strides = [1, 1, 1]} : vector<32x8x32xf32> to vector<32x1x32xf32>
    %129 = vector.broadcast %10 : vector<32x8x1xf32> to vector<32x8x32xf32>
    %130 = vector.broadcast %128 : vector<32x1x32xf32> to vector<32x8x32xf32>
    %131 = arith.mulf %129, %130 : vector<32x8x32xf32>
    %132 = arith.addf %127, %131 : vector<32x8x32xf32>
    %133 = vector.extract_strided_slice %107 {offsets = [0, 5, 0], sizes = [32, 1, 32], strides = [1, 1, 1]} : vector<32x8x32xf32> to vector<32x1x32xf32>
    %134 = vector.broadcast %11 : vector<32x8x1xf32> to vector<32x8x32xf32>
    %135 = vector.broadcast %133 : vector<32x1x32xf32> to vector<32x8x32xf32>
    %136 = arith.mulf %134, %135 : vector<32x8x32xf32>
    %137 = arith.addf %132, %136 : vector<32x8x32xf32>
    %138 = vector.extract_strided_slice %107 {offsets = [0, 6, 0], sizes = [32, 1, 32], strides = [1, 1, 1]} : vector<32x8x32xf32> to vector<32x1x32xf32>
    %139 = vector.broadcast %12 : vector<32x8x1xf32> to vector<32x8x32xf32>
    %140 = vector.broadcast %138 : vector<32x1x32xf32> to vector<32x8x32xf32>
    %141 = arith.mulf %139, %140 : vector<32x8x32xf32>
    %142 = arith.addf %137, %141 : vector<32x8x32xf32>
    %143 = vector.extract_strided_slice %107 {offsets = [0, 7, 0], sizes = [32, 1, 32], strides = [1, 1, 1]} : vector<32x8x32xf32> to vector<32x1x32xf32>
    %144 = vector.broadcast %13 : vector<32x8x1xf32> to vector<32x8x32xf32>
    %145 = vector.broadcast %143 : vector<32x1x32xf32> to vector<32x8x32xf32>
    %146 = arith.mulf %144, %145 : vector<32x8x32xf32>
    %147 = arith.addf %142, %146 : vector<32x8x32xf32>
    %148 = vector.shape_cast %147 : vector<32x8x32xf32> to vector<256x32xf32>
    %cst_12 = arith.constant dense<0.000000e+00> : vector<256x32xf32>
    %149 = tpu.matmul %148, %2, %cst_12 {dimension_numbers = #tpu.dot_dimension_numbers<[1], [0], [0], [1], [0, 0, 1, 1], [], []>} : vector<256x32xf32>, vector<32x32xf32>, vector<256x32xf32> -> vector<256x32xf32>
    %150 = arith.addf %149, %5 : vector<256x32xf32>
    %cst_13 = arith.constant 0.000000e+00 : f32
    %151 = vector.broadcast %cst_13 : f32 to vector<256x32xf32>
    %152 = arith.maximumf %150, %151 : vector<256x32xf32>
    %153 = vector.shape_cast %152 : vector<256x32xf32> to vector<32x8x32xf32>
    %154 = arith.addf %153, %107 : vector<32x8x32xf32>
    %155 = vector.extract_strided_slice %154 {offsets = [0, 0, 0], sizes = [32, 2, 32], strides = [1, 1, 1]} : vector<32x8x32xf32> to vector<32x2x32xf32>
    %156 = tpu.concatenate %14, %61, %108, %155 in 2 : vector<32x2x32xf32>, vector<32x2x32xf32>, vector<32x2x32xf32>, vector<32x2x32xf32> -> vector<32x2x128xf32>
    %c0_14 = arith.constant 0 : index
    %c0_15 = arith.constant 0 : index
    %c0_16 = arith.constant 0 : index
    %157 = vector.load %arg5[%c0_14, %c0_15, %c0_16] : memref<32x2x128xf32, #tpu.memory_space<vmem>>, vector<32x2x128xf32>
    tpu.vector_store %arg5[%c0_14, %c0_15, %c0_16], %156 {strides = array<i32>} : memref<32x2x128xf32, #tpu.memory_space<vmem>>, vector<32x2x128xf32>,
    return
  }
  func.func @transform_0(%arg0: i32) -> (i32, i32, i32) {
    %c0_i32 = arith.constant 0 : i32
    %c0_i32_0 = arith.constant 0 : i32
    %c0_i32_1 = arith.constant 0 : i32
    return %arg0, %c0_i32, %c0_i32_0 : i32, i32, i32
  }
  func.func @transform_1(%arg0: i32) -> (i32, i32, i32) {
    %c0_i32 = arith.constant 0 : i32
    %c0_i32_0 = arith.constant 0 : i32
    %c0_i32_1 = arith.constant 0 : i32
    return %arg0, %c0_i32, %c0_i32_0 : i32, i32, i32
  }
  func.func @transform_2(%arg0: i32) -> (i32, i32) {
    %c0_i32 = arith.constant 0 : i32
    %c0_i32_0 = arith.constant 0 : i32
    %c0_i32_1 = arith.constant 0 : i32
    return %c0_i32, %c0_i32_0 : i32, i32
  }
  func.func @transform_3(%arg0: i32) -> (i32, i32) {
    %c0_i32 = arith.constant 0 : i32
    %c0_i32_0 = arith.constant 0 : i32
    %c0_i32_1 = arith.constant 0 : i32
    return %c0_i32, %c0_i32_0 : i32, i32
  }
  func.func @transform_4(%arg0: i32) -> (i32, i32, i32) {
    %c0_i32 = arith.constant 0 : i32
    %c0_i32_0 = arith.constant 0 : i32
    %c0_i32_1 = arith.constant 0 : i32
    return %arg0, %c0_i32, %c0_i32_0 : i32, i32, i32
  }
}

</mosaic_0001>

<llo_original>
// kernel: tpu_custom_call.1
$region0: #{tpu_custom_call.1}
  #allocation0 [shape = 'u32[]', space=smem, size = 0x4, offset = 0x4, fixed_abs, tag = 'smem constant byte address 0x4 - core index']
  #allocation1 [shape = 'u32[144,128]{1,0:T(1,128)}', space=vmem, size = 0x12000, scoped, tag = 'internal scratch']
  %s0 = inlined_call_operand.vmem [shape: f32[64,8,8], index: 0, kind: input, shape index: {}]
  %s1 = inlined_call_operand.vmem [shape: f32[64,8,32], index: 1, kind: input, shape index: {}]
  %s2 = inlined_call_operand.vmem [shape: f32[32,32], index: 2, kind: input, shape index: {}]
  %s3 = inlined_call_operand.vmem [shape: f32[1,32], index: 3, kind: input, shape index: {}]
  %s4 = inlined_call_operand.hbm [shape: f32[64,2,128], index: 4, kind: output, shape index: {}]
  %s5 = sld [smem:[#allocation0]]
  $region49: #{tpu_custom_call.1} parent=0
    _
  %s7 = ssub.s32 1, %s5
  %s8 = scalar_select 0, %s7, %s5
  $region1: #{tpu_custom_call.1} parent=0
    #allocation2 [shape = 'u8[65536]{0}', space=vmem, size = 0x10000, scoped, tag = 'output window, operand 0']
    #allocation3 [shape = 's32[2]{0}', space=sflag, size = 0x8, scoped, tag = 'scoped memory for tpu_custom_call.1']
    %9 = vsyncpa [#allocation3], 0
    %s10 = scalar_lea.sflag [#allocation3], 1
    %11 = vsyncpa %s10, 0
    loop: start=0, step=1, limit=4
    $region2: #{tpu_custom_call.1} parent=1 // loop_pre_header
      _
    $region3: #{tpu_custom_call.1} parent=1 // loop_header
      %s13 = sphi 0, %s17
      %p14 = scmp.ge.s32.totalorder %s13, 4
      %s23 = sphi 0, %s25
      %s26 = sphi 0, %s23
      %s27 = sphi 0, %s26
      %s43 = sphi 0, %s27
      %s49 = sphi 0, %s51
      %s52 = sphi 0, %s49
      %s53 = sphi 0, %s52
      %s69 = sphi 0, %s53
      %s73 = sphi 0, %s73
      %s75 = sphi 0, %s73
      %s76 = sphi 0, %s75
      %s90 = sphi 0, %s76
      %s94 = sphi 0, %s94
      %s96 = sphi 0, %s94
      %s97 = sphi 0, %s96
      %s111 = sphi 0, %s97
      %s117 = sphi 0, %s119
      %s120 = sphi 0, %s117
      %s121 = sphi 0, %s120
      %s137 = sphi 0, %s121
    $region4: #{tpu_custom_call.1} parent=1 // loop_header_branch
      %16 = sbr.rel (%p14) target = $region8
    $region5: #{tpu_custom_call.1} parent=1 // loop_body
      %s18 = ssub.s32 %s13, 1
      %s19 = ssub.s32 %s13, 2
      %s20 = sadd.s32 %s13, 1
      %s21 = ssub.s32 %s13, %s20
      %p22 = scmp.eq.s32.totalorder %s21, 0
      %s24 = sadd.s32 %s23, 1
      %s25 = scalar_select %p22, %s23, %s24
      %p28 = pneg %p22
      %p29 = scmp.eq.s32.totalorder %s13, 1
      %p30 = por %p28, %p29
      %p31 = scmp.ne.s32.totalorder %s23, %s26
      %p32 = scmp.eq.s32.totalorder %s13, 0
      %p33 = por %p31, %p32
      %p34 = scmp.ne.s32.totalorder %s23, %s26
      %p35 = scmp.eq.s32.totalorder %s18, 1
      %p36 = por %p34, %p35
      %p37 = scmp.ne.s32.totalorder %s26, %s27
      %p38 = scmp.eq.s32.totalorder %s18, 0
      %p39 = por %p37, %p38
      %p40 = scmp.ne.s32.totalorder %s26, %s27
      %p41 = scmp.eq.s32.totalorder %s19, 1
      %p42 = por %p40, %p41
      %p44 = scmp.ne.s32.totalorder %s27, %s43
      %p45 = scmp.eq.s32.totalorder %s19, 0
      %p46 = por %p44, %p45
      %s47 = ssub.s32 %s13, %s20
      %p48 = scmp.eq.s32.totalorder %s47, 0
      %s50 = sadd.s32 %s49, 1
      %s51 = scalar_select %p48, %s49, %s50
      %p54 = pneg %p48
      %p55 = scmp.eq.s32.totalorder %s13, 1
      %p56 = por %p54, %p55
      %p57 = scmp.ne.s32.totalorder %s49, %s52
      %p58 = scmp.eq.s32.totalorder %s13, 0
      %p59 = por %p57, %p58
      %p60 = scmp.ne.s32.totalorder %s49, %s52
      %p61 = scmp.eq.s32.totalorder %s18, 1
      %p62 = por %p60, %p61
      %p63 = scmp.ne.s32.totalorder %s52, %s53
      %p64 = scmp.eq.s32.totalorder %s18, 0
      %p65 = por %p63, %p64
      %p66 = scmp.ne.s32.totalorder %s52, %s53
      %p67 = scmp.eq.s32.totalorder %s19, 1
      %p68 = por %p66, %p67
      %p70 = scmp.ne.s32.totalorder %s53, %s69
      %p71 = scmp.eq.s32.totalorder %s19, 0
      %p72 = por %p70, %p71
      %s74 = sadd.s32 %s73, 1
      %p77 = scmp.eq.s32.totalorder %s13, 1
      %p78 = scmp.ne.s32.totalorder %s73, %s75
      %p79 = scmp.eq.s32.totalorder %s13, 0
      %p80 = por %p78, %p79
      %p81 = scmp.ne.s32.totalorder %s73, %s75
      %p82 = scmp.eq.s32.totalorder %s18, 1
      %p83 = por %p81, %p82
      %p84 = scmp.ne.s32.totalorder %s75, %s76
      %p85 = scmp.eq.s32.totalorder %s18, 0
      %p86 = por %p84, %p85
      %p87 = scmp.ne.s32.totalorder %s75, %s76
      %p88 = scmp.eq.s32.totalorder %s19, 1
      %p89 = por %p87, %p88
      %p91 = scmp.ne.s32.totalorder %s76, %s90
      %p92 = scmp.eq.s32.totalorder %s19, 0
      %p93 = por %p91, %p92
      %s95 = sadd.s32 %s94, 1
      %p98 = scmp.eq.s32.totalorder %s13, 1
      %p99 = scmp.ne.s32.totalorder %s94, %s96
      %p100 = scmp.eq.s32.totalorder %s13, 0
      %p101 = por %p99, %p100
      %p102 = scmp.ne.s32.totalorder %s94, %s96
      %p103 = scmp.eq.s32.totalorder %s18, 1
      %p104 = por %p102, %p103
      %p105 = scmp.ne.s32.totalorder %s96, %s97
      %p106 = scmp.eq.s32.totalorder %s18, 0
      %p107 = por %p105, %p106
      %p108 = scmp.ne.s32.totalorder %s96, %s97
      %p109 = scmp.eq.s32.totalorder %s19, 1
      %p110 = por %p108, %p109
      %p112 = scmp.ne.s32.totalorder %s97, %s111
      %p113 = scmp.eq.s32.totalorder %s19, 0
      %p114 = por %p112, %p113
      %s115 = ssub.s32 %s13, %s20
      %p116 = scmp.eq.s32.totalorder %s115, 0
      %s118 = sadd.s32 %s117, 1
      %s119 = scalar_select %p116, %s117, %s118
      %p122 = pneg %p116
      %p123 = scmp.eq.s32.totalorder %s13, 1
      %p124 = por %p122, %p123
      %p125 = scmp.ne.s32.totalorder %s117, %s120
      %p126 = scmp.eq.s32.totalorder %s13, 0
      %p127 = por %p125, %p126
      %p128 = scmp.ne.s32.totalorder %s117, %s120
      %p129 = scmp.eq.s32.totalorder %s18, 1
      %p130 = por %p128, %p129
      %p131 = scmp.ne.s32.totalorder %s120, %s121
      %p132 = scmp.eq.s32.totalorder %s18, 0
      %p133 = por %p131, %p132
      %p134 = scmp.ne.s32.totalorder %s120, %s121
      %p135 = scmp.eq.s32.totalorder %s19, 1
      %p136 = por %p134, %p135
      %p138 = scmp.ne.s32.totalorder %s121, %s137
      %p139 = scmp.eq.s32.totalorder %s19, 0
      %p140 = por %p138, %p139
      %p141 = scmp.le.s32.totalorder 1, %s13
      %p142 = scmp.lt.s32.totalorder %s13, 3
      %p143 = pnand %p141, %p142
      %p144 = pneg %p143
      // Predicated region
      $region9: #{tpu_custom_call.1} parent=5 // pred_check
        _
      $region10: #{tpu_custom_call.1} parent=5 // pred_check_branch
        %146 = sbr.rel (%p143) target = $region12
      $region11: #{tpu_custom_call.1} parent=5 // pred_region
        %s147 = ssub.s32 %s13, 1
        // Predicated region
        $region13: #{tpu_custom_call.1} parent=11 // pred_check
          %p148 = pneg %p86
        $region14: #{tpu_custom_call.1} parent=11 // pred_check_branch
          %150 = sbr.rel (%p148) target = $region16
        $region15: #{tpu_custom_call.1} parent=11 // pred_region
          _
        $region16: #{tpu_custom_call.1} parent=11 // pred_fallthru
          _
        // Predicated region
        $region17: #{tpu_custom_call.1} parent=11 // pred_check
          %p151 = pneg %p107
        $region18: #{tpu_custom_call.1} parent=11 // pred_check_branch
          %153 = sbr.rel (%p151) target = $region20
        $region19: #{tpu_custom_call.1} parent=11 // pred_region
          _
        $region20: #{tpu_custom_call.1} parent=11 // pred_fallthru
          _
      $region12: #{tpu_custom_call.1} parent=5 // pred_fallthru
        _
      %p154 = scmp.lt.s32.totalorder %s13, 2
      // Predicated region
      $region21: #{tpu_custom_call.1} parent=5 // pred_check
        %p155 = pneg %p154
      $region22: #{tpu_custom_call.1} parent=5 // pred_check_branch
        %157 = sbr.rel (%p155) target = $region24
      $region23: #{tpu_custom_call.1} parent=5 // pred_region
        // Predicated region
        $region25: #{tpu_custom_call.1} parent=23 // pred_check
          %p158 = pneg %p33
        $region26: #{tpu_custom_call.1} parent=23 // pred_check_branch
          %160 = sbr.rel (%p158) target = $region28
        $region27: #{tpu_custom_call.1} parent=23 // pred_region
          %s161 = smul.u32 32, %s13
          %p162 = scmp.lt.s32.totalorder %s161, 63
          %s163 = scalar_select %p162, %s161, 63
          %s164 = smul.addr %s163, 8
          %s165 = scalar_lea.vmem %s0, %s164
          %s166 = smul.u32 32, %s13
        $region28: #{tpu_custom_call.1} parent=23 // pred_fallthru
          _
        // Predicated region
        $region29: #{tpu_custom_call.1} parent=23 // pred_check
          %p167 = pneg %p59
        $region30: #{tpu_custom_call.1} parent=23 // pred_check_branch
          %169 = sbr.rel (%p167) target = $region32
        $region31: #{tpu_custom_call.1} parent=23 // pred_region
          %s170 = smul.u32 32, %s13
          %p171 = scmp.lt.s32.totalorder %s170, 63
          %s172 = scalar_select %p171, %s170, 63
          %s173 = smul.addr %s172, 8
          %s174 = scalar_lea.vmem %s1, %s173
          %s175 = smul.u32 32, %s13
        $region32: #{tpu_custom_call.1} parent=23 // pred_fallthru
          _
      $region24: #{tpu_custom_call.1} parent=5 // pred_fallthru
        _
      %p176 = scmp.le.s32.totalorder 1, %s13
      %p177 = scmp.lt.s32.totalorder %s13, 3
      %p178 = pnand %p176, %p177
      %p179 = pneg %p178
      // Predicated region
      $region33: #{tpu_custom_call.1} parent=5 // pred_check
        _
      $region34: #{tpu_custom_call.1} parent=5 // pred_check_branch
        %181 = sbr.rel (%p178) target = $region36
      $region35: #{tpu_custom_call.1} parent=5 // pred_region
        %s182 = ssub.s32 %s13, 1
        %s183 = smul.u32 32, %s18
        %p184 = scmp.lt.s32.totalorder %s183, 63
        %s185 = scalar_select %p184, %s183, 63
        %s186 = smul.addr %s185, 8
        %s187 = scalar_lea.vmem %s0, %s186
        %p188 = pneg %p39
        %p189 = pneg %p36
        %s190 = smul.u32 32, %s18
        %p191 = scmp.lt.s32.totalorder %s190, 63
        %s192 = scalar_select %p191, %s190, 63
        %s193 = smul.addr %s192, 8
        %s194 = scalar_lea.vmem %s1, %s193
        %p195 = pneg %p65
        %p196 = pneg %p62
        %p197 = pneg %p86
        %p198 = pneg %p83
        %p199 = pneg %p107
        %p200 = pneg %p104
        %p201 = pneg %p133
        %p202 = pneg %p130
        %s203 = sand.u32 %s120, 1
        %s204 = scalar_lea.sflag [#allocation3], %s203
        %s205 = sand.u32 %s120, 1
        %s206 = smul.addr %s205, 64
        %s207 = scalar_lea.vmem [#allocation2], %s206
        %s208 = smul.u32 32, %s18
        %p209 = scmp.lt.s32.totalorder %s208, 63
        %s210 = scalar_select %p209, %s208, 63
        %s211 = smul.addr %s210, 8
        %s212 = scalar_lea.vmem %s0, %s211
        %s213 = smul.u32 32, %s18
        %s214 = smul.u32 32, %s18
        %p215 = scmp.lt.s32.totalorder %s214, 63
        %s216 = scalar_select %p215, %s214, 63
        %s217 = smul.addr %s216, 8
        %s218 = scalar_lea.vmem %s1, %s217
        %s219 = smul.u32 32, %s18
        %s220 = smul.u32 32, %s18
        %v221 = vld [vmem:[%s218] sm:$0xff]
        %v222 = vld [vmem:[%s218 + $0x8] sm:$0xff]
        %v223 = vld [vmem:[%s218 + $0x10] sm:$0xff]
        %v224 = vld [vmem:[%s218 + $0x18] sm:$0xff]
        %v225 = vld [vmem:[%s218 + $0x20] sm:$0xff]
        %v226 = vld [vmem:[%s218 + $0x28] sm:$0xff]
        %v227 = vld [vmem:[%s218 + $0x30] sm:$0xff]
        %v228 = vld [vmem:[%s218 + $0x38] sm:$0xff]
        %v229 = vld [vmem:[%s218 + $0x40] sm:$0xff]
        %v230 = vld [vmem:[%s218 + $0x48] sm:$0xff]
        %v231 = vld [vmem:[%s218 + $0x50] sm:$0xff]
        %v232 = vld [vmem:[%s218 + $0x58] sm:$0xff]
        %v233 = vld [vmem:[%s218 + $0x60] sm:$0xff]
        %v234 = vld [vmem:[%s218 + $0x68] sm:$0xff]
        %v235 = vld [vmem:[%s218 + $0x70] sm:$0xff]
        %v236 = vld [vmem:[%s218 + $0x78] sm:$0xff]
        %v237 = vld [vmem:[%s218 + $0x80] sm:$0xff]
        %v238 = vld [vmem:[%s218 + $0x88] sm:$0xff]
        %v239 = vld [vmem:[%s218 + $0x90] sm:$0xff]
        %v240 = vld [vmem:[%s218 + $0x98] sm:$0xff]
        %v241 = vld [vmem:[%s218 + $0xa0] sm:$0xff]
        %v242 = vld [vmem:[%s218 + $0xa8] sm:$0xff]
        %v243 = vld [vmem:[%s218 + $0xb0] sm:$0xff]
        %v244 = vld [vmem:[%s218 + $0xb8] sm:$0xff]
        %v245 = vld [vmem:[%s218 + $0xc0] sm:$0xff]
        %v246 = vld [vmem:[%s218 + $0xc8] sm:$0xff]
        %v247 = vld [vmem:[%s218 + $0xd0] sm:$0xff]
        %v248 = vld [vmem:[%s218 + $0xd8] sm:$0xff]
        %v249 = vld [vmem:[%s218 + $0xe0] sm:$0xff]
        %v250 = vld [vmem:[%s218 + $0xe8] sm:$0xff]
        %v251 = vld [vmem:[%s218 + $0xf0] sm:$0xff]
        %v252 = vld [vmem:[%s218 + $0xf8] sm:$0xff]
        %v253 = vld [vmem:[%s212] sm:$0xff]
        %v254 = vld [vmem:[%s212 + $0x8] sm:$0xff]
        %v255 = vld [vmem:[%s212 + $0x10] sm:$0xff]
        %v256 = vld [vmem:[%s212 + $0x18] sm:$0xff]
        %v257 = vld [vmem:[%s212 + $0x20] sm:$0xff]
        %v258 = vld [vmem:[%s212 + $0x28] sm:$0xff]
        %v259 = vld [vmem:[%s212 + $0x30] sm:$0xff]
        %v260 = vld [vmem:[%s212 + $0x38] sm:$0xff]
        %v261 = vld [vmem:[%s212 + $0x40] sm:$0xff]
        %v262 = vld [vmem:[%s212 + $0x48] sm:$0xff]
        %v263 = vld [vmem:[%s212 + $0x50] sm:$0xff]
        %v264 = vld [vmem:[%s212 + $0x58] sm:$0xff]
        %v265 = vld [vmem:[%s212 + $0x60] sm:$0xff]
        %v266 = vld [vmem:[%s212 + $0x68] sm:$0xff]
        %v267 = vld [vmem:[%s212 + $0x70] sm:$0xff]
        %v268 = vld [vmem:[%s212 + $0x78] sm:$0xff]
        %v269 = vld [vmem:[%s212 + $0x80] sm:$0xff]
        %v270 = vld [vmem:[%s212 + $0x88] sm:$0xff]
        %v271 = vld [vmem:[%s212 + $0x90] sm:$0xff]
        %v272 = vld [vmem:[%s212 + $0x98] sm:$0xff]
        %v273 = vld [vmem:[%s212 + $0xa0] sm:$0xff]
        %v274 = vld [vmem:[%s212 + $0xa8] sm:$0xff]
        %v275 = vld [vmem:[%s212 + $0xb0] sm:$0xff]
        %v276 = vld [vmem:[%s212 + $0xb8] sm:$0xff]
        %v277 = vld [vmem:[%s212 + $0xc0] sm:$0xff]
        %v278 = vld [vmem:[%s212 + $0xc8] sm:$0xff]
        %v279 = vld [vmem:[%s212 + $0xd0] sm:$0xff]
        %v280 = vld [vmem:[%s212 + $0xd8] sm:$0xff]
        %v281 = vld [vmem:[%s212 + $0xe0] sm:$0xff]
        %v282 = vld [vmem:[%s212 + $0xe8] sm:$0xff]
        %v283 = vld [vmem:[%s212 + $0xf0] sm:$0xff]
        %v284 = vld [vmem:[%s212 + $0xf8] sm:$0xff]
        %v285 = vld [vmem:[%s2] sm:$0xff]
        %v286 = vld [vmem:[%s2 + $0x8] sm:$0xff]
        %v287 = vld [vmem:[%s2 + $0x10] sm:$0xff]
        %v288 = vld [vmem:[%s2 + $0x18] sm:$0xff]
        %v289 = vld [vmem:[%s3] sm:$0x1]
        %v291 = vlaneseq
        %v292 = vshrl.u32 %v291, 7
        %v293 = vsub.s32 0, %v292
        %v294 = vrot.slane %v289, %v293
        %297 = vset.pattern.permute.xlu0 0
        %298 = vperm.xlu0 %297, %v253
        %v299 = vpop.permute.xlu0 %298
        %302 = vset.pattern.permute.xlu0 0
        %303 = vperm.xlu0 %302, %v254
        %v304 = vpop.permute.xlu0 %303
        %307 = vset.pattern.permute.xlu0 0
        %308 = vperm.xlu0 %307, %v255
        %v309 = vpop.permute.xlu0 %308
        %312 = vset.pattern.permute.xlu0 0
        %313 = vperm.xlu0 %312, %v256
        %v314 = vpop.permute.xlu0 %313
        %317 = vset.pattern.permute.xlu0 0
        %318 = vperm.xlu0 %317, %v257
        %v319 = vpop.permute.xlu0 %318
        %322 = vset.pattern.permute.xlu0 0
        %323 = vperm.xlu0 %322, %v258
        %v324 = vpop.permute.xlu0 %323
        %327 = vset.pattern.permute.xlu0 0
        %328 = vperm.xlu0 %327, %v259
        %v329 = vpop.permute.xlu0 %328
        %332 = vset.pattern.permute.xlu0 0
        %333 = vperm.xlu0 %332, %v260
        %v334 = vpop.permute.xlu0 %333
        %337 = vset.pattern.permute.xlu0 0
        %338 = vperm.xlu0 %337, %v261
        %v339 = vpop.permute.xlu0 %338
        %342 = vset.pattern.permute.xlu0 0
        %343 = vperm.xlu0 %342, %v262
        %v344 = vpop.permute.xlu0 %343
        %347 = vset.pattern.permute.xlu0 0
        %348 = vperm.xlu0 %347, %v263
        %v349 = vpop.permute.xlu0 %348
        %352 = vset.pattern.permute.xlu0 0
        %353 = vperm.xlu0 %352, %v264
        %v354 = vpop.permute.xlu0 %353
        %357 = vset.pattern.permute.xlu0 0
        %358 = vperm.xlu0 %357, %v265
        %v359 = vpop.permute.xlu0 %358
        %362 = vset.pattern.permute.xlu0 0
        %363 = vperm.xlu0 %362, %v266
        %v364 = vpop.permute.xlu0 %363
        %367 = vset.pattern.permute.xlu0 0
        %368 = vperm.xlu0 %367, %v267
        %v369 = vpop.permute.xlu0 %368
        %372 = vset.pattern.permute.xlu0 0
        %373 = vperm.xlu0 %372, %v268
        %v374 = vpop.permute.xlu0 %373
        %377 = vset.pattern.permute.xlu0 0
        %378 = vperm.xlu0 %377, %v269
        %v379 = vpop.permute.xlu0 %378
        %382 = vset.pattern.permute.xlu0 0
        %383 = vperm.xlu0 %382, %v270
        %v384 = vpop.permute.xlu0 %383
        %387 = vset.pattern.permute.xlu0 0
        %388 = vperm.xlu0 %387, %v271
        %v389 = vpop.permute.xlu0 %388
        %392 = vset.pattern.permute.xlu0 0
        %393 = vperm.xlu0 %392, %v272
        %v394 = vpop.permute.xlu0 %393
        %397 = vset.pattern.permute.xlu0 0
        %398 = vperm.xlu0 %397, %v273
        %v399 = vpop.permute.xlu0 %398
        %402 = vset.pattern.permute.xlu0 0
        %403 = vperm.xlu0 %402, %v274
        %v404 = vpop.permute.xlu0 %403
        %407 = vset.pattern.permute.xlu0 0
        %408 = vperm.xlu0 %407, %v275
        %v409 = vpop.permute.xlu0 %408
        %412 = vset.pattern.permute.xlu0 0
        %413 = vperm.xlu0 %412, %v276
        %v414 = vpop.permute.xlu0 %413
        %417 = vset.pattern.permute.xlu0 0
        %418 = vperm.xlu0 %417, %v277
        %v419 = vpop.permute.xlu0 %418
        %422 = vset.pattern.permute.xlu0 0
        %423 = vperm.xlu0 %422, %v278
        %v424 = vpop.permute.xlu0 %423
        %427 = vset.pattern.permute.xlu0 0
        %428 = vperm.xlu0 %427, %v279
        %v429 = vpop.permute.xlu0 %428
        %432 = vset.pattern.permute.xlu0 0
        %433 = vperm.xlu0 %432, %v280
        %v434 = vpop.permute.xlu0 %433
        %437 = vset.pattern.permute.xlu0 0
        %438 = vperm.xlu0 %437, %v281
        %v439 = vpop.permute.xlu0 %438
        %442 = vset.pattern.permute.xlu0 0
        %443 = vperm.xlu0 %442, %v282
        %v444 = vpop.permute.xlu0 %443
        %447 = vset.pattern.permute.xlu0 0
        %448 = vperm.xlu0 %447, %v283
        %v449 = vpop.permute.xlu0 %448
        %452 = vset.pattern.permute.xlu0 0
        %453 = vperm.xlu0 %452, %v284
        %v454 = vpop.permute.xlu0 %453
        %v456 = vlaneseq
        %v457 = vshrl.u32 %v456, 7
        %v458 = vsub.s32 0, %v457
        %v459 = vrot.slane %v221, %v458
        %v460 = vlaneseq
        %v461 = vshrl.u32 %v460, 7
        %v462 = vsub.s32 0, %v461
        %v463 = vrot.slane %v222, %v462
        %v464 = vlaneseq
        %v465 = vshrl.u32 %v464, 7
        %v466 = vsub.s32 0, %v465
        %v467 = vrot.slane %v223, %v466
        %v468 = vlaneseq
        %v469 = vshrl.u32 %v468, 7
        %v470 = vsub.s32 0, %v469
        %v471 = vrot.slane %v224, %v470
        %v472 = vlaneseq
        %v473 = vshrl.u32 %v472, 7
        %v474 = vsub.s32 0, %v473
        %v475 = vrot.slane %v225, %v474
        %v476 = vlaneseq
        %v477 = vshrl.u32 %v476, 7
        %v478 = vsub.s32 0, %v477
        %v479 = vrot.slane %v226, %v478
        %v480 = vlaneseq
        %v481 = vshrl.u32 %v480, 7
        %v482 = vsub.s32 0, %v481
        %v483 = vrot.slane %v227, %v482
        %v484 = vlaneseq
        %v485 = vshrl.u32 %v484, 7
        %v486 = vsub.s32 0, %v485
        %v487 = vrot.slane %v228, %v486
        %v488 = vlaneseq
        %v489 = vshrl.u32 %v488, 7
        %v490 = vsub.s32 0, %v489
        %v491 = vrot.slane %v229, %v490
        %v492 = vlaneseq
        %v493 = vshrl.u32 %v492, 7
        %v494 = vsub.s32 0, %v493
        %v495 = vrot.slane %v230, %v494
        %v496 = vlaneseq
        %v497 = vshrl.u32 %v496, 7
        %v498 = vsub.s32 0, %v497
        %v499 = vrot.slane %v231, %v498
        %v500 = vlaneseq
        %v501 = vshrl.u32 %v500, 7
        %v502 = vsub.s32 0, %v501
        %v503 = vrot.slane %v232, %v502
        %v504 = vlaneseq
        %v505 = vshrl.u32 %v504, 7
        %v506 = vsub.s32 0, %v505
        %v507 = vrot.slane %v233, %v506
        %v508 = vlaneseq
        %v509 = vshrl.u32 %v508, 7
        %v510 = vsub.s32 0, %v509
        %v511 = vrot.slane %v234, %v510
        %v512 = vlaneseq
        %v513 = vshrl.u32 %v512, 7
        %v514 = vsub.s32 0, %v513
        %v515 = vrot.slane %v235, %v514
        %v516 = vlaneseq
        %v517 = vshrl.u32 %v516, 7
        %v518 = vsub.s32 0, %v517
        %v519 = vrot.slane %v236, %v518
        %v520 = vlaneseq
        %v521 = vshrl.u32 %v520, 7
        %v522 = vsub.s32 0, %v521
        %v523 = vrot.slane %v237, %v522
        %v524 = vlaneseq
        %v525 = vshrl.u32 %v524, 7
        %v526 = vsub.s32 0, %v525
        %v527 = vrot.slane %v238, %v526
        %v528 = vlaneseq
        %v529 = vshrl.u32 %v528, 7
        %v530 = vsub.s32 0, %v529
        %v531 = vrot.slane %v239, %v530
        %v532 = vlaneseq
        %v533 = vshrl.u32 %v532, 7
        %v534 = vsub.s32 0, %v533
        %v535 = vrot.slane %v240, %v534
        %v536 = vlaneseq
        %v537 = vshrl.u32 %v536, 7
        %v538 = vsub.s32 0, %v537
        %v539 = vrot.slane %v241, %v538
        %v540 = vlaneseq
        %v541 = vshrl.u32 %v540, 7
        %v542 = vsub.s32 0, %v541
        %v543 = vrot.slane %v242, %v542
        %v544 = vlaneseq
        %v545 = vshrl.u32 %v544, 7
        %v546 = vsub.s32 0, %v545
        %v547 = vrot.slane %v243, %v546
        %v548 = vlaneseq
        %v549 = vshrl.u32 %v548, 7
        %v550 = vsub.s32 0, %v549
        %v551 = vrot.slane %v244, %v550
        %v552 = vlaneseq
        %v553 = vshrl.u32 %v552, 7
        %v554 = vsub.s32 0, %v553
        %v555 = vrot.slane %v245, %v554
        %v556 = vlaneseq
        %v557 = vshrl.u32 %v556, 7
        %v558 = vsub.s32 0, %v557
        %v559 = vrot.slane %v246, %v558
        %v560 = vlaneseq
        %v561 = vshrl.u32 %v560, 7
        %v562 = vsub.s32 0, %v561
        %v563 = vrot.slane %v247, %v562
        %v564 = vlaneseq
        %v565 = vshrl.u32 %v564, 7
        %v566 = vsub.s32 0, %v565
        %v567 = vrot.slane %v248, %v566
        %v568 = vlaneseq
        %v569 = vshrl.u32 %v568, 7
        %v570 = vsub.s32 0, %v569
        %v571 = vrot.slane %v249, %v570
        %v572 = vlaneseq
        %v573 = vshrl.u32 %v572, 7
        %v574 = vsub.s32 0, %v573
        %v575 = vrot.slane %v250, %v574
        %v576 = vlaneseq
        %v577 = vshrl.u32 %v576, 7
        %v578 = vsub.s32 0, %v577
        %v579 = vrot.slane %v251, %v578
        %v580 = vlaneseq
        %v581 = vshrl.u32 %v580, 7
        %v582 = vsub.s32 0, %v581
        %v583 = vrot.slane %v252, %v582
        %v584 = vmul.f32 %v299, %v459
        %v585 = vmul.f32 %v304, %v463
        %v586 = vmul.f32 %v309, %v467
        %v587 = vmul.f32 %v314, %v471
        %v588 = vmul.f32 %v319, %v475
        %v589 = vmul.f32 %v324, %v479
        %v590 = vmul.f32 %v329, %v483
        %v591 = vmul.f32 %v334, %v487
        %v592 = vmul.f32 %v339, %v491
        %v593 = vmul.f32 %v344, %v495
        %v594 = vmul.f32 %v349, %v499
        %v595 = vmul.f32 %v354, %v503
        %v596 = vmul.f32 %v359, %v507
        %v597 = vmul.f32 %v364, %v511
        %v598 = vmul.f32 %v369, %v515
        %v599 = vmul.f32 %v374, %v519
        %v600 = vmul.f32 %v379, %v523
        %v601 = vmul.f32 %v384, %v527
        %v602 = vmul.f32 %v389, %v531
        %v603 = vmul.f32 %v394, %v535
        %v604 = vmul.f32 %v399, %v539
        %v605 = vmul.f32 %v404, %v543
        %v606 = vmul.f32 %v409, %v547
        %v607 = vmul.f32 %v414, %v551
        %v608 = vmul.f32 %v419, %v555
        %v609 = vmul.f32 %v424, %v559
        %v610 = vmul.f32 %v429, %v563
        %v611 = vmul.f32 %v434, %v567
        %v612 = vmul.f32 %v439, %v571
        %v613 = vmul.f32 %v444, %v575
        %v614 = vmul.f32 %v449, %v579
        %v615 = vmul.f32 %v454, %v583
        %616 = vset.pattern.permute.xlu0 1
        %617 = vperm.xlu0 %616, %v253
        %v618 = vpop.permute.xlu0 %617
        %620 = vset.pattern.permute.xlu0 1
        %621 = vperm.xlu0 %620, %v254
        %v622 = vpop.permute.xlu0 %621
        %624 = vset.pattern.permute.xlu0 1
        %625 = vperm.xlu0 %624, %v255
        %v626 = vpop.permute.xlu0 %625
        %628 = vset.pattern.permute.xlu0 1
        %629 = vperm.xlu0 %628, %v256
        %v630 = vpop.permute.xlu0 %629
        %632 = vset.pattern.permute.xlu0 1
        %633 = vperm.xlu0 %632, %v257
        %v634 = vpop.permute.xlu0 %633
        %636 = vset.pattern.permute.xlu0 1
        %637 = vperm.xlu0 %636, %v258
        %v638 = vpop.permute.xlu0 %637
        %640 = vset.pattern.permute.xlu0 1
        %641 = vperm.xlu0 %640, %v259
        %v642 = vpop.permute.xlu0 %641
        %644 = vset.pattern.permute.xlu0 1
        %645 = vperm.xlu0 %644, %v260
        %v646 = vpop.permute.xlu0 %645
        %648 = vset.pattern.permute.xlu0 1
        %649 = vperm.xlu0 %648, %v261
        %v650 = vpop.permute.xlu0 %649
        %652 = vset.pattern.permute.xlu0 1
        %653 = vperm.xlu0 %652, %v262
        %v654 = vpop.permute.xlu0 %653
        %656 = vset.pattern.permute.xlu0 1
        %657 = vperm.xlu0 %656, %v263
        %v658 = vpop.permute.xlu0 %657
        %660 = vset.pattern.permute.xlu0 1
        %661 = vperm.xlu0 %660, %v264
        %v662 = vpop.permute.xlu0 %661
        %664 = vset.pattern.permute.xlu0 1
        %665 = vperm.xlu0 %664, %v265
        %v666 = vpop.permute.xlu0 %665
        %668 = vset.pattern.permute.xlu0 1
        %669 = vperm.xlu0 %668, %v266
        %v670 = vpop.permute.xlu0 %669
        %672 = vset.pattern.permute.xlu0 1
        %673 = vperm.xlu0 %672, %v267
        %v674 = vpop.permute.xlu0 %673
        %676 = vset.pattern.permute.xlu0 1
        %677 = vperm.xlu0 %676, %v268
        %v678 = vpop.permute.xlu0 %677
        %680 = vset.pattern.permute.xlu0 1
        %681 = vperm.xlu0 %680, %v269
        %v682 = vpop.permute.xlu0 %681
        %684 = vset.pattern.permute.xlu0 1
        %685 = vperm.xlu0 %684, %v270
        %v686 = vpop.permute.xlu0 %685
        %688 = vset.pattern.permute.xlu0 1
        %689 = vperm.xlu0 %688, %v271
        %v690 = vpop.permute.xlu0 %689
        %692 = vset.pattern.permute.xlu0 1
        %693 = vperm.xlu0 %692, %v272
        %v694 = vpop.permute.xlu0 %693
        %696 = vset.pattern.permute.xlu0 1
        %697 = vperm.xlu0 %696, %v273
        %v698 = vpop.permute.xlu0 %697
        %700 = vset.pattern.permute.xlu0 1
        %701 = vperm.xlu0 %700, %v274
        %v702 = vpop.permute.xlu0 %701
        %704 = vset.pattern.permute.xlu0 1
        %705 = vperm.xlu0 %704, %v275
        %v706 = vpop.permute.xlu0 %705
        %708 = vset.pattern.permute.xlu0 1
        %709 = vperm.xlu0 %708, %v276
        %v710 = vpop.permute.xlu0 %709
        %712 = vset.pattern.permute.xlu0 1
        %713 = vperm.xlu0 %712, %v277
        %v714 = vpop.permute.xlu0 %713
        %716 = vset.pattern.permute.xlu0 1
        %717 = vperm.xlu0 %716, %v278
        %v718 = vpop.permute.xlu0 %717
        %720 = vset.pattern.permute.xlu0 1
        %721 = vperm.xlu0 %720, %v279
        %v722 = vpop.permute.xlu0 %721
        %724 = vset.pattern.permute.xlu0 1
        %725 = vperm.xlu0 %724, %v280
        %v726 = vpop.permute.xlu0 %725
        %728 = vset.pattern.permute.xlu0 1
        %729 = vperm.xlu0 %728, %v281
        %v730 = vpop.permute.xlu0 %729
        %732 = vset.pattern.permute.xlu0 1
        %733 = vperm.xlu0 %732, %v282
        %v734 = vpop.permute.xlu0 %733
        %736 = vset.pattern.permute.xlu0 1
        %737 = vperm.xlu0 %736, %v283
        %v738 = vpop.permute.xlu0 %737
        %740 = vset.pattern.permute.xlu0 1
        %741 = vperm.xlu0 %740, %v284
        %v742 = vpop.permute.xlu0 %741
        %v744 = vlaneseq
        %v745 = vshrl.u32 %v744, 7
        %v746 = vsub.s32 1, %v745
        %v747 = vrot.slane %v221, %v746
        %v748 = vlaneseq
        %v749 = vshrl.u32 %v748, 7
        %v750 = vsub.s32 1, %v749
        %v751 = vrot.slane %v222, %v750
        %v752 = vlaneseq
        %v753 = vshrl.u32 %v752, 7
        %v754 = vsub.s32 1, %v753
        %v755 = vrot.slane %v223, %v754
        %v756 = vlaneseq
        %v757 = vshrl.u32 %v756, 7
        %v758 = vsub.s32 1, %v757
        %v759 = vrot.slane %v224, %v758
        %v760 = vlaneseq
        %v761 = vshrl.u32 %v760, 7
        %v762 = vsub.s32 1, %v761
        %v763 = vrot.slane %v225, %v762
        %v764 = vlaneseq
        %v765 = vshrl.u32 %v764, 7
        %v766 = vsub.s32 1, %v765
        %v767 = vrot.slane %v226, %v766
        %v768 = vlaneseq
        %v769 = vshrl.u32 %v768, 7
        %v770 = vsub.s32 1, %v769
        %v771 = vrot.slane %v227, %v770
        %v772 = vlaneseq
        %v773 = vshrl.u32 %v772, 7
        %v774 = vsub.s32 1, %v773
        %v775 = vrot.slane %v228, %v774
        %v776 = vlaneseq
        %v777 = vshrl.u32 %v776, 7
        %v778 = vsub.s32 1, %v777
        %v779 = vrot.slane %v229, %v778
        %v780 = vlaneseq
        %v781 = vshrl.u32 %v780, 7
        %v782 = vsub.s32 1, %v781
        %v783 = vrot.slane %v230, %v782
        %v784 = vlaneseq
        %v785 = vshrl.u32 %v784, 7
        %v786 = vsub.s32 1, %v785
        %v787 = vrot.slane %v231, %v786
        %v788 = vlaneseq
        %v789 = vshrl.u32 %v788, 7
        %v790 = vsub.s32 1, %v789
        %v791 = vrot.slane %v232, %v790
        %v792 = vlaneseq
        %v793 = vshrl.u32 %v792, 7
        %v794 = vsub.s32 1, %v793
        %v795 = vrot.slane %v233, %v794
        %v796 = vlaneseq
        %v797 = vshrl.u32 %v796, 7
        %v798 = vsub.s32 1, %v797
        %v799 = vrot.slane %v234, %v798
        %v800 = vlaneseq
        %v801 = vshrl.u32 %v800, 7
        %v802 = vsub.s32 1, %v801
        %v803 = vrot.slane %v235, %v802
        %v804 = vlaneseq
        %v805 = vshrl.u32 %v804, 7
        %v806 = vsub.s32 1, %v805
        %v807 = vrot.slane %v236, %v806
        %v808 = vlaneseq
        %v809 = vshrl.u32 %v808, 7
        %v810 = vsub.s32 1, %v809
        %v811 = vrot.slane %v237, %v810
        %v812 = vlaneseq
        %v813 = vshrl.u32 %v812, 7
        %v814 = vsub.s32 1, %v813
        %v815 = vrot.slane %v238, %v814
        %v816 = vlaneseq
        %v817 = vshrl.u32 %v816, 7
        %v818 = vsub.s32 1, %v817
        %v819 = vrot.slane %v239, %v818
        %v820 = vlaneseq
        %v821 = vshrl.u32 %v820, 7
        %v822 = vsub.s32 1, %v821
        %v823 = vrot.slane %v240, %v822
        %v824 = vlaneseq
        %v825 = vshrl.u32 %v824, 7
        %v826 = vsub.s32 1, %v825
        %v827 = vrot.slane %v241, %v826
        %v828 = vlaneseq
        %v829 = vshrl.u32 %v828, 7
        %v830 = vsub.s32 1, %v829
        %v831 = vrot.slane %v242, %v830
        %v832 = vlaneseq
        %v833 = vshrl.u32 %v832, 7
        %v834 = vsub.s32 1, %v833
        %v835 = vrot.slane %v243, %v834
        %v836 = vlaneseq
        %v837 = vshrl.u32 %v836, 7
        %v838 = vsub.s32 1, %v837
        %v839 = vrot.slane %v244, %v838
        %v840 = vlaneseq
        %v841 = vshrl.u32 %v840, 7
        %v842 = vsub.s32 1, %v841
        %v843 = vrot.slane %v245, %v842
        %v844 = vlaneseq
        %v845 = vshrl.u32 %v844, 7
        %v846 = vsub.s32 1, %v845
        %v847 = vrot.slane %v246, %v846
        %v848 = vlaneseq
        %v849 = vshrl.u32 %v848, 7
        %v850 = vsub.s32 1, %v849
        %v851 = vrot.slane %v247, %v850
        %v852 = vlaneseq
        %v853 = vshrl.u32 %v852, 7
        %v854 = vsub.s32 1, %v853
        %v855 = vrot.slane %v248, %v854
        %v856 = vlaneseq
        %v857 = vshrl.u32 %v856, 7
        %v858 = vsub.s32 1, %v857
        %v859 = vrot.slane %v249, %v858
        %v860 = vlaneseq
        %v861 = vshrl.u32 %v860, 7
        %v862 = vsub.s32 1, %v861
        %v863 = vrot.slane %v250, %v862
        %v864 = vlaneseq
        %v865 = vshrl.u32 %v864, 7
        %v866 = vsub.s32 1, %v865
        %v867 = vrot.slane %v251, %v866
        %v868 = vlaneseq
        %v869 = vshrl.u32 %v868, 7
        %v870 = vsub.s32 1, %v869
        %v871 = vrot.slane %v252, %v870
        %v872 = vmul.f32 %v618, %v747
        %v873 = vmul.f32 %v622, %v751
        %v874 = vmul.f32 %v626, %v755
        %v875 = vmul.f32 %v630, %v759
        %v876 = vmul.f32 %v634, %v763
        %v877 = vmul.f32 %v638, %v767
        %v878 = vmul.f32 %v642, %v771
        %v879 = vmul.f32 %v646, %v775
        %v880 = vmul.f32 %v650, %v779
        %v881 = vmul.f32 %v654, %v783
        %v882 = vmul.f32 %v658, %v787
        %v883 = vmul.f32 %v662, %v791
        %v884 = vmul.f32 %v666, %v795
        %v885 = vmul.f32 %v670, %v799
        %v886 = vmul.f32 %v674, %v803
        %v887 = vmul.f32 %v678, %v807
        %v888 = vmul.f32 %v682, %v811
        %v889 = vmul.f32 %v686, %v815
        %v890 = vmul.f32 %v690, %v819
        %v891 = vmul.f32 %v694, %v823
        %v892 = vmul.f32 %v698, %v827
        %v893 = vmul.f32 %v702, %v831
        %v894 = vmul.f32 %v706, %v835
        %v895 = vmul.f32 %v710, %v839
        %v896 = vmul.f32 %v714, %v843
        %v897 = vmul.f32 %v718, %v847
        %v898 = vmul.f32 %v722, %v851
        %v899 = vmul.f32 %v726, %v855
        %v900 = vmul.f32 %v730, %v859
        %v901 = vmul.f32 %v734, %v863
        %v902 = vmul.f32 %v738, %v867
        %v903 = vmul.f32 %v742, %v871
        %v904 = vadd.f32 %v584, %v872
        %v905 = vadd.f32 %v585, %v873
        %v906 = vadd.f32 %v586, %v874
        %v907 = vadd.f32 %v587, %v875
        %v908 = vadd.f32 %v588, %v876
        %v909 = vadd.f32 %v589, %v877
        %v910 = vadd.f32 %v590, %v878
        %v911 = vadd.f32 %v591, %v879
        %v912 = vadd.f32 %v592, %v880
        %v913 = vadd.f32 %v593, %v881
        %v914 = vadd.f32 %v594, %v882
        %v915 = vadd.f32 %v595, %v883
        %v916 = vadd.f32 %v596, %v884
        %v917 = vadd.f32 %v597, %v885
        %v918 = vadd.f32 %v598, %v886
        %v919 = vadd.f32 %v599, %v887
        %v920 = vadd.f32 %v600, %v888
        %v921 = vadd.f32 %v601, %v889
        %v922 = vadd.f32 %v602, %v890
        %v923 = vadd.f32 %v603, %v891
        %v924 = vadd.f32 %v604, %v892
        %v925 = vadd.f32 %v605, %v893
        %v926 = vadd.f32 %v606, %v894
        %v927 = vadd.f32 %v607, %v895
        %v928 = vadd.f32 %v608, %v896
        %v929 = vadd.f32 %v609, %v897
        %v930 = vadd.f32 %v610, %v898
        %v931 = vadd.f32 %v611, %v899
        %v932 = vadd.f32 %v612, %v900
        %v933 = vadd.f32 %v613, %v901
        %v934 = vadd.f32 %v614, %v902
        %v935 = vadd.f32 %v615, %v903
        %936 = vset.pattern.permute.xlu0 2
        %937 = vperm.xlu0 %936, %v253
        %v938 = vpop.permute.xlu0 %937
        %940 = vset.pattern.permute.xlu0 2
        %941 = vperm.xlu0 %940, %v254
        %v942 = vpop.permute.xlu0 %941
        %944 = vset.pattern.permute.xlu0 2
        %945 = vperm.xlu0 %944, %v255
        %v946 = vpop.permute.xlu0 %945
        %948 = vset.pattern.permute.xlu0 2
        %949 = vperm.xlu0 %948, %v256
        %v950 = vpop.permute.xlu0 %949
        %952 = vset.pattern.permute.xlu0 2
        %953 = vperm.xlu0 %952, %v257
        %v954 = vpop.permute.xlu0 %953
        %956 = vset.pattern.permute.xlu0 2
        %957 = vperm.xlu0 %956, %v258
        %v958 = vpop.permute.xlu0 %957
        %960 = vset.pattern.permute.xlu0 2
        %961 = vperm.xlu0 %960, %v259
        %v962 = vpop.permute.xlu0 %961
        %964 = vset.pattern.permute.xlu0 2
        %965 = vperm.xlu0 %964, %v260
        %v966 = vpop.permute.xlu0 %965
        %968 = vset.pattern.permute.xlu0 2
        %969 = vperm.xlu0 %968, %v261
        %v970 = vpop.permute.xlu0 %969
        %972 = vset.pattern.permute.xlu0 2
        %973 = vperm.xlu0 %972, %v262
        %v974 = vpop.permute.xlu0 %973
        %976 = vset.pattern.permute.xlu0 2
        %977 = vperm.xlu0 %976, %v263
        %v978 = vpop.permute.xlu0 %977
        %980 = vset.pattern.permute.xlu0 2
        %981 = vperm.xlu0 %980, %v264
        %v982 = vpop.permute.xlu0 %981
        %984 = vset.pattern.permute.xlu0 2
        %985 = vperm.xlu0 %984, %v265
        %v986 = vpop.permute.xlu0 %985
        %988 = vset.pattern.permute.xlu0 2
        %989 = vperm.xlu0 %988, %v266
        %v990 = vpop.permute.xlu0 %989
        %992 = vset.pattern.permute.xlu0 2
        %993 = vperm.xlu0 %992, %v267
        %v994 = vpop.permute.xlu0 %993
        %996 = vset.pattern.permute.xlu0 2
        %997 = vperm.xlu0 %996, %v268
        %v998 = vpop.permute.xlu0 %997
        %1000 = vset.pattern.permute.xlu0 2
        %1001 = vperm.xlu0 %1000, %v269
        %v1002 = vpop.permute.xlu0 %1001
        %1004 = vset.pattern.permute.xlu0 2
        %1005 = vperm.xlu0 %1004, %v270
        %v1006 = vpop.permute.xlu0 %1005
        %1008 = vset.pattern.permute.xlu0 2
        %1009 = vperm.xlu0 %1008, %v271
        %v1010 = vpop.permute.xlu0 %1009
        %1012 = vset.pattern.permute.xlu0 2
        %1013 = vperm.xlu0 %1012, %v272
        %v1014 = vpop.permute.xlu0 %1013
        %1016 = vset.pattern.permute.xlu0 2
        %1017 = vperm.xlu0 %1016, %v273
        %v1018 = vpop.permute.xlu0 %1017
        %1020 = vset.pattern.permute.xlu0 2
        %1021 = vperm.xlu0 %1020, %v274
        %v1022 = vpop.permute.xlu0 %1021
        %1024 = vset.pattern.permute.xlu0 2
        %1025 = vperm.xlu0 %1024, %v275
        %v1026 = vpop.permute.xlu0 %1025
        %1028 = vset.pattern.permute.xlu0 2
        %1029 = vperm.xlu0 %1028, %v276
        %v1030 = vpop.permute.xlu0 %1029
        %1032 = vset.pattern.permute.xlu0 2
        %1033 = vperm.xlu0 %1032, %v277
        %v1034 = vpop.permute.xlu0 %1033
        %1036 = vset.pattern.permute.xlu0 2
        %1037 = vperm.xlu0 %1036, %v278
        %v1038 = vpop.permute.xlu0 %1037
        %1040 = vset.pattern.permute.xlu0 2
        %1041 = vperm.xlu0 %1040, %v279
        %v1042 = vpop.permute.xlu0 %1041
        %1044 = vset.pattern.permute.xlu0 2
        %1045 = vperm.xlu0 %1044, %v280
        %v1046 = vpop.permute.xlu0 %1045
        %1048 = vset.pattern.permute.xlu0 2
        %1049 = vperm.xlu0 %1048, %v281
        %v1050 = vpop.permute.xlu0 %1049
        %1052 = vset.pattern.permute.xlu0 2
        %1053 = vperm.xlu0 %1052, %v282
        %v1054 = vpop.permute.xlu0 %1053
        %1056 = vset.pattern.permute.xlu0 2
        %1057 = vperm.xlu0 %1056, %v283
        %v1058 = vpop.permute.xlu0 %1057
        %1060 = vset.pattern.permute.xlu0 2
        %1061 = vperm.xlu0 %1060, %v284
        %v1062 = vpop.permute.xlu0 %1061
        %v1064 = vlaneseq
        %v1065 = vshrl.u32 %v1064, 7
        %v1066 = vsub.s32 2, %v1065
        %v1067 = vrot.slane %v221, %v1066
        %v1068 = vlaneseq
        %v1069 = vshrl.u32 %v1068, 7
        %v1070 = vsub.s32 2, %v1069
        %v1071 = vrot.slane %v222, %v1070
        %v1072 = vlaneseq
        %v1073 = vshrl.u32 %v1072, 7
        %v1074 = vsub.s32 2, %v1073
        %v1075 = vrot.slane %v223, %v1074
        %v1076 = vlaneseq
        %v1077 = vshrl.u32 %v1076, 7
        %v1078 = vsub.s32 2, %v1077
        %v1079 = vrot.slane %v224, %v1078
        %v1080 = vlaneseq
        %v1081 = vshrl.u32 %v1080, 7
        %v1082 = vsub.s32 2, %v1081
        %v1083 = vrot.slane %v225, %v1082
        %v1084 = vlaneseq
        %v1085 = vshrl.u32 %v1084, 7
        %v1086 = vsub.s32 2, %v1085
        %v1087 = vrot.slane %v226, %v1086
        %v1088 = vlaneseq
        %v1089 = vshrl.u32 %v1088, 7
        %v1090 = vsub.s32 2, %v1089
        %v1091 = vrot.slane %v227, %v1090
        %v1092 = vlaneseq
        %v1093 = vshrl.u32 %v1092, 7
        %v1094 = vsub.s32 2, %v1093
        %v1095 = vrot.slane %v228, %v1094
        %v1096 = vlaneseq
        %v1097 = vshrl.u32 %v1096, 7
        %v1098 = vsub.s32 2, %v1097
        %v1099 = vrot.slane %v229, %v1098
        %v1100 = vlaneseq
        %v1101 = vshrl.u32 %v1100, 7
        %v1102 = vsub.s32 2, %v1101
        %v1103 = vrot.slane %v230, %v1102
        %v1104 = vlaneseq
        %v1105 = vshrl.u32 %v1104, 7
        %v1106 = vsub.s32 2, %v1105
        %v1107 = vrot.slane %v231, %v1106
        %v1108 = vlaneseq
        %v1109 = vshrl.u32 %v1108, 7
        %v1110 = vsub.s32 2, %v1109
        %v1111 = vrot.slane %v232, %v1110
        %v1112 = vlaneseq
        %v1113 = vshrl.u32 %v1112, 7
        %v1114 = vsub.s32 2, %v1113
        %v1115 = vrot.slane %v233, %v1114
        %v1116 = vlaneseq
        %v1117 = vshrl.u32 %v1116, 7
        %v1118 = vsub.s32 2, %v1117
        %v1119 = vrot.slane %v234, %v1118
        %v1120 = vlaneseq
        %v1121 = vshrl.u32 %v1120, 7
        %v1122 = vsub.s32 2, %v1121
        %v1123 = vrot.slane %v235, %v1122
        %v1124 = vlaneseq
        %v1125 = vshrl.u32 %v1124, 7
        %v1126 = vsub.s32 2, %v1125
        %v1127 = vrot.slane %v236, %v1126
        %v1128 = vlaneseq
        %v1129 = vshrl.u32 %v1128, 7
        %v1130 = vsub.s32 2, %v1129
        %v1131 = vrot.slane %v237, %v1130
        %v1132 = vlaneseq
        %v1133 = vshrl.u32 %v1132, 7
        %v1134 = vsub.s32 2, %v1133
        %v1135 = vrot.slane %v238, %v1134
        %v1136 = vlaneseq
        %v1137 = vshrl.u32 %v1136, 7
        %v1138 = vsub.s32 2, %v1137
        %v1139 = vrot.slane %v239, %v1138
        %v1140 = vlaneseq
        %v1141 = vshrl.u32 %v1140, 7
        %v1142 = vsub.s32 2, %v1141
        %v1143 = vrot.slane %v240, %v1142
        %v1144 = vlaneseq
        %v1145 = vshrl.u32 %v1144, 7
        %v1146 = vsub.s32 2, %v1145
        %v1147 = vrot.slane %v241, %v1146
        %v1148 = vlaneseq
        %v1149 = vshrl.u32 %v1148, 7
        %v1150 = vsub.s32 2, %v1149
        %v1151 = vrot.slane %v242, %v1150
        %v1152 = vlaneseq
        %v1153 = vshrl.u32 %v1152, 7
        %v1154 = vsub.s32 2, %v1153
        %v1155 = vrot.slane %v243, %v1154
        %v1156 = vlaneseq
        %v1157 = vshrl.u32 %v1156, 7
        %v1158 = vsub.s32 2, %v1157
        %v1159 = vrot.slane %v244, %v1158
        %v1160 = vlaneseq
        %v1161 = vshrl.u32 %v1160, 7
        %v1162 = vsub.s32 2, %v1161
        %v1163 = vrot.slane %v245, %v1162
        %v1164 = vlaneseq
        %v1165 = vshrl.u32 %v1164, 7
        %v1166 = vsub.s32 2, %v1165
        %v1167 = vrot.slane %v246, %v1166
        %v1168 = vlaneseq
        %v1169 = vshrl.u32 %v1168, 7
        %v1170 = vsub.s32 2, %v1169
        %v1171 = vrot.slane %v247, %v1170
        %v1172 = vlaneseq
        %v1173 = vshrl.u32 %v1172, 7
        %v1174 = vsub.s32 2, %v1173
        %v1175 = vrot.slane %v248, %v1174
        %v1176 = vlaneseq
        %v1177 = vshrl.u32 %v1176, 7
        %v1178 = vsub.s32 2, %v1177
        %v1179 = vrot.slane %v249, %v1178
        %v1180 = vlaneseq
        %v1181 = vshrl.u32 %v1180, 7
        %v1182 = vsub.s32 2, %v1181
        %v1183 = vrot.slane %v250, %v1182
        %v1184 = vlaneseq
        %v1185 = vshrl.u32 %v1184, 7
        %v1186 = vsub.s32 2, %v1185
        %v1187 = vrot.slane %v251, %v1186
        %v1188 = vlaneseq
        %v1189 = vshrl.u32 %v1188, 7
        %v1190 = vsub.s32 2, %v1189
        %v1191 = vrot.slane %v252, %v1190
        %v1192 = vmul.f32 %v938, %v1067
        %v1193 = vmul.f32 %v942, %v1071
        %v1194 = vmul.f32 %v946, %v1075
        %v1195 = vmul.f32 %v950, %v1079
        %v1196 = vmul.f32 %v954, %v1083
        %v1197 = vmul.f32 %v958, %v1087
        %v1198 = vmul.f32 %v962, %v1091
        %v1199 = vmul.f32 %v966, %v1095
        %v1200 = vmul.f32 %v970, %v1099
        %v1201 = vmul.f32 %v974, %v1103
        %v1202 = vmul.f32 %v978, %v1107
        %v1203 = vmul.f32 %v982, %v1111
        %v1204 = vmul.f32 %v986, %v1115
        %v1205 = vmul.f32 %v990, %v1119
        %v1206 = vmul.f32 %v994, %v1123
        %v1207 = vmul.f32 %v998, %v1127
        %v1208 = vmul.f32 %v1002, %v1131
        %v1209 = vmul.f32 %v1006, %v1135
        %v1210 = vmul.f32 %v1010, %v1139
        %v1211 = vmul.f32 %v1014, %v1143
        %v1212 = vmul.f32 %v1018, %v1147
        %v1213 = vmul.f32 %v1022, %v1151
        %v1214 = vmul.f32 %v1026, %v1155
        %v1215 = vmul.f32 %v1030, %v1159
        %v1216 = vmul.f32 %v1034, %v1163
        %v1217 = vmul.f32 %v1038, %v1167
        %v1218 = vmul.f32 %v1042, %v1171
        %v1219 = vmul.f32 %v1046, %v1175
        %v1220 = vmul.f32 %v1050, %v1179
        %v1221 = vmul.f32 %v1054, %v1183
        %v1222 = vmul.f32 %v1058, %v1187
        %v1223 = vmul.f32 %v1062, %v1191
        %v1224 = vadd.f32 %v904, %v1192
        %v1225 = vadd.f32 %v905, %v1193
        %v1226 = vadd.f32 %v906, %v1194
        %v1227 = vadd.f32 %v907, %v1195
        %v1228 = vadd.f32 %v908, %v1196
        %v1229 = vadd.f32 %v909, %v1197
        %v1230 = vadd.f32 %v910, %v1198
        %v1231 = vadd.f32 %v911, %v1199
        %v1232 = vadd.f32 %v912, %v1200
        %v1233 = vadd.f32 %v913, %v1201
        %v1234 = vadd.f32 %v914, %v1202
        %v1235 = vadd.f32 %v915, %v1203
        %v1236 = vadd.f32 %v916, %v1204
        %v1237 = vadd.f32 %v917, %v1205
        %v1238 = vadd.f32 %v918, %v1206
        %v1239 = vadd.f32 %v919, %v1207
        %v1240 = vadd.f32 %v920, %v1208
        %v1241 = vadd.f32 %v921, %v1209
        %v1242 = vadd.f32 %v922, %v1210
        %v1243 = vadd.f32 %v923, %v1211
        %v1244 = vadd.f32 %v924, %v1212
        %v1245 = vadd.f32 %v925, %v1213
        %v1246 = vadd.f32 %v926, %v1214
        %v1247 = vadd.f32 %v927, %v1215
        %v1248 = vadd.f32 %v928, %v1216
        %v1249 = vadd.f32 %v929, %v1217
        %v1250 = vadd.f32 %v930, %v1218
        %v1251 = vadd.f32 %v931, %v1219
        %v1252 = vadd.f32 %v932, %v1220
        %v1253 = vadd.f32 %v933, %v1221
        %v1254 = vadd.f32 %v934, %v1222
        %v1255 = vadd.f32 %v935, %v1223
        %1256 = vset.pattern.permute.xlu0 3
        %1257 = vperm.xlu0 %1256, %v253
        %v1258 = vpop.permute.xlu0 %1257
        %1260 = vset.pattern.permute.xlu0 3
        %1261 = vperm.xlu0 %1260, %v254
        %v1262 = vpop.permute.xlu0 %1261
        %1264 = vset.pattern.permute.xlu0 3
        %1265 = vperm.xlu0 %1264, %v255
        %v1266 = vpop.permute.xlu0 %1265
        %1268 = vset.pattern.permute.xlu0 3
        %1269 = vperm.xlu0 %1268, %v256
        %v1270 = vpop.permute.xlu0 %1269
        %1272 = vset.pattern.permute.xlu0 3
        %1273 = vperm.xlu0 %1272, %v257
        %v1274 = vpop.permute.xlu0 %1273
        %1276 = vset.pattern.permute.xlu0 3
        %1277 = vperm.xlu0 %1276, %v258
        %v1278 = vpop.permute.xlu0 %1277
        %1280 = vset.pattern.permute.xlu0 3
        %1281 = vperm.xlu0 %1280, %v259
        %v1282 = vpop.permute.xlu0 %1281
        %1284 = vset.pattern.permute.xlu0 3
        %1285 = vperm.xlu0 %1284, %v260
        %v1286 = vpop.permute.xlu0 %1285
        %1288 = vset.pattern.permute.xlu0 3
        %1289 = vperm.xlu0 %1288, %v261
        %v1290 = vpop.permute.xlu0 %1289
        %1292 = vset.pattern.permute.xlu0 3
        %1293 = vperm.xlu0 %1292, %v262
        %v1294 = vpop.permute.xlu0 %1293
        %1296 = vset.pattern.permute.xlu0 3
        %1297 = vperm.xlu0 %1296, %v263
        %v1298 = vpop.permute.xlu0 %1297
        %1300 = vset.pattern.permute.xlu0 3
        %1301 = vperm.xlu0 %1300, %v264
        %v1302 = vpop.permute.xlu0 %1301
        %1304 = vset.pattern.permute.xlu0 3
        %1305 = vperm.xlu0 %1304, %v265
        %v1306 = vpop.permute.xlu0 %1305
        %1308 = vset.pattern.permute.xlu0 3
        %1309 = vperm.xlu0 %1308, %v266
        %v1310 = vpop.permute.xlu0 %1309
        %1312 = vset.pattern.permute.xlu0 3
        %1313 = vperm.xlu0 %1312, %v267
        %v1314 = vpop.permute.xlu0 %1313
        %1316 = vset.pattern.permute.xlu0 3
        %1317 = vperm.xlu0 %1316, %v268
        %v1318 = vpop.permute.xlu0 %1317
        %1320 = vset.pattern.permute.xlu0 3
        %1321 = vperm.xlu0 %1320, %v269
        %v1322 = vpop.permute.xlu0 %1321
        %1324 = vset.pattern.permute.xlu0 3
        %1325 = vperm.xlu0 %1324, %v270
        %v1326 = vpop.permute.xlu0 %1325
        %1328 = vset.pattern.permute.xlu0 3
        %1329 = vperm.xlu0 %1328, %v271
        %v1330 = vpop.permute.xlu0 %1329
        %1332 = vset.pattern.permute.xlu0 3
        %1333 = vperm.xlu0 %1332, %v272
        %v1334 = vpop.permute.xlu0 %1333
        %1336 = vset.pattern.permute.xlu0 3
        %1337 = vperm.xlu0 %1336, %v273
        %v1338 = vpop.permute.xlu0 %1337
        %1340 = vset.pattern.permute.xlu0 3
        %1341 = vperm.xlu0 %1340, %v274
        %v1342 = vpop.permute.xlu0 %1341
        %1344 = vset.pattern.permute.xlu0 3
        %1345 = vperm.xlu0 %1344, %v275
        %v1346 = vpop.permute.xlu0 %1345
        %1348 = vset.pattern.permute.xlu0 3
        %1349 = vperm.xlu0 %1348, %v276
        %v1350 = vpop.permute.xlu0 %1349
        %1352 = vset.pattern.permute.xlu0 3
        %1353 = vperm.xlu0 %1352, %v277
        %v1354 = vpop.permute.xlu0 %1353
        %1356 = vset.pattern.permute.xlu0 3
        %1357 = vperm.xlu0 %1356, %v278
        %v1358 = vpop.permute.xlu0 %1357
        %1360 = vset.pattern.permute.xlu0 3
        %1361 = vperm.xlu0 %1360, %v279
        %v1362 = vpop.permute.xlu0 %1361
        %1364 = vset.pattern.permute.xlu0 3
        %1365 = vperm.xlu0 %1364, %v280
        %v1366 = vpop.permute.xlu0 %1365
        %1368 = vset.pattern.permute.xlu0 3
        %1369 = vperm.xlu0 %1368, %v281
        %v1370 = vpop.permute.xlu0 %1369
        %1372 = vset.pattern.permute.xlu0 3
        %1373 = vperm.xlu0 %1372, %v282
        %v1374 = vpop.permute.xlu0 %1373
        %1376 = vset.pattern.permute.xlu0 3
        %1377 = vperm.xlu0 %1376, %v283
        %v1378 = vpop.permute.xlu0 %1377
        %1380 = vset.pattern.permute.xlu0 3
        %1381 = vperm.xlu0 %1380, %v284
        %v1382 = vpop.permute.xlu0 %1381
        %v1384 = vlaneseq
        %v1385 = vshrl.u32 %v1384, 7
        %v1386 = vsub.s32 3, %v1385
        %v1387 = vrot.slane %v221, %v1386
        %v1388 = vlaneseq
        %v1389 = vshrl.u32 %v1388, 7
        %v1390 = vsub.s32 3, %v1389
        %v1391 = vrot.slane %v222, %v1390
        %v1392 = vlaneseq
        %v1393 = vshrl.u32 %v1392, 7
        %v1394 = vsub.s32 3, %v1393
        %v1395 = vrot.slane %v223, %v1394
        %v1396 = vlaneseq
        %v1397 = vshrl.u32 %v1396, 7
        %v1398 = vsub.s32 3, %v1397
        %v1399 = vrot.slane %v224, %v1398
        %v1400 = vlaneseq
        %v1401 = vshrl.u32 %v1400, 7
        %v1402 = vsub.s32 3, %v1401
        %v1403 = vrot.slane %v225, %v1402
        %v1404 = vlaneseq
        %v1405 = vshrl.u32 %v1404, 7
        %v1406 = vsub.s32 3, %v1405
        %v1407 = vrot.slane %v226, %v1406
        %v1408 = vlaneseq
        %v1409 = vshrl.u32 %v1408, 7
        %v1410 = vsub.s32 3, %v1409
        %v1411 = vrot.slane %v227, %v1410
        %v1412 = vlaneseq
        %v1413 = vshrl.u32 %v1412, 7
        %v1414 = vsub.s32 3, %v1413
        %v1415 = vrot.slane %v228, %v1414
        %v1416 = vlaneseq
        %v1417 = vshrl.u32 %v1416, 7
        %v1418 = vsub.s32 3, %v1417
        %v1419 = vrot.slane %v229, %v1418
        %v1420 = vlaneseq
        %v1421 = vshrl.u32 %v1420, 7
        %v1422 = vsub.s32 3, %v1421
        %v1423 = vrot.slane %v230, %v1422
        %v1424 = vlaneseq
        %v1425 = vshrl.u32 %v1424, 7
        %v1426 = vsub.s32 3, %v1425
        %v1427 = vrot.slane %v231, %v1426
        %v1428 = vlaneseq
        %v1429 = vshrl.u32 %v1428, 7
        %v1430 = vsub.s32 3, %v1429
        %v1431 = vrot.slane %v232, %v1430
        %v1432 = vlaneseq
        %v1433 = vshrl.u32 %v1432, 7
        %v1434 = vsub.s32 3, %v1433
        %v1435 = vrot.slane %v233, %v1434
        %v1436 = vlaneseq
        %v1437 = vshrl.u32 %v1436, 7
        %v1438 = vsub.s32 3, %v1437
        %v1439 = vrot.slane %v234, %v1438
        %v1440 = vlaneseq
        %v1441 = vshrl.u32 %v1440, 7
        %v1442 = vsub.s32 3, %v1441
        %v1443 = vrot.slane %v235, %v1442
        %v1444 = vlaneseq
        %v1445 = vshrl.u32 %v1444, 7
        %v1446 = vsub.s32 3, %v1445
        %v1447 = vrot.slane %v236, %v1446
        %v1448 = vlaneseq
        %v1449 = vshrl.u32 %v1448, 7
        %v1450 = vsub.s32 3, %v1449
        %v1451 = vrot.slane %v237, %v1450
        %v1452 = vlaneseq
        %v1453 = vshrl.u32 %v1452, 7
        %v1454 = vsub.s32 3, %v1453
        %v1455 = vrot.slane %v238, %v1454
        %v1456 = vlaneseq
        %v1457 = vshrl.u32 %v1456, 7
        %v1458 = vsub.s32 3, %v1457
        %v1459 = vrot.slane %v239, %v1458
        %v1460 = vlaneseq
        %v1461 = vshrl.u32 %v1460, 7
        %v1462 = vsub.s32 3, %v1461
        %v1463 = vrot.slane %v240, %v1462
        %v1464 = vlaneseq
        %v1465 = vshrl.u32 %v1464, 7
        %v1466 = vsub.s32 3, %v1465
        %v1467 = vrot.slane %v241, %v1466
        %v1468 = vlaneseq
        %v1469 = vshrl.u32 %v1468, 7
        %v1470 = vsub.s32 3, %v1469
        %v1471 = vrot.slane %v242, %v1470
        %v1472 = vlaneseq
        %v1473 = vshrl.u32 %v1472, 7
        %v1474 = vsub.s32 3, %v1473
        %v1475 = vrot.slane %v243, %v1474
        %v1476 = vlaneseq
        %v1477 = vshrl.u32 %v1476, 7
        %v1478 = vsub.s32 3, %v1477
        %v1479 = vrot.slane %v244, %v1478
        %v1480 = vlaneseq
        %v1481 = vshrl.u32 %v1480, 7
        %v1482 = vsub.s32 3, %v1481
        %v1483 = vrot.slane %v245, %v1482
        %v1484 = vlaneseq
        %v1485 = vshrl.u32 %v1484, 7
        %v1486 = vsub.s32 3, %v1485
        %v1487 = vrot.slane %v246, %v1486
        %v1488 = vlaneseq
        %v1489 = vshrl.u32 %v1488, 7
        %v1490 = vsub.s32 3, %v1489
        %v1491 = vrot.slane %v247, %v1490
        %v1492 = vlaneseq
        %v1493 = vshrl.u32 %v1492, 7
        %v1494 = vsub.s32 3, %v1493
        %v1495 = vrot.slane %v248, %v1494
        %v1496 = vlaneseq
        %v1497 = vshrl.u32 %v1496, 7
        %v1498 = vsub.s32 3, %v1497
        %v1499 = vrot.slane %v249, %v1498
        %v1500 = vlaneseq
        %v1501 = vshrl.u32 %v1500, 7
        %v1502 = vsub.s32 3, %v1501
        %v1503 = vrot.slane %v250, %v1502
        %v1504 = vlaneseq
        %v1505 = vshrl.u32 %v1504, 7
        %v1506 = vsub.s32 3, %v1505
        %v1507 = vrot.slane %v251, %v1506
        %v1508 = vlaneseq
        %v1509 = vshrl.u32 %v1508, 7
        %v1510 = vsub.s32 3, %v1509
        %v1511 = vrot.slane %v252, %v1510
        %v1512 = vmul.f32 %v1258, %v1387
        %v1513 = vmul.f32 %v1262, %v1391
        %v1514 = vmul.f32 %v1266, %v1395
        %v1515 = vmul.f32 %v1270, %v1399
        %v1516 = vmul.f32 %v1274, %v1403
        %v1517 = vmul.f32 %v1278, %v1407
        %v1518 = vmul.f32 %v1282, %v1411
        %v1519 = vmul.f32 %v1286, %v1415
        %v1520 = vmul.f32 %v1290, %v1419
        %v1521 = vmul.f32 %v1294, %v1423
        %v1522 = vmul.f32 %v1298, %v1427
        %v1523 = vmul.f32 %v1302, %v1431
        %v1524 = vmul.f32 %v1306, %v1435
        %v1525 = vmul.f32 %v1310, %v1439
        %v1526 = vmul.f32 %v1314, %v1443
        %v1527 = vmul.f32 %v1318, %v1447
        %v1528 = vmul.f32 %v1322, %v1451
        %v1529 = vmul.f32 %v1326, %v1455
        %v1530 = vmul.f32 %v1330, %v1459
        %v1531 = vmul.f32 %v1334, %v1463
        %v1532 = vmul.f32 %v1338, %v1467
        %v1533 = vmul.f32 %v1342, %v1471
        %v1534 = vmul.f32 %v1346, %v1475
        %v1535 = vmul.f32 %v1350, %v1479
        %v1536 = vmul.f32 %v1354, %v1483
        %v1537 = vmul.f32 %v1358, %v1487
        %v1538 = vmul.f32 %v1362, %v1491
        %v1539 = vmul.f32 %v1366, %v1495
        %v1540 = vmul.f32 %v1370, %v1499
        %v1541 = vmul.f32 %v1374, %v1503
        %v1542 = vmul.f32 %v1378, %v1507
        %v1543 = vmul.f32 %v1382, %v1511
        %v1544 = vadd.f32 %v1224, %v1512
        %v1545 = vadd.f32 %v1225, %v1513
        %v1546 = vadd.f32 %v1226, %v1514
        %v1547 = vadd.f32 %v1227, %v1515
        %v1548 = vadd.f32 %v1228, %v1516
        %v1549 = vadd.f32 %v1229, %v1517
        %v1550 = vadd.f32 %v1230, %v1518
        %v1551 = vadd.f32 %v1231, %v1519
        %v1552 = vadd.f32 %v1232, %v1520
        %v1553 = vadd.f32 %v1233, %v1521
        %v1554 = vadd.f32 %v1234, %v1522
        %v1555 = vadd.f32 %v1235, %v1523
        %v1556 = vadd.f32 %v1236, %v1524
        %v1557 = vadd.f32 %v1237, %v1525
        %v1558 = vadd.f32 %v1238, %v1526
        %v1559 = vadd.f32 %v1239, %v1527
        %v1560 = vadd.f32 %v1240, %v1528
        %v1561 = vadd.f32 %v1241, %v1529
        %v1562 = vadd.f32 %v1242, %v1530
        %v1563 = vadd.f32 %v1243, %v1531
        %v1564 = vadd.f32 %v1244, %v1532
        %v1565 = vadd.f32 %v1245, %v1533
        %v1566 = vadd.f32 %v1246, %v1534
        %v1567 = vadd.f32 %v1247, %v1535
        %v1568 = vadd.f32 %v1248, %v1536
        %v1569 = vadd.f32 %v1249, %v1537
        %v1570 = vadd.f32 %v1250, %v1538
        %v1571 = vadd.f32 %v1251, %v1539
        %v1572 = vadd.f32 %v1252, %v1540
        %v1573 = vadd.f32 %v1253, %v1541
        %v1574 = vadd.f32 %v1254, %v1542
        %v1575 = vadd.f32 %v1255, %v1543
        %1576 = vset.pattern.permute.xlu0 4
        %1577 = vperm.xlu0 %1576, %v253
        %v1578 = vpop.permute.xlu0 %1577
        %1580 = vset.pattern.permute.xlu0 4
        %1581 = vperm.xlu0 %1580, %v254
        %v1582 = vpop.permute.xlu0 %1581
        %1584 = vset.pattern.permute.xlu0 4
        %1585 = vperm.xlu0 %1584, %v255
        %v1586 = vpop.permute.xlu0 %1585
        %1588 = vset.pattern.permute.xlu0 4
        %1589 = vperm.xlu0 %1588, %v256
        %v1590 = vpop.permute.xlu0 %1589
        %1592 = vset.pattern.permute.xlu0 4
        %1593 = vperm.xlu0 %1592, %v257
        %v1594 = vpop.permute.xlu0 %1593
        %1596 = vset.pattern.permute.xlu0 4
        %1597 = vperm.xlu0 %1596, %v258
        %v1598 = vpop.permute.xlu0 %1597
        %1600 = vset.pattern.permute.xlu0 4
        %1601 = vperm.xlu0 %1600, %v259
        %v1602 = vpop.permute.xlu0 %1601
        %1604 = vset.pattern.permute.xlu0 4
        %1605 = vperm.xlu0 %1604, %v260
        %v1606 = vpop.permute.xlu0 %1605
        %1608 = vset.pattern.permute.xlu0 4
        %1609 = vperm.xlu0 %1608, %v261
        %v1610 = vpop.permute.xlu0 %1609
        %1612 = vset.pattern.permute.xlu0 4
        %1613 = vperm.xlu0 %1612, %v262
        %v1614 = vpop.permute.xlu0 %1613
        %1616 = vset.pattern.permute.xlu0 4
        %1617 = vperm.xlu0 %1616, %v263
        %v1618 = vpop.permute.xlu0 %1617
        %1620 = vset.pattern.permute.xlu0 4
        %1621 = vperm.xlu0 %1620, %v264
        %v1622 = vpop.permute.xlu0 %1621
        %1624 = vset.pattern.permute.xlu0 4
        %1625 = vperm.xlu0 %1624, %v265
        %v1626 = vpop.permute.xlu0 %1625
        %1628 = vset.pattern.permute.xlu0 4
        %1629 = vperm.xlu0 %1628, %v266
        %v1630 = vpop.permute.xlu0 %1629
        %1632 = vset.pattern.permute.xlu0 4
        %1633 = vperm.xlu0 %1632, %v267
        %v1634 = vpop.permute.xlu0 %1633
        %1636 = vset.pattern.permute.xlu0 4
        %1637 = vperm.xlu0 %1636, %v268
        %v1638 = vpop.permute.xlu0 %1637
        %1640 = vset.pattern.permute.xlu0 4
        %1641 = vperm.xlu0 %1640, %v269
        %v1642 = vpop.permute.xlu0 %1641
        %1644 = vset.pattern.permute.xlu0 4
        %1645 = vperm.xlu0 %1644, %v270
        %v1646 = vpop.permute.xlu0 %1645
        %1648 = vset.pattern.permute.xlu0 4
        %1649 = vperm.xlu0 %1648, %v271
        %v1650 = vpop.permute.xlu0 %1649
        %1652 = vset.pattern.permute.xlu0 4
        %1653 = vperm.xlu0 %1652, %v272
        %v1654 = vpop.permute.xlu0 %1653
        %1656 = vset.pattern.permute.xlu0 4
        %1657 = vperm.xlu0 %1656, %v273
        %v1658 = vpop.permute.xlu0 %1657
        %1660 = vset.pattern.permute.xlu0 4
        %1661 = vperm.xlu0 %1660, %v274
        %v1662 = vpop.permute.xlu0 %1661
        %1664 = vset.pattern.permute.xlu0 4
        %1665 = vperm.xlu0 %1664, %v275
        %v1666 = vpop.permute.xlu0 %1665
        %1668 = vset.pattern.permute.xlu0 4
        %1669 = vperm.xlu0 %1668, %v276
        %v1670 = vpop.permute.xlu0 %1669
        %1672 = vset.pattern.permute.xlu0 4
        %1673 = vperm.xlu0 %1672, %v277
        %v1674 = vpop.permute.xlu0 %1673
        %1676 = vset.pattern.permute.xlu0 4
        %1677 = vperm.xlu0 %1676, %v278
        %v1678 = vpop.permute.xlu0 %1677
        %1680 = vset.pattern.permute.xlu0 4
        %1681 = vperm.xlu0 %1680, %v279
        %v1682 = vpop.permute.xlu0 %1681
        %1684 = vset.pattern.permute.xlu0 4
        %1685 = vperm.xlu0 %1684, %v280
        %v1686 = vpop.permute.xlu0 %1685
        %1688 = vset.pattern.permute.xlu0 4
        %1689 = vperm.xlu0 %1688, %v281
        %v1690 = vpop.permute.xlu0 %1689
        %1692 = vset.pattern.permute.xlu0 4
        %1693 = vperm.xlu0 %1692, %v282
        %v1694 = vpop.permute.xlu0 %1693
        %1696 = vset.pattern.permute.xlu0 4
        %1697 = vperm.xlu0 %1696, %v283
        %v1698 = vpop.permute.xlu0 %1697
        %1700 = vset.pattern.permute.xlu0 4
        %1701 = vperm.xlu0 %1700, %v284
        %v1702 = vpop.permute.xlu0 %1701
        %v1704 = vlaneseq
        %v1705 = vshrl.u32 %v1704, 7
        %v1706 = vsub.s32 4, %v1705
        %v1707 = vrot.slane %v221, %v1706
        %v1708 = vlaneseq
        %v1709 = vshrl.u32 %v1708, 7
        %v1710 = vsub.s32 4, %v1709
        %v1711 = vrot.slane %v222, %v1710
        %v1712 = vlaneseq
        %v1713 = vshrl.u32 %v1712, 7
        %v1714 = vsub.s32 4, %v1713
        %v1715 = vrot.slane %v223, %v1714
        %v1716 = vlaneseq
        %v1717 = vshrl.u32 %v1716, 7
        %v1718 = vsub.s32 4, %v1717
        %v1719 = vrot.slane %v224, %v1718
        %v1720 = vlaneseq
        %v1721 = vshrl.u32 %v1720, 7
        %v1722 = vsub.s32 4, %v1721
        %v1723 = vrot.slane %v225, %v1722
        %v1724 = vlaneseq
        %v1725 = vshrl.u32 %v1724, 7
        %v1726 = vsub.s32 4, %v1725
        %v1727 = vrot.slane %v226, %v1726
        %v1728 = vlaneseq
        %v1729 = vshrl.u32 %v1728, 7
        %v1730 = vsub.s32 4, %v1729
        %v1731 = vrot.slane %v227, %v1730
        %v1732 = vlaneseq
        %v1733 = vshrl.u32 %v1732, 7
        %v1734 = vsub.s32 4, %v1733
        %v1735 = vrot.slane %v228, %v1734
        %v1736 = vlaneseq
        %v1737 = vshrl.u32 %v1736, 7
        %v1738 = vsub.s32 4, %v1737
        %v1739 = vrot.slane %v229, %v1738
        %v1740 = vlaneseq
        %v1741 = vshrl.u32 %v1740, 7
        %v1742 = vsub.s32 4, %v1741
        %v1743 = vrot.slane %v230, %v1742
        %v1744 = vlaneseq
        %v1745 = vshrl.u32 %v1744, 7
        %v1746 = vsub.s32 4, %v1745
        %v1747 = vrot.slane %v231, %v1746
        %v1748 = vlaneseq
        %v1749 = vshrl.u32 %v1748, 7
        %v1750 = vsub.s32 4, %v1749
        %v1751 = vrot.slane %v232, %v1750
        %v1752 = vlaneseq
        %v1753 = vshrl.u32 %v1752, 7
        %v1754 = vsub.s32 4, %v1753
        %v1755 = vrot.slane %v233, %v1754
        %v1756 = vlaneseq
        %v1757 = vshrl.u32 %v1756, 7
        %v1758 = vsub.s32 4, %v1757
        %v1759 = vrot.slane %v234, %v1758
        %v1760 = vlaneseq
        %v1761 = vshrl.u32 %v1760, 7
        %v1762 = vsub.s32 4, %v1761
        %v1763 = vrot.slane %v235, %v1762
        %v1764 = vlaneseq
        %v1765 = vshrl.u32 %v1764, 7
        %v1766 = vsub.s32 4, %v1765
        %v1767 = vrot.slane %v236, %v1766
        %v1768 = vlaneseq
        %v1769 = vshrl.u32 %v1768, 7
        %v1770 = vsub.s32 4, %v1769
        %v1771 = vrot.slane %v237, %v1770
        %v1772 = vlaneseq
        %v1773 = vshrl.u32 %v1772, 7
        %v1774 = vsub.s32 4, %v1773
        %v1775 = vrot.slane %v238, %v1774
        %v1776 = vlaneseq
        %v1777 = vshrl.u32 %v1776, 7
        %v1778 = vsub.s32 4, %v1777
        %v1779 = vrot.slane %v239, %v1778
        %v1780 = vlaneseq
        %v1781 = vshrl.u32 %v1780, 7
        %v1782 = vsub.s32 4, %v1781
        %v1783 = vrot.slane %v240, %v1782
        %v1784 = vlaneseq
        %v1785 = vshrl.u32 %v1784, 7
        %v1786 = vsub.s32 4, %v1785
        %v1787 = vrot.slane %v241, %v1786
        %v1788 = vlaneseq
        %v1789 = vshrl.u32 %v1788, 7
        %v1790 = vsub.s32 4, %v1789
        %v1791 = vrot.slane %v242, %v1790
        %v1792 = vlaneseq
        %v1793 = vshrl.u32 %v1792, 7
        %v1794 = vsub.s32 4, %v1793
        %v1795 = vrot.slane %v243, %v1794
        %v1796 = vlaneseq
        %v1797 = vshrl.u32 %v1796, 7
        %v1798 = vsub.s32 4, %v1797
        %v1799 = vrot.slane %v244, %v1798
        %v1800 = vlaneseq
        %v1801 = vshrl.u32 %v1800, 7
        %v1802 = vsub.s32 4, %v1801
        %v1803 = vrot.slane %v245, %v1802
        %v1804 = vlaneseq
        %v1805 = vshrl.u32 %v1804, 7
        %v1806 = vsub.s32 4, %v1805
        %v1807 = vrot.slane %v246, %v1806
        %v1808 = vlaneseq
        %v1809 = vshrl.u32 %v1808, 7
        %v1810 = vsub.s32 4, %v1809
        %v1811 = vrot.slane %v247, %v1810
        %v1812 = vlaneseq
        %v1813 = vshrl.u32 %v1812, 7
        %v1814 = vsub.s32 4, %v1813
        %v1815 = vrot.slane %v248, %v1814
        %v1816 = vlaneseq
        %v1817 = vshrl.u32 %v1816, 7
        %v1818 = vsub.s32 4, %v1817
        %v1819 = vrot.slane %v249, %v1818
        %v1820 = vlaneseq
        %v1821 = vshrl.u32 %v1820, 7
        %v1822 = vsub.s32 4, %v1821
        %v1823 = vrot.slane %v250, %v1822
        %v1824 = vlaneseq
        %v1825 = vshrl.u32 %v1824, 7
        %v1826 = vsub.s32 4, %v1825
        %v1827 = vrot.slane %v251, %v1826
        %v1828 = vlaneseq
        %v1829 = vshrl.u32 %v1828, 7
        %v1830 = vsub.s32 4, %v1829
        %v1831 = vrot.slane %v252, %v1830
        %v1832 = vmul.f32 %v1578, %v1707
        %v1833 = vmul.f32 %v1582, %v1711
        %v1834 = vmul.f32 %v1586, %v1715
        %v1835 = vmul.f32 %v1590, %v1719
        %v1836 = vmul.f32 %v1594, %v1723
        %v1837 = vmul.f32 %v1598, %v1727
        %v1838 = vmul.f32 %v1602, %v1731
        %v1839 = vmul.f32 %v1606, %v1735
        %v1840 = vmul.f32 %v1610, %v1739
        %v1841 = vmul.f32 %v1614, %v1743
        %v1842 = vmul.f32 %v1618, %v1747
        %v1843 = vmul.f32 %v1622, %v1751
        %v1844 = vmul.f32 %v1626, %v1755
        %v1845 = vmul.f32 %v1630, %v1759
        %v1846 = vmul.f32 %v1634, %v1763
        %v1847 = vmul.f32 %v1638, %v1767
        %v1848 = vmul.f32 %v1642, %v1771
        %v1849 = vmul.f32 %v1646, %v1775
        %v1850 = vmul.f32 %v1650, %v1779
        %v1851 = vmul.f32 %v1654, %v1783
        %v1852 = vmul.f32 %v1658, %v1787
        %v1853 = vmul.f32 %v1662, %v1791
        %v1854 = vmul.f32 %v1666, %v1795
        %v1855 = vmul.f32 %v1670, %v1799
        %v1856 = vmul.f32 %v1674, %v1803
        %v1857 = vmul.f32 %v1678, %v1807
        %v1858 = vmul.f32 %v1682, %v1811
        %v1859 = vmul.f32 %v1686, %v1815
        %v1860 = vmul.f32 %v1690, %v1819
        %v1861 = vmul.f32 %v1694, %v1823
        %v1862 = vmul.f32 %v1698, %v1827
        %v1863 = vmul.f32 %v1702, %v1831
        %v1864 = vadd.f32 %v1544, %v1832
        %v1865 = vadd.f32 %v1545, %v1833
        %v1866 = vadd.f32 %v1546, %v1834
        %v1867 = vadd.f32 %v1547, %v1835
        %v1868 = vadd.f32 %v1548, %v1836
        %v1869 = vadd.f32 %v1549, %v1837
        %v1870 = vadd.f32 %v1550, %v1838
        %v1871 = vadd.f32 %v1551, %v1839
        %v1872 = vadd.f32 %v1552, %v1840
        %v1873 = vadd.f32 %v1553, %v1841
        %v1874 = vadd.f32 %v1554, %v1842
        %v1875 = vadd.f32 %v1555, %v1843
        %v1876 = vadd.f32 %v1556, %v1844
        %v1877 = vadd.f32 %v1557, %v1845
        %v1878 = vadd.f32 %v1558, %v1846
        %v1879 = vadd.f32 %v1559, %v1847
        %v1880 = vadd.f32 %v1560, %v1848
        %v1881 = vadd.f32 %v1561, %v1849
        %v1882 = vadd.f32 %v1562, %v1850
        %v1883 = vadd.f32 %v1563, %v1851
        %v1884 = vadd.f32 %v1564, %v1852
        %v1885 = vadd.f32 %v1565, %v1853
        %v1886 = vadd.f32 %v1566, %v1854
        %v1887 = vadd.f32 %v1567, %v1855
        %v1888 = vadd.f32 %v1568, %v1856
        %v1889 = vadd.f32 %v1569, %v1857
        %v1890 = vadd.f32 %v1570, %v1858
        %v1891 = vadd.f32 %v1571, %v1859
        %v1892 = vadd.f32 %v1572, %v1860
        %v1893 = vadd.f32 %v1573, %v1861
        %v1894 = vadd.f32 %v1574, %v1862
        %v1895 = vadd.f32 %v1575, %v1863
        %1896 = vset.pattern.permute.xlu0 5
        %1897 = vperm.xlu0 %1896, %v253
        %v1898 = vpop.permute.xlu0 %1897
        %1900 = vset.pattern.permute.xlu0 5
        %1901 = vperm.xlu0 %1900, %v254
        %v1902 = vpop.permute.xlu0 %1901
        %1904 = vset.pattern.permute.xlu0 5
        %1905 = vperm.xlu0 %1904, %v255
        %v1906 = vpop.permute.xlu0 %1905
        %1908 = vset.pattern.permute.xlu0 5
        %1909 = vperm.xlu0 %1908, %v256
        %v1910 = vpop.permute.xlu0 %1909
        %1912 = vset.pattern.permute.xlu0 5
        %1913 = vperm.xlu0 %1912, %v257
        %v1914 = vpop.permute.xlu0 %1913
        %1916 = vset.pattern.permute.xlu0 5
        %1917 = vperm.xlu0 %1916, %v258
        %v1918 = vpop.permute.xlu0 %1917
        %1920 = vset.pattern.permute.xlu0 5
        %1921 = vperm.xlu0 %1920, %v259
        %v1922 = vpop.permute.xlu0 %1921
        %1924 = vset.pattern.permute.xlu0 5
        %1925 = vperm.xlu0 %1924, %v260
        %v1926 = vpop.permute.xlu0 %1925
        %1928 = vset.pattern.permute.xlu0 5
        %1929 = vperm.xlu0 %1928, %v261
        %v1930 = vpop.permute.xlu0 %1929
        %1932 = vset.pattern.permute.xlu0 5
        %1933 = vperm.xlu0 %1932, %v262
        %v1934 = vpop.permute.xlu0 %1933
        %1936 = vset.pattern.permute.xlu0 5
        %1937 = vperm.xlu0 %1936, %v263
        %v1938 = vpop.permute.xlu0 %1937
        %1940 = vset.pattern.permute.xlu0 5
        %1941 = vperm.xlu0 %1940, %v264
        %v1942 = vpop.permute.xlu0 %1941
        %1944 = vset.pattern.permute.xlu0 5
        %1945 = vperm.xlu0 %1944, %v265
        %v1946 = vpop.permute.xlu0 %1945
        %1948 = vset.pattern.permute.xlu0 5
        %1949 = vperm.xlu0 %1948, %v266
        %v1950 = vpop.permute.xlu0 %1949
        %1952 = vset.pattern.permute.xlu0 5
        %1953 = vperm.xlu0 %1952, %v267
        %v1954 = vpop.permute.xlu0 %1953
        %1956 = vset.pattern.permute.xlu0 5
        %1957 = vperm.xlu0 %1956, %v268
        %v1958 = vpop.permute.xlu0 %1957
        %1960 = vset.pattern.permute.xlu0 5
        %1961 = vperm.xlu0 %1960, %v269
        %v1962 = vpop.permute.xlu0 %1961
        %1964 = vset.pattern.permute.xlu0 5
        %1965 = vperm.xlu0 %1964, %v270
        %v1966 = vpop.permute.xlu0 %1965
        %1968 = vset.pattern.permute.xlu0 5
        %1969 = vperm.xlu0 %1968, %v271
        %v1970 = vpop.permute.xlu0 %1969
        %1972 = vset.pattern.permute.xlu0 5
        %1973 = vperm.xlu0 %1972, %v272
        %v1974 = vpop.permute.xlu0 %1973
        %1976 = vset.pattern.permute.xlu0 5
        %1977 = vperm.xlu0 %1976, %v273
        %v1978 = vpop.permute.xlu0 %1977
        %1980 = vset.pattern.permute.xlu0 5
        %1981 = vperm.xlu0 %1980, %v274
        %v1982 = vpop.permute.xlu0 %1981
        %1984 = vset.pattern.permute.xlu0 5
        %1985 = vperm.xlu0 %1984, %v275
        %v1986 = vpop.permute.xlu0 %1985
        %1988 = vset.pattern.permute.xlu0 5
        %1989 = vperm.xlu0 %1988, %v276
        %v1990 = vpop.permute.xlu0 %1989
        %1992 = vset.pattern.permute.xlu0 5
        %1993 = vperm.xlu0 %1992, %v277
        %v1994 = vpop.permute.xlu0 %1993
        %1996 = vset.pattern.permute.xlu0 5
        %1997 = vperm.xlu0 %1996, %v278
        %v1998 = vpop.permute.xlu0 %1997
        %2000 = vset.pattern.permute.xlu0 5
        %2001 = vperm.xlu0 %2000, %v279
        %v2002 = vpop.permute.xlu0 %2001
        %2004 = vset.pattern.permute.xlu0 5
        %2005 = vperm.xlu0 %2004, %v280
        %v2006 = vpop.permute.xlu0 %2005
        %2008 = vset.pattern.permute.xlu0 5
        %2009 = vperm.xlu0 %2008, %v281
        %v2010 = vpop.permute.xlu0 %2009
        %2012 = vset.pattern.permute.xlu0 5
        %2013 = vperm.xlu0 %2012, %v282
        %v2014 = vpop.permute.xlu0 %2013
        %2016 = vset.pattern.permute.xlu0 5
        %2017 = vperm.xlu0 %2016, %v283
        %v2018 = vpop.permute.xlu0 %2017
        %2020 = vset.pattern.permute.xlu0 5
        %2021 = vperm.xlu0 %2020, %v284
        %v2022 = vpop.permute.xlu0 %2021
        %v2024 = vlaneseq
        %v2025 = vshrl.u32 %v2024, 7
        %v2026 = vsub.s32 5, %v2025
        %v2027 = vrot.slane %v221, %v2026
        %v2028 = vlaneseq
        %v2029 = vshrl.u32 %v2028, 7
        %v2030 = vsub.s32 5, %v2029
        %v2031 = vrot.slane %v222, %v2030
        %v2032 = vlaneseq
        %v2033 = vshrl.u32 %v2032, 7
        %v2034 = vsub.s32 5, %v2033
        %v2035 = vrot.slane %v223, %v2034
        %v2036 = vlaneseq
        %v2037 = vshrl.u32 %v2036, 7
        %v2038 = vsub.s32 5, %v2037
        %v2039 = vrot.slane %v224, %v2038
        %v2040 = vlaneseq
        %v2041 = vshrl.u32 %v2040, 7
        %v2042 = vsub.s32 5, %v2041
        %v2043 = vrot.slane %v225, %v2042
        %v2044 = vlaneseq
        %v2045 = vshrl.u32 %v2044, 7
        %v2046 = vsub.s32 5, %v2045
        %v2047 = vrot.slane %v226, %v2046
        %v2048 = vlaneseq
        %v2049 = vshrl.u32 %v2048, 7
        %v2050 = vsub.s32 5, %v2049
        %v2051 = vrot.slane %v227, %v2050
        %v2052 = vlaneseq
        %v2053 = vshrl.u32 %v2052, 7
        %v2054 = vsub.s32 5, %v2053
        %v2055 = vrot.slane %v228, %v2054
        %v2056 = vlaneseq
        %v2057 = vshrl.u32 %v2056, 7
        %v2058 = vsub.s32 5, %v2057
        %v2059 = vrot.slane %v229, %v2058
        %v2060 = vlaneseq
        %v2061 = vshrl.u32 %v2060, 7
        %v2062 = vsub.s32 5, %v2061
        %v2063 = vrot.slane %v230, %v2062
        %v2064 = vlaneseq
        %v2065 = vshrl.u32 %v2064, 7
        %v2066 = vsub.s32 5, %v2065
        %v2067 = vrot.slane %v231, %v2066
        %v2068 = vlaneseq
        %v2069 = vshrl.u32 %v2068, 7
        %v2070 = vsub.s32 5, %v2069
        %v2071 = vrot.slane %v232, %v2070
        %v2072 = vlaneseq
        %v2073 = vshrl.u32 %v2072, 7
        %v2074 = vsub.s32 5, %v2073
        %v2075 = vrot.slane %v233, %v2074
        %v2076 = vlaneseq
        %v2077 = vshrl.u32 %v2076, 7
        %v2078 = vsub.s32 5, %v2077
        %v2079 = vrot.slane %v234, %v2078
        %v2080 = vlaneseq
        %v2081 = vshrl.u32 %v2080, 7
        %v2082 = vsub.s32 5, %v2081
        %v2083 = vrot.slane %v235, %v2082
        %v2084 = vlaneseq
        %v2085 = vshrl.u32 %v2084, 7
        %v2086 = vsub.s32 5, %v2085
        %v2087 = vrot.slane %v236, %v2086
        %v2088 = vlaneseq
        %v2089 = vshrl.u32 %v2088, 7
        %v2090 = vsub.s32 5, %v2089
        %v2091 = vrot.slane %v237, %v2090
        %v2092 = vlaneseq
        %v2093 = vshrl.u32 %v2092, 7
        %v2094 = vsub.s32 5, %v2093
        %v2095 = vrot.slane %v238, %v2094
        %v2096 = vlaneseq
        %v2097 = vshrl.u32 %v2096, 7
        %v2098 = vsub.s32 5, %v2097
        %v2099 = vrot.slane %v239, %v2098
        %v2100 = vlaneseq
        %v2101 = vshrl.u32 %v2100, 7
        %v2102 = vsub.s32 5, %v2101
        %v2103 = vrot.slane %v240, %v2102
        %v2104 = vlaneseq
        %v2105 = vshrl.u32 %v2104, 7
        %v2106 = vsub.s32 5, %v2105
        %v2107 = vrot.slane %v241, %v2106
        %v2108 = vlaneseq
        %v2109 = vshrl.u32 %v2108, 7
        %v2110 = vsub.s32 5, %v2109
        %v2111 = vrot.slane %v242, %v2110
        %v2112 = vlaneseq
        %v2113 = vshrl.u32 %v2112, 7
        %v2114 = vsub.s32 5, %v2113
        %v2115 = vrot.slane %v243, %v2114
        %v2116 = vlaneseq
        %v2117 = vshrl.u32 %v2116, 7
        %v2118 = vsub.s32 5, %v2117
        %v2119 = vrot.slane %v244, %v2118
        %v2120 = vlaneseq
        %v2121 = vshrl.u32 %v2120, 7
        %v2122 = vsub.s32 5, %v2121
        %v2123 = vrot.slane %v245, %v2122
        %v2124 = vlaneseq
        %v2125 = vshrl.u32 %v2124, 7
        %v2126 = vsub.s32 5, %v2125
        %v2127 = vrot.slane %v246, %v2126
        %v2128 = vlaneseq
        %v2129 = vshrl.u32 %v2128, 7
        %v2130 = vsub.s32 5, %v2129
        %v2131 = vrot.slane %v247, %v2130
        %v2132 = vlaneseq
        %v2133 = vshrl.u32 %v2132, 7
        %v2134 = vsub.s32 5, %v2133
        %v2135 = vrot.slane %v248, %v2134
        %v2136 = vlaneseq
        %v2137 = vshrl.u32 %v2136, 7
        %v2138 = vsub.s32 5, %v2137
        %v2139 = vrot.slane %v249, %v2138
        %v2140 = vlaneseq
        %v2141 = vshrl.u32 %v2140, 7
        %v2142 = vsub.s32 5, %v2141
        %v2143 = vrot.slane %v250, %v2142
        %v2144 = vlaneseq
        %v2145 = vshrl.u32 %v2144, 7
        %v2146 = vsub.s32 5, %v2145
        %v2147 = vrot.slane %v251, %v2146
        %v2148 = vlaneseq
        %v2149 = vshrl.u32 %v2148, 7
        %v2150 = vsub.s32 5, %v2149
        %v2151 = vrot.slane %v252, %v2150
        %v2152 = vmul.f32 %v1898, %v2027
        %v2153 = vmul.f32 %v1902, %v2031
        %v2154 = vmul.f32 %v1906, %v2035
        %v2155 = vmul.f32 %v1910, %v2039
        %v2156 = vmul.f32 %v1914, %v2043
        %v2157 = vmul.f32 %v1918, %v2047
        %v2158 = vmul.f32 %v1922, %v2051
        %v2159 = vmul.f32 %v1926, %v2055
        %v2160 = vmul.f32 %v1930, %v2059
        %v2161 = vmul.f32 %v1934, %v2063
        %v2162 = vmul.f32 %v1938, %v2067
        %v2163 = vmul.f32 %v1942, %v2071
        %v2164 = vmul.f32 %v1946, %v2075
        %v2165 = vmul.f32 %v1950, %v2079
        %v2166 = vmul.f32 %v1954, %v2083
        %v2167 = vmul.f32 %v1958, %v2087
        %v2168 = vmul.f32 %v1962, %v2091
        %v2169 = vmul.f32 %v1966, %v2095
        %v2170 = vmul.f32 %v1970, %v2099
        %v2171 = vmul.f32 %v1974, %v2103
        %v2172 = vmul.f32 %v1978, %v2107
        %v2173 = vmul.f32 %v1982, %v2111
        %v2174 = vmul.f32 %v1986, %v2115
        %v2175 = vmul.f32 %v1990, %v2119
        %v2176 = vmul.f32 %v1994, %v2123
        %v2177 = vmul.f32 %v1998, %v2127
        %v2178 = vmul.f32 %v2002, %v2131
        %v2179 = vmul.f32 %v2006, %v2135
        %v2180 = vmul.f32 %v2010, %v2139
        %v2181 = vmul.f32 %v2014, %v2143
        %v2182 = vmul.f32 %v2018, %v2147
        %v2183 = vmul.f32 %v2022, %v2151
        %v2184 = vadd.f32 %v1864, %v2152
        %v2185 = vadd.f32 %v1865, %v2153
        %v2186 = vadd.f32 %v1866, %v2154
        %v2187 = vadd.f32 %v1867, %v2155
        %v2188 = vadd.f32 %v1868, %v2156
        %v2189 = vadd.f32 %v1869, %v2157
        %v2190 = vadd.f32 %v1870, %v2158
        %v2191 = vadd.f32 %v1871, %v2159
        %v2192 = vadd.f32 %v1872, %v2160
        %v2193 = vadd.f32 %v1873, %v2161
        %v2194 = vadd.f32 %v1874, %v2162
        %v2195 = vadd.f32 %v1875, %v2163
        %v2196 = vadd.f32 %v1876, %v2164
        %v2197 = vadd.f32 %v1877, %v2165
        %v2198 = vadd.f32 %v1878, %v2166
        %v2199 = vadd.f32 %v1879, %v2167
        %v2200 = vadd.f32 %v1880, %v2168
        %v2201 = vadd.f32 %v1881, %v2169
        %v2202 = vadd.f32 %v1882, %v2170
        %v2203 = vadd.f32 %v1883, %v2171
        %v2204 = vadd.f32 %v1884, %v2172
        %v2205 = vadd.f32 %v1885, %v2173
        %v2206 = vadd.f32 %v1886, %v2174
        %v2207 = vadd.f32 %v1887, %v2175
        %v2208 = vadd.f32 %v1888, %v2176
        %v2209 = vadd.f32 %v1889, %v2177
        %v2210 = vadd.f32 %v1890, %v2178
        %v2211 = vadd.f32 %v1891, %v2179
        %v2212 = vadd.f32 %v1892, %v2180
        %v2213 = vadd.f32 %v1893, %v2181
        %v2214 = vadd.f32 %v1894, %v2182
        %v2215 = vadd.f32 %v1895, %v2183
        %2216 = vset.pattern.permute.xlu0 6
        %2217 = vperm.xlu0 %2216, %v253
        %v2218 = vpop.permute.xlu0 %2217
        %2220 = vset.pattern.permute.xlu0 6
        %2221 = vperm.xlu0 %2220, %v254
        %v2222 = vpop.permute.xlu0 %2221
        %2224 = vset.pattern.permute.xlu0 6
        %2225 = vperm.xlu0 %2224, %v255
        %v2226 = vpop.permute.xlu0 %2225
        %2228 = vset.pattern.permute.xlu0 6
        %2229 = vperm.xlu0 %2228, %v256
        %v2230 = vpop.permute.xlu0 %2229
        %2232 = vset.pattern.permute.xlu0 6
        %2233 = vperm.xlu0 %2232, %v257
        %v2234 = vpop.permute.xlu0 %2233
        %2236 = vset.pattern.permute.xlu0 6
        %2237 = vperm.xlu0 %2236, %v258
        %v2238 = vpop.permute.xlu0 %2237
        %2240 = vset.pattern.permute.xlu0 6
        %2241 = vperm.xlu0 %2240, %v259
        %v2242 = vpop.permute.xlu0 %2241
        %2244 = vset.pattern.permute.xlu0 6
        %2245 = vperm.xlu0 %2244, %v260
        %v2246 = vpop.permute.xlu0 %2245
        %2248 = vset.pattern.permute.xlu0 6
        %2249 = vperm.xlu0 %2248, %v261
        %v2250 = vpop.permute.xlu0 %2249
        %2252 = vset.pattern.permute.xlu0 6
        %2253 = vperm.xlu0 %2252, %v262
        %v2254 = vpop.permute.xlu0 %2253
        %2256 = vset.pattern.permute.xlu0 6
        %2257 = vperm.xlu0 %2256, %v263
        %v2258 = vpop.permute.xlu0 %2257
        %2260 = vset.pattern.permute.xlu0 6
        %2261 = vperm.xlu0 %2260, %v264
        %v2262 = vpop.permute.xlu0 %2261
        %2264 = vset.pattern.permute.xlu0 6
        %2265 = vperm.xlu0 %2264, %v265
        %v2266 = vpop.permute.xlu0 %2265
        %2268 = vset.pattern.permute.xlu0 6
        %2269 = vperm.xlu0 %2268, %v266
        %v2270 = vpop.permute.xlu0 %2269
        %2272 = vset.pattern.permute.xlu0 6
        %2273 = vperm.xlu0 %2272, %v267
        %v2274 = vpop.permute.xlu0 %2273
        %2276 = vset.pattern.permute.xlu0 6
        %2277 = vperm.xlu0 %2276, %v268
        %v2278 = vpop.permute.xlu0 %2277
        %2280 = vset.pattern.permute.xlu0 6
        %2281 = vperm.xlu0 %2280, %v269
        %v2282 = vpop.permute.xlu0 %2281
        %2284 = vset.pattern.permute.xlu0 6
        %2285 = vperm.xlu0 %2284, %v270
        %v2286 = vpop.permute.xlu0 %2285
        %2288 = vset.pattern.permute.xlu0 6
        %2289 = vperm.xlu0 %2288, %v271
        %v2290 = vpop.permute.xlu0 %2289
        %2292 = vset.pattern.permute.xlu0 6
        %2293 = vperm.xlu0 %2292, %v272
        %v2294 = vpop.permute.xlu0 %2293
        %2296 = vset.pattern.permute.xlu0 6
        %2297 = vperm.xlu0 %2296, %v273
        %v2298 = vpop.permute.xlu0 %2297
        %2300 = vset.pattern.permute.xlu0 6
        %2301 = vperm.xlu0 %2300, %v274
        %v2302 = vpop.permute.xlu0 %2301
        %2304 = vset.pattern.permute.xlu0 6
        %2305 = vperm.xlu0 %2304, %v275
        %v2306 = vpop.permute.xlu0 %2305
        %2308 = vset.pattern.permute.xlu0 6
        %2309 = vperm.xlu0 %2308, %v276
        %v2310 = vpop.permute.xlu0 %2309
        %2312 = vset.pattern.permute.xlu0 6
        %2313 = vperm.xlu0 %2312, %v277
        %v2314 = vpop.permute.xlu0 %2313
        %2316 = vset.pattern.permute.xlu0 6
        %2317 = vperm.xlu0 %2316, %v278
        %v2318 = vpop.permute.xlu0 %2317
        %2320 = vset.pattern.permute.xlu0 6
        %2321 = vperm.xlu0 %2320, %v279
        %v2322 = vpop.permute.xlu0 %2321
        %2324 = vset.pattern.permute.xlu0 6
        %2325 = vperm.xlu0 %2324, %v280
        %v2326 = vpop.permute.xlu0 %2325
        %2328 = vset.pattern.permute.xlu0 6
        %2329 = vperm.xlu0 %2328, %v281
        %v2330 = vpop.permute.xlu0 %2329
        %2332 = vset.pattern.permute.xlu0 6
        %2333 = vperm.xlu0 %2332, %v282
        %v2334 = vpop.permute.xlu0 %2333
        %2336 = vset.pattern.permute.xlu0 6
        %2337 = vperm.xlu0 %2336, %v283
        %v2338 = vpop.permute.xlu0 %2337
        %2340 = vset.pattern.permute.xlu0 6
        %2341 = vperm.xlu0 %2340, %v284
        %v2342 = vpop.permute.xlu0 %2341
        %v2344 = vlaneseq
        %v2345 = vshrl.u32 %v2344, 7
        %v2346 = vsub.s32 6, %v2345
        %v2347 = vrot.slane %v221, %v2346
        %v2348 = vlaneseq
        %v2349 = vshrl.u32 %v2348, 7
        %v2350 = vsub.s32 6, %v2349
        %v2351 = vrot.slane %v222, %v2350
        %v2352 = vlaneseq
        %v2353 = vshrl.u32 %v2352, 7
        %v2354 = vsub.s32 6, %v2353
        %v2355 = vrot.slane %v223, %v2354
        %v2356 = vlaneseq
        %v2357 = vshrl.u32 %v2356, 7
        %v2358 = vsub.s32 6, %v2357
        %v2359 = vrot.slane %v224, %v2358
        %v2360 = vlaneseq
        %v2361 = vshrl.u32 %v2360, 7
        %v2362 = vsub.s32 6, %v2361
        %v2363 = vrot.slane %v225, %v2362
        %v2364 = vlaneseq
        %v2365 = vshrl.u32 %v2364, 7
        %v2366 = vsub.s32 6, %v2365
        %v2367 = vrot.slane %v226, %v2366
        %v2368 = vlaneseq
        %v2369 = vshrl.u32 %v2368, 7
        %v2370 = vsub.s32 6, %v2369
        %v2371 = vrot.slane %v227, %v2370
        %v2372 = vlaneseq
        %v2373 = vshrl.u32 %v2372, 7
        %v2374 = vsub.s32 6, %v2373
        %v2375 = vrot.slane %v228, %v2374
        %v2376 = vlaneseq
        %v2377 = vshrl.u32 %v2376, 7
        %v2378 = vsub.s32 6, %v2377
        %v2379 = vrot.slane %v229, %v2378
        %v2380 = vlaneseq
        %v2381 = vshrl.u32 %v2380, 7
        %v2382 = vsub.s32 6, %v2381
        %v2383 = vrot.slane %v230, %v2382
        %v2384 = vlaneseq
        %v2385 = vshrl.u32 %v2384, 7
        %v2386 = vsub.s32 6, %v2385
        %v2387 = vrot.slane %v231, %v2386
        %v2388 = vlaneseq
        %v2389 = vshrl.u32 %v2388, 7
        %v2390 = vsub.s32 6, %v2389
        %v2391 = vrot.slane %v232, %v2390
        %v2392 = vlaneseq
        %v2393 = vshrl.u32 %v2392, 7
        %v2394 = vsub.s32 6, %v2393
        %v2395 = vrot.slane %v233, %v2394
        %v2396 = vlaneseq
        %v2397 = vshrl.u32 %v2396, 7
        %v2398 = vsub.s32 6, %v2397
        %v2399 = vrot.slane %v234, %v2398
        %v2400 = vlaneseq
        %v2401 = vshrl.u32 %v2400, 7
        %v2402 = vsub.s32 6, %v2401
        %v2403 = vrot.slane %v235, %v2402
        %v2404 = vlaneseq
        %v2405 = vshrl.u32 %v2404, 7
        %v2406 = vsub.s32 6, %v2405
        %v2407 = vrot.slane %v236, %v2406
        %v2408 = vlaneseq
        %v2409 = vshrl.u32 %v2408, 7
        %v2410 = vsub.s32 6, %v2409
        %v2411 = vrot.slane %v237, %v2410
        %v2412 = vlaneseq
        %v2413 = vshrl.u32 %v2412, 7
        %v2414 = vsub.s32 6, %v2413
        %v2415 = vrot.slane %v238, %v2414
        %v2416 = vlaneseq
        %v2417 = vshrl.u32 %v2416, 7
        %v2418 = vsub.s32 6, %v2417
        %v2419 = vrot.slane %v239, %v2418
        %v2420 = vlaneseq
        %v2421 = vshrl.u32 %v2420, 7
        %v2422 = vsub.s32 6, %v2421
        %v2423 = vrot.slane %v240, %v2422
        %v2424 = vlaneseq
        %v2425 = vshrl.u32 %v2424, 7
        %v2426 = vsub.s32 6, %v2425
        %v2427 = vrot.slane %v241, %v2426
        %v2428 = vlaneseq
        %v2429 = vshrl.u32 %v2428, 7
        %v2430 = vsub.s32 6, %v2429
        %v2431 = vrot.slane %v242, %v2430
        %v2432 = vlaneseq
        %v2433 = vshrl.u32 %v2432, 7
        %v2434 = vsub.s32 6, %v2433
        %v2435 = vrot.slane %v243, %v2434
        %v2436 = vlaneseq
        %v2437 = vshrl.u32 %v2436, 7
        %v2438 = vsub.s32 6, %v2437
        %v2439 = vrot.slane %v244, %v2438
        %v2440 = vlaneseq
        %v2441 = vshrl.u32 %v2440, 7
        %v2442 = vsub.s32 6, %v2441
        %v2443 = vrot.slane %v245, %v2442
        %v2444 = vlaneseq
        %v2445 = vshrl.u32 %v2444, 7
        %v2446 = vsub.s32 6, %v2445
        %v2447 = vrot.slane %v246, %v2446
        %v2448 = vlaneseq
        %v2449 = vshrl.u32 %v2448, 7
        %v2450 = vsub.s32 6, %v2449
        %v2451 = vrot.slane %v247, %v2450
        %v2452 = vlaneseq
        %v2453 = vshrl.u32 %v2452, 7
        %v2454 = vsub.s32 6, %v2453
        %v2455 = vrot.slane %v248, %v2454
        %v2456 = vlaneseq
        %v2457 = vshrl.u32 %v2456, 7
        %v2458 = vsub.s32 6, %v2457
        %v2459 = vrot.slane %v249, %v2458
        %v2460 = vlaneseq
        %v2461 = vshrl.u32 %v2460, 7
        %v2462 = vsub.s32 6, %v2461
        %v2463 = vrot.slane %v250, %v2462
        %v2464 = vlaneseq
        %v2465 = vshrl.u32 %v2464, 7
        %v2466 = vsub.s32 6, %v2465
        %v2467 = vrot.slane %v251, %v2466
        %v2468 = vlaneseq
        %v2469 = vshrl.u32 %v2468, 7
        %v2470 = vsub.s32 6, %v2469
        %v2471 = vrot.slane %v252, %v2470
        %v2472 = vmul.f32 %v2218, %v2347
        %v2473 = vmul.f32 %v2222, %v2351
        %v2474 = vmul.f32 %v2226, %v2355
        %v2475 = vmul.f32 %v2230, %v2359
        %v2476 = vmul.f32 %v2234, %v2363
        %v2477 = vmul.f32 %v2238, %v2367
        %v2478 = vmul.f32 %v2242, %v2371
        %v2479 = vmul.f32 %v2246, %v2375
        %v2480 = vmul.f32 %v2250, %v2379
        %v2481 = vmul.f32 %v2254, %v2383
        %v2482 = vmul.f32 %v2258, %v2387
        %v2483 = vmul.f32 %v2262, %v2391
        %v2484 = vmul.f32 %v2266, %v2395
        %v2485 = vmul.f32 %v2270, %v2399
        %v2486 = vmul.f32 %v2274, %v2403
        %v2487 = vmul.f32 %v2278, %v2407
        %v2488 = vmul.f32 %v2282, %v2411
        %v2489 = vmul.f32 %v2286, %v2415
        %v2490 = vmul.f32 %v2290, %v2419
        %v2491 = vmul.f32 %v2294, %v2423
        %v2492 = vmul.f32 %v2298, %v2427
        %v2493 = vmul.f32 %v2302, %v2431
        %v2494 = vmul.f32 %v2306, %v2435
        %v2495 = vmul.f32 %v2310, %v2439
        %v2496 = vmul.f32 %v2314, %v2443
        %v2497 = vmul.f32 %v2318, %v2447
        %v2498 = vmul.f32 %v2322, %v2451
        %v2499 = vmul.f32 %v2326, %v2455
        %v2500 = vmul.f32 %v2330, %v2459
        %v2501 = vmul.f32 %v2334, %v2463
        %v2502 = vmul.f32 %v2338, %v2467
        %v2503 = vmul.f32 %v2342, %v2471
        %v2504 = vadd.f32 %v2184, %v2472
        %v2505 = vadd.f32 %v2185, %v2473
        %v2506 = vadd.f32 %v2186, %v2474
        %v2507 = vadd.f32 %v2187, %v2475
        %v2508 = vadd.f32 %v2188, %v2476
        %v2509 = vadd.f32 %v2189, %v2477
        %v2510 = vadd.f32 %v2190, %v2478
        %v2511 = vadd.f32 %v2191, %v2479
        %v2512 = vadd.f32 %v2192, %v2480
        %v2513 = vadd.f32 %v2193, %v2481
        %v2514 = vadd.f32 %v2194, %v2482
        %v2515 = vadd.f32 %v2195, %v2483
        %v2516 = vadd.f32 %v2196, %v2484
        %v2517 = vadd.f32 %v2197, %v2485
        %v2518 = vadd.f32 %v2198, %v2486
        %v2519 = vadd.f32 %v2199, %v2487
        %v2520 = vadd.f32 %v2200, %v2488
        %v2521 = vadd.f32 %v2201, %v2489
        %v2522 = vadd.f32 %v2202, %v2490
        %v2523 = vadd.f32 %v2203, %v2491
        %v2524 = vadd.f32 %v2204, %v2492
        %v2525 = vadd.f32 %v2205, %v2493
        %v2526 = vadd.f32 %v2206, %v2494
        %v2527 = vadd.f32 %v2207, %v2495
        %v2528 = vadd.f32 %v2208, %v2496
        %v2529 = vadd.f32 %v2209, %v2497
        %v2530 = vadd.f32 %v2210, %v2498
        %v2531 = vadd.f32 %v2211, %v2499
        %v2532 = vadd.f32 %v2212, %v2500
        %v2533 = vadd.f32 %v2213, %v2501
        %v2534 = vadd.f32 %v2214, %v2502
        %v2535 = vadd.f32 %v2215, %v2503
        %2536 = vset.pattern.permute.xlu0 7
        %2537 = vperm.xlu0 %2536, %v253
        %v2538 = vpop.permute.xlu0 %2537
        %2540 = vset.pattern.permute.xlu0 7
        %2541 = vperm.xlu0 %2540, %v254
        %v2542 = vpop.permute.xlu0 %2541
        %2544 = vset.pattern.permute.xlu0 7
        %2545 = vperm.xlu0 %2544, %v255
        %v2546 = vpop.permute.xlu0 %2545
        %2548 = vset.pattern.permute.xlu0 7
        %2549 = vperm.xlu0 %2548, %v256
        %v2550 = vpop.permute.xlu0 %2549
        %2552 = vset.pattern.permute.xlu0 7
        %2553 = vperm.xlu0 %2552, %v257
        %v2554 = vpop.permute.xlu0 %2553
        %2556 = vset.pattern.permute.xlu0 7
        %2557 = vperm.xlu0 %2556, %v258
        %v2558 = vpop.permute.xlu0 %2557
        %2560 = vset.pattern.permute.xlu0 7
        %2561 = vperm.xlu0 %2560, %v259
        %v2562 = vpop.permute.xlu0 %2561
        %2564 = vset.pattern.permute.xlu0 7
        %2565 = vperm.xlu0 %2564, %v260
        %v2566 = vpop.permute.xlu0 %2565
        %2568 = vset.pattern.permute.xlu0 7
        %2569 = vperm.xlu0 %2568, %v261
        %v2570 = vpop.permute.xlu0 %2569
        %2572 = vset.pattern.permute.xlu0 7
        %2573 = vperm.xlu0 %2572, %v262
        %v2574 = vpop.permute.xlu0 %2573
        %2576 = vset.pattern.permute.xlu0 7
        %2577 = vperm.xlu0 %2576, %v263
        %v2578 = vpop.permute.xlu0 %2577
        %2580 = vset.pattern.permute.xlu0 7
        %2581 = vperm.xlu0 %2580, %v264
        %v2582 = vpop.permute.xlu0 %2581
        %2584 = vset.pattern.permute.xlu0 7
        %2585 = vperm.xlu0 %2584, %v265
        %v2586 = vpop.permute.xlu0 %2585
        %2588 = vset.pattern.permute.xlu0 7
        %2589 = vperm.xlu0 %2588, %v266
        %v2590 = vpop.permute.xlu0 %2589
        %2592 = vset.pattern.permute.xlu0 7
        %2593 = vperm.xlu0 %2592, %v267
        %v2594 = vpop.permute.xlu0 %2593
        %2596 = vset.pattern.permute.xlu0 7
        %2597 = vperm.xlu0 %2596, %v268
        %v2598 = vpop.permute.xlu0 %2597
        %2600 = vset.pattern.permute.xlu0 7
        %2601 = vperm.xlu0 %2600, %v269
        %v2602 = vpop.permute.xlu0 %2601
        %2604 = vset.pattern.permute.xlu0 7
        %2605 = vperm.xlu0 %2604, %v270
        %v2606 = vpop.permute.xlu0 %2605
        %2608 = vset.pattern.permute.xlu0 7
        %2609 = vperm.xlu0 %2608, %v271
        %v2610 = vpop.permute.xlu0 %2609
        %2612 = vset.pattern.permute.xlu0 7
        %2613 = vperm.xlu0 %2612, %v272
        %v2614 = vpop.permute.xlu0 %2613
        %2616 = vset.pattern.permute.xlu0 7
        %2617 = vperm.xlu0 %2616, %v273
        %v2618 = vpop.permute.xlu0 %2617
        %2620 = vset.pattern.permute.xlu0 7
        %2621 = vperm.xlu0 %2620, %v274
        %v2622 = vpop.permute.xlu0 %2621
        %2624 = vset.pattern.permute.xlu0 7
        %2625 = vperm.xlu0 %2624, %v275
        %v2626 = vpop.permute.xlu0 %2625
        %2628 = vset.pattern.permute.xlu0 7
        %2629 = vperm.xlu0 %2628, %v276
        %v2630 = vpop.permute.xlu0 %2629
        %2632 = vset.pattern.permute.xlu0 7
        %2633 = vperm.xlu0 %2632, %v277
        %v2634 = vpop.permute.xlu0 %2633
        %2636 = vset.pattern.permute.xlu0 7
        %2637 = vperm.xlu0 %2636, %v278
        %v2638 = vpop.permute.xlu0 %2637
        %2640 = vset.pattern.permute.xlu0 7
        %2641 = vperm.xlu0 %2640, %v279
        %v2642 = vpop.permute.xlu0 %2641
        %2644 = vset.pattern.permute.xlu0 7
        %2645 = vperm.xlu0 %2644, %v280
        %v2646 = vpop.permute.xlu0 %2645
        %2648 = vset.pattern.permute.xlu0 7
        %2649 = vperm.xlu0 %2648, %v281
        %v2650 = vpop.permute.xlu0 %2649
        %2652 = vset.pattern.permute.xlu0 7
        %2653 = vperm.xlu0 %2652, %v282
        %v2654 = vpop.permute.xlu0 %2653
        %2656 = vset.pattern.permute.xlu0 7
        %2657 = vperm.xlu0 %2656, %v283
        %v2658 = vpop.permute.xlu0 %2657
        %2660 = vset.pattern.permute.xlu0 7
        %2661 = vperm.xlu0 %2660, %v284
        %v2662 = vpop.permute.xlu0 %2661
        %v2664 = vlaneseq
        %v2665 = vshrl.u32 %v2664, 7
        %v2666 = vsub.s32 7, %v2665
        %v2667 = vrot.slane %v221, %v2666
        %v2668 = vlaneseq
        %v2669 = vshrl.u32 %v2668, 7
        %v2670 = vsub.s32 7, %v2669
        %v2671 = vrot.slane %v222, %v2670
        %v2672 = vlaneseq
        %v2673 = vshrl.u32 %v2672, 7
        %v2674 = vsub.s32 7, %v2673
        %v2675 = vrot.slane %v223, %v2674
        %v2676 = vlaneseq
        %v2677 = vshrl.u32 %v2676, 7
        %v2678 = vsub.s32 7, %v2677
        %v2679 = vrot.slane %v224, %v2678
        %v2680 = vlaneseq
        %v2681 = vshrl.u32 %v2680, 7
        %v2682 = vsub.s32 7, %v2681
        %v2683 = vrot.slane %v225, %v2682
        %v2684 = vlaneseq
        %v2685 = vshrl.u32 %v2684, 7
        %v2686 = vsub.s32 7, %v2685
        %v2687 = vrot.slane %v226, %v2686
        %v2688 = vlaneseq
        %v2689 = vshrl.u32 %v2688, 7
        %v2690 = vsub.s32 7, %v2689
        %v2691 = vrot.slane %v227, %v2690
        %v2692 = vlaneseq
        %v2693 = vshrl.u32 %v2692, 7
        %v2694 = vsub.s32 7, %v2693
        %v2695 = vrot.slane %v228, %v2694
        %v2696 = vlaneseq
        %v2697 = vshrl.u32 %v2696, 7
        %v2698 = vsub.s32 7, %v2697
        %v2699 = vrot.slane %v229, %v2698
        %v2700 = vlaneseq
        %v2701 = vshrl.u32 %v2700, 7
        %v2702 = vsub.s32 7, %v2701
        %v2703 = vrot.slane %v230, %v2702
        %v2704 = vlaneseq
        %v2705 = vshrl.u32 %v2704, 7
        %v2706 = vsub.s32 7, %v2705
        %v2707 = vrot.slane %v231, %v2706
        %v2708 = vlaneseq
        %v2709 = vshrl.u32 %v2708, 7
        %v2710 = vsub.s32 7, %v2709
        %v2711 = vrot.slane %v232, %v2710
        %v2712 = vlaneseq
        %v2713 = vshrl.u32 %v2712, 7
        %v2714 = vsub.s32 7, %v2713
        %v2715 = vrot.slane %v233, %v2714
        %v2716 = vlaneseq
        %v2717 = vshrl.u32 %v2716, 7
        %v2718 = vsub.s32 7, %v2717
        %v2719 = vrot.slane %v234, %v2718
        %v2720 = vlaneseq
        %v2721 = vshrl.u32 %v2720, 7
        %v2722 = vsub.s32 7, %v2721
        %v2723 = vrot.slane %v235, %v2722
        %v2724 = vlaneseq
        %v2725 = vshrl.u32 %v2724, 7
        %v2726 = vsub.s32 7, %v2725
        %v2727 = vrot.slane %v236, %v2726
        %v2728 = vlaneseq
        %v2729 = vshrl.u32 %v2728, 7
        %v2730 = vsub.s32 7, %v2729
        %v2731 = vrot.slane %v237, %v2730
        %v2732 = vlaneseq
        %v2733 = vshrl.u32 %v2732, 7
        %v2734 = vsub.s32 7, %v2733
        %v2735 = vrot.slane %v238, %v2734
        %v2736 = vlaneseq
        %v2737 = vshrl.u32 %v2736, 7
        %v2738 = vsub.s32 7, %v2737
        %v2739 = vrot.slane %v239, %v2738
        %v2740 = vlaneseq
        %v2741 = vshrl.u32 %v2740, 7
        %v2742 = vsub.s32 7, %v2741
        %v2743 = vrot.slane %v240, %v2742
        %v2744 = vlaneseq
        %v2745 = vshrl.u32 %v2744, 7
        %v2746 = vsub.s32 7, %v2745
        %v2747 = vrot.slane %v241, %v2746
        %v2748 = vlaneseq
        %v2749 = vshrl.u32 %v2748, 7
        %v2750 = vsub.s32 7, %v2749
        %v2751 = vrot.slane %v242, %v2750
        %v2752 = vlaneseq
        %v2753 = vshrl.u32 %v2752, 7
        %v2754 = vsub.s32 7, %v2753
        %v2755 = vrot.slane %v243, %v2754
        %v2756 = vlaneseq
        %v2757 = vshrl.u32 %v2756, 7
        %v2758 = vsub.s32 7, %v2757
        %v2759 = vrot.slane %v244, %v2758
        %v2760 = vlaneseq
        %v2761 = vshrl.u32 %v2760, 7
        %v2762 = vsub.s32 7, %v2761
        %v2763 = vrot.slane %v245, %v2762
        %v2764 = vlaneseq
        %v2765 = vshrl.u32 %v2764, 7
        %v2766 = vsub.s32 7, %v2765
        %v2767 = vrot.slane %v246, %v2766
        %v2768 = vlaneseq
        %v2769 = vshrl.u32 %v2768, 7
        %v2770 = vsub.s32 7, %v2769
        %v2771 = vrot.slane %v247, %v2770
        %v2772 = vlaneseq
        %v2773 = vshrl.u32 %v2772, 7
        %v2774 = vsub.s32 7, %v2773
        %v2775 = vrot.slane %v248, %v2774
        %v2776 = vlaneseq
        %v2777 = vshrl.u32 %v2776, 7
        %v2778 = vsub.s32 7, %v2777
        %v2779 = vrot.slane %v249, %v2778
        %v2780 = vlaneseq
        %v2781 = vshrl.u32 %v2780, 7
        %v2782 = vsub.s32 7, %v2781
        %v2783 = vrot.slane %v250, %v2782
        %v2784 = vlaneseq
        %v2785 = vshrl.u32 %v2784, 7
        %v2786 = vsub.s32 7, %v2785
        %v2787 = vrot.slane %v251, %v2786
        %v2788 = vlaneseq
        %v2789 = vshrl.u32 %v2788, 7
        %v2790 = vsub.s32 7, %v2789
        %v2791 = vrot.slane %v252, %v2790
        %v2792 = vmul.f32 %v2538, %v2667
        %v2793 = vmul.f32 %v2542, %v2671
        %v2794 = vmul.f32 %v2546, %v2675
        %v2795 = vmul.f32 %v2550, %v2679
        %v2796 = vmul.f32 %v2554, %v2683
        %v2797 = vmul.f32 %v2558, %v2687
        %v2798 = vmul.f32 %v2562, %v2691
        %v2799 = vmul.f32 %v2566, %v2695
        %v2800 = vmul.f32 %v2570, %v2699
        %v2801 = vmul.f32 %v2574, %v2703
        %v2802 = vmul.f32 %v2578, %v2707
        %v2803 = vmul.f32 %v2582, %v2711
        %v2804 = vmul.f32 %v2586, %v2715
        %v2805 = vmul.f32 %v2590, %v2719
        %v2806 = vmul.f32 %v2594, %v2723
        %v2807 = vmul.f32 %v2598, %v2727
        %v2808 = vmul.f32 %v2602, %v2731
        %v2809 = vmul.f32 %v2606, %v2735
        %v2810 = vmul.f32 %v2610, %v2739
        %v2811 = vmul.f32 %v2614, %v2743
        %v2812 = vmul.f32 %v2618, %v2747
        %v2813 = vmul.f32 %v2622, %v2751
        %v2814 = vmul.f32 %v2626, %v2755
        %v2815 = vmul.f32 %v2630, %v2759
        %v2816 = vmul.f32 %v2634, %v2763
        %v2817 = vmul.f32 %v2638, %v2767
        %v2818 = vmul.f32 %v2642, %v2771
        %v2819 = vmul.f32 %v2646, %v2775
        %v2820 = vmul.f32 %v2650, %v2779
        %v2821 = vmul.f32 %v2654, %v2783
        %v2822 = vmul.f32 %v2658, %v2787
        %v2823 = vmul.f32 %v2662, %v2791
        %v2824 = vadd.f32 %v2504, %v2792
        %v2825 = vadd.f32 %v2505, %v2793
        %v2826 = vadd.f32 %v2506, %v2794
        %v2827 = vadd.f32 %v2507, %v2795
        %v2828 = vadd.f32 %v2508, %v2796
        %v2829 = vadd.f32 %v2509, %v2797
        %v2830 = vadd.f32 %v2510, %v2798
        %v2831 = vadd.f32 %v2511, %v2799
        %v2832 = vadd.f32 %v2512, %v2800
        %v2833 = vadd.f32 %v2513, %v2801
        %v2834 = vadd.f32 %v2514, %v2802
        %v2835 = vadd.f32 %v2515, %v2803
        %v2836 = vadd.f32 %v2516, %v2804
        %v2837 = vadd.f32 %v2517, %v2805
        %v2838 = vadd.f32 %v2518, %v2806
        %v2839 = vadd.f32 %v2519, %v2807
        %v2840 = vadd.f32 %v2520, %v2808
        %v2841 = vadd.f32 %v2521, %v2809
        %v2842 = vadd.f32 %v2522, %v2810
        %v2843 = vadd.f32 %v2523, %v2811
        %v2844 = vadd.f32 %v2524, %v2812
        %v2845 = vadd.f32 %v2525, %v2813
        %v2846 = vadd.f32 %v2526, %v2814
        %v2847 = vadd.f32 %v2527, %v2815
        %v2848 = vadd.f32 %v2528, %v2816
        %v2849 = vadd.f32 %v2529, %v2817
        %v2850 = vadd.f32 %v2530, %v2818
        %v2851 = vadd.f32 %v2531, %v2819
        %v2852 = vadd.f32 %v2532, %v2820
        %v2853 = vadd.f32 %v2533, %v2821
        %v2854 = vadd.f32 %v2534, %v2822
        %v2855 = vadd.f32 %v2535, %v2823
        %vm2856 = vcmask 261120
        %v2858 = vsel %vm2856, %v2824, 0
        %v2861 = vsel %vm2856, %v2825, 0
        %v2864 = vsel %vm2856, %v2826, 0
        %v2867 = vsel %vm2856, %v2827, 0
        %v2870 = vsel %vm2856, %v2828, 0
        %v2873 = vsel %vm2856, %v2829, 0
        %v2876 = vsel %vm2856, %v2830, 0
        %v2879 = vsel %vm2856, %v2831, 0
        %v2882 = vsel %vm2856, %v2832, 0
        %v2885 = vsel %vm2856, %v2833, 0
        %v2888 = vsel %vm2856, %v2834, 0
        %v2891 = vsel %vm2856, %v2835, 0
        %v2894 = vsel %vm2856, %v2836, 0
        %v2897 = vsel %vm2856, %v2837, 0
        %v2900 = vsel %vm2856, %v2838, 0
        %v2903 = vsel %vm2856, %v2839, 0
        %v2906 = vsel %vm2856, %v2840, 0
        %v2909 = vsel %vm2856, %v2841, 0
        %v2912 = vsel %vm2856, %v2842, 0
        %v2915 = vsel %vm2856, %v2843, 0
        %v2918 = vsel %vm2856, %v2844, 0
        %v2921 = vsel %vm2856, %v2845, 0
        %v2924 = vsel %vm2856, %v2846, 0
        %v2927 = vsel %vm2856, %v2847, 0
        %v2930 = vsel %vm2856, %v2848, 0
        %v2933 = vsel %vm2856, %v2849, 0
        %v2936 = vsel %vm2856, %v2850, 0
        %v2939 = vsel %vm2856, %v2851, 0
        %v2942 = vsel %vm2856, %v2852, 0
        %v2945 = vsel %vm2856, %v2853, 0
        %v2948 = vsel %vm2856, %v2854, 0
        %v2951 = vsel %vm2856, %v2855, 0
        %2953 = vmatprep.subr.mxu0 0.0
        %2954 = vmatpush1.msra.mxu0 %v285
        %2955 = vmatprep.subr.mxu0 0.0
        %2956 = vmatpush1.msra.mxu0 %v286
        %2957 = vmatprep.subr.mxu0 0.0
        %2958 = vmatpush1.msra.mxu0 %v287
        %2959 = vmatprep.subr.mxu0 0.0
        %2960 = vmatpush1.msra.mxu0 %v288
        %2961 = vmatprep.subr.mxu0 0.0
        %2962 = vmatpush1.msra.mxu0 0.0
        %2963 = vmatprep.subr.mxu0 0.0
        %2964 = vmatpush1.msra.mxu0 0.0
        %2965 = vmatprep.subr.mxu0 0.0
        %2966 = vmatpush1.msra.mxu0 0.0
        %2967 = vmatprep.subr.mxu0 0.0
        %2968 = vmatpush1.msra.mxu0 0.0
        %2969 = vmatprep.subr.mxu0 0.0
        %2970 = vmatpush1.msra.mxu0 0.0
        %2971 = vmatprep.subr.mxu0 0.0
        %2972 = vmatpush1.msra.mxu0 0.0
        %2973 = vmatprep.subr.mxu0 0.0
        %2974 = vmatpush1.msra.mxu0 0.0
        %2975 = vmatprep.subr.mxu0 0.0
        %2976 = vmatpush1.msra.mxu0 0.0
        %2977 = vmatprep.subr.mxu0 0.0
        %2978 = vmatpush1.msra.mxu0 0.0
        %2979 = vmatprep.subr.mxu0 0.0
        %2980 = vmatpush1.msra.mxu0 0.0
        %2981 = vmatprep.subr.mxu0 0.0
        %2982 = vmatpush1.msra.mxu0 0.0
        %2983 = vmatprep.subr.mxu0 0.0
        %2984 = vmatpush1.msra.mxu0 0.0
        %2985 = vmatprep.subr.mxu0 0.0
        %2986 = vmatpush1.msra.mxu0 0.0
        %2987 = vmatprep.subr.mxu0 0.0
        %2988 = vmatpush1.msra.mxu0 0.0
        %2989 = vmatprep.subr.mxu0 0.0
        %2990 = vmatpush1.msra.mxu0 0.0
        %2991 = vmatprep.subr.mxu0 0.0
        %2992 = vmatpush1.msra.mxu0 0.0
        %2993 = vmatprep.subr.mxu0 0.0
        %2994 = vmatpush1.msra.mxu0 0.0
        %2995 = vmatprep.subr.mxu0 0.0
        %2996 = vmatpush1.msra.mxu0 0.0
        %2997 = vmatprep.subr.mxu0 0.0
        %2998 = vmatpush1.msra.mxu0 0.0
        %2999 = vmatprep.subr.mxu0 0.0
        %3000 = vmatpush1.msra.mxu0 0.0
        %3001 = vmatprep.subr.mxu0 0.0
        %3002 = vmatpush1.msra.mxu0 0.0
        %3003 = vmatprep.subr.mxu0 0.0
        %3004 = vmatpush1.msra.mxu0 0.0
        %3005 = vmatprep.subr.mxu0 0.0
        %3006 = vmatpush1.msra.mxu0 0.0
        %3007 = vmatprep.subr.mxu0 0.0
        %3008 = vmatpush1.msra.mxu0 0.0
        %3009 = vmatprep.subr.mxu0 0.0
        %3010 = vmatpush1.msra.mxu0 0.0
        %3011 = vmatprep.subr.mxu0 0.0
        %3012 = vmatpush1.msra.mxu0 0.0
        %3013 = vmatprep.subr.mxu0 0.0
        %3014 = vmatpush1.msra.mxu0 0.0
        %3015 = vmatprep.subr.mxu0 0.0
        %3016 = vmatpush1.msra.mxu0 0.0
        %3017 = vmatprep.mubr.f32.mxu0 0.0
        %3018 = vmatmul.mubr.f32.gmra.mrb[0].mxu0 %v2858
        %v3019 = vpop.f32.mrb[0].mxu0
        %v3020 = vadd.f32 %v294, %v3019
        %v3021 = vpop.f32.mrb[0].mxu0
        %3022 = vmatprep.mubr.f32.mxu0 0.0
        %3023 = vmatmul.mubr.f32.gmra.mrb[0].mxu0 %v2861
        %v3024 = vpop.f32.mrb[0].mxu0
        %v3025 = vadd.f32 %v294, %v3024
        %v3026 = vpop.f32.mrb[0].mxu0
        %3027 = vmatprep.mubr.f32.mxu0 0.0
        %3028 = vmatmul.mubr.f32.gmra.mrb[0].mxu0 %v2864
        %v3029 = vpop.f32.mrb[0].mxu0
        %v3030 = vadd.f32 %v294, %v3029
        %v3031 = vpop.f32.mrb[0].mxu0
        %3032 = vmatprep.mubr.f32.mxu0 0.0
        %3033 = vmatmul.mubr.f32.gmra.mrb[0].mxu0 %v2867
        %v3034 = vpop.f32.mrb[0].mxu0
        %v3035 = vadd.f32 %v294, %v3034
        %v3036 = vpop.f32.mrb[0].mxu0
        %3037 = vmatprep.mubr.f32.mxu0 0.0
        %3038 = vmatmul.mubr.f32.gmra.mrb[0].mxu0 %v2870
        %v3039 = vpop.f32.mrb[0].mxu0
        %v3040 = vadd.f32 %v294, %v3039
        %v3041 = vpop.f32.mrb[0].mxu0
        %3042 = vmatprep.mubr.f32.mxu0 0.0
        %3043 = vmatmul.mubr.f32.gmra.mrb[0].mxu0 %v2873
        %v3044 = vpop.f32.mrb[0].mxu0
        %v3045 = vadd.f32 %v294, %v3044
        %v3046 = vpop.f32.mrb[0].mxu0
        %3047 = vmatprep.mubr.f32.mxu0 0.0
        %3048 = vmatmul.mubr.f32.gmra.mrb[0].mxu0 %v2876
        %v3049 = vpop.f32.mrb[0].mxu0
        %v3050 = vadd.f32 %v294, %v3049
        %v3051 = vpop.f32.mrb[0].mxu0
        %3052 = vmatprep.mubr.f32.mxu0 0.0
        %3053 = vmatmul.mubr.f32.gmra.mrb[0].mxu0 %v2879
        %v3054 = vpop.f32.mrb[0].mxu0
        %v3055 = vadd.f32 %v294, %v3054
        %v3056 = vpop.f32.mrb[0].mxu0
        %3057 = vmatprep.mubr.f32.mxu0 0.0
        %3058 = vmatmul.mubr.f32.gmra.mrb[0].mxu0 %v2882
        %v3059 = vpop.f32.mrb[0].mxu0
        %v3060 = vadd.f32 %v294, %v3059
        %v3061 = vpop.f32.mrb[0].mxu0
        %3062 = vmatprep.mubr.f32.mxu0 0.0
        %3063 = vmatmul.mubr.f32.gmra.mrb[0].mxu0 %v2885
        %v3064 = vpop.f32.mrb[0].mxu0
        %v3065 = vadd.f32 %v294, %v3064
        %v3066 = vpop.f32.mrb[0].mxu0
        %3067 = vmatprep.mubr.f32.mxu0 0.0
        %3068 = vmatmul.mubr.f32.gmra.mrb[0].mxu0 %v2888
        %v3069 = vpop.f32.mrb[0].mxu0
        %v3070 = vadd.f32 %v294, %v3069
        %v3071 = vpop.f32.mrb[0].mxu0
        %3072 = vmatprep.mubr.f32.mxu0 0.0
        %3073 = vmatmul.mubr.f32.gmra.mrb[0].mxu0 %v2891
        %v3074 = vpop.f32.mrb[0].mxu0
        %v3075 = vadd.f32 %v294, %v3074
        %v3076 = vpop.f32.mrb[0].mxu0
        %3077 = vmatprep.mubr.f32.mxu0 0.0
        %3078 = vmatmul.mubr.f32.gmra.mrb[0].mxu0 %v2894
        %v3079 = vpop.f32.mrb[0].mxu0
        %v3080 = vadd.f32 %v294, %v3079
        %v3081 = vpop.f32.mrb[0].mxu0
        %3082 = vmatprep.mubr.f32.mxu0 0.0
        %3083 = vmatmul.mubr.f32.gmra.mrb[0].mxu0 %v2897
        %v3084 = vpop.f32.mrb[0].mxu0
        %v3085 = vadd.f32 %v294, %v3084
        %v3086 = vpop.f32.mrb[0].mxu0
        %3087 = vmatprep.mubr.f32.mxu0 0.0
        %3088 = vmatmul.mubr.f32.gmra.mrb[0].mxu0 %v2900
        %v3089 = vpop.f32.mrb[0].mxu0
        %v3090 = vadd.f32 %v294, %v3089
        %v3091 = vpop.f32.mrb[0].mxu0
        %3092 = vmatprep.mubr.f32.mxu0 0.0
        %3093 = vmatmul.mubr.f32.gmra.mrb[0].mxu0 %v2903
        %v3094 = vpop.f32.mrb[0].mxu0
        %v3095 = vadd.f32 %v294, %v3094
        %v3096 = vpop.f32.mrb[0].mxu0
        %3097 = vmatprep.mubr.f32.mxu0 0.0
        %3098 = vmatmul.mubr.f32.gmra.mrb[0].mxu0 %v2906
        %v3099 = vpop.f32.mrb[0].mxu0
        %v3100 = vadd.f32 %v294, %v3099
        %v3101 = vpop.f32.mrb[0].mxu0
        %3102 = vmatprep.mubr.f32.mxu0 0.0
        %3103 = vmatmul.mubr.f32.gmra.mrb[0].mxu0 %v2909
        %v3104 = vpop.f32.mrb[0].mxu0
        %v3105 = vadd.f32 %v294, %v3104
        %v3106 = vpop.f32.mrb[0].mxu0
        %3107 = vmatprep.mubr.f32.mxu0 0.0
        %3108 = vmatmul.mubr.f32.gmra.mrb[0].mxu0 %v2912
        %v3109 = vpop.f32.mrb[0].mxu0
        %v3110 = vadd.f32 %v294, %v3109
        %v3111 = vpop.f32.mrb[0].mxu0
        %3112 = vmatprep.mubr.f32.mxu0 0.0
        %3113 = vmatmul.mubr.f32.gmra.mrb[0].mxu0 %v2915
        %v3114 = vpop.f32.mrb[0].mxu0
        %v3115 = vadd.f32 %v294, %v3114
        %v3116 = vpop.f32.mrb[0].mxu0
        %3117 = vmatprep.mubr.f32.mxu0 0.0
        %3118 = vmatmul.mubr.f32.gmra.mrb[0].mxu0 %v2918
        %v3119 = vpop.f32.mrb[0].mxu0
        %v3120 = vadd.f32 %v294, %v3119
        %v3121 = vpop.f32.mrb[0].mxu0
        %3122 = vmatprep.mubr.f32.mxu0 0.0
        %3123 = vmatmul.mubr.f32.gmra.mrb[0].mxu0 %v2921
        %v3124 = vpop.f32.mrb[0].mxu0
        %v3125 = vadd.f32 %v294, %v3124
        %v3126 = vpop.f32.mrb[0].mxu0
        %3127 = vmatprep.mubr.f32.mxu0 0.0
        %3128 = vmatmul.mubr.f32.gmra.mrb[0].mxu0 %v2924
        %v3129 = vpop.f32.mrb[0].mxu0
        %v3130 = vadd.f32 %v294, %v3129
        %v3131 = vpop.f32.mrb[0].mxu0
        %3132 = vmatprep.mubr.f32.mxu0 0.0
        %3133 = vmatmul.mubr.f32.gmra.mrb[0].mxu0 %v2927
        %v3134 = vpop.f32.mrb[0].mxu0
        %v3135 = vadd.f32 %v294, %v3134
        %v3136 = vpop.f32.mrb[0].mxu0
        %3137 = vmatprep.mubr.f32.mxu0 0.0
        %3138 = vmatmul.mubr.f32.gmra.mrb[0].mxu0 %v2930
        %v3139 = vpop.f32.mrb[0].mxu0
        %v3140 = vadd.f32 %v294, %v3139
        %v3141 = vpop.f32.mrb[0].mxu0
        %3142 = vmatprep.mubr.f32.mxu0 0.0
        %3143 = vmatmul.mubr.f32.gmra.mrb[0].mxu0 %v2933
        %v3144 = vpop.f32.mrb[0].mxu0
        %v3145 = vadd.f32 %v294, %v3144
        %v3146 = vpop.f32.mrb[0].mxu0
        %3147 = vmatprep.mubr.f32.mxu0 0.0
        %3148 = vmatmul.mubr.f32.gmra.mrb[0].mxu0 %v2936
        %v3149 = vpop.f32.mrb[0].mxu0
        %v3150 = vadd.f32 %v294, %v3149
        %v3151 = vpop.f32.mrb[0].mxu0
        %3152 = vmatprep.mubr.f32.mxu0 0.0
        %3153 = vmatmul.mubr.f32.gmra.mrb[0].mxu0 %v2939
        %v3154 = vpop.f32.mrb[0].mxu0
        %v3155 = vadd.f32 %v294, %v3154
        %v3156 = vpop.f32.mrb[0].mxu0
        %3157 = vmatprep.mubr.f32.mxu0 0.0
        %3158 = vmatmul.mubr.f32.gmra.mrb[0].mxu0 %v2942
        %v3159 = vpop.f32.mrb[0].mxu0
        %v3160 = vadd.f32 %v294, %v3159
        %v3161 = vpop.f32.mrb[0].mxu0
        %3162 = vmatprep.mubr.f32.mxu0 0.0
        %3163 = vmatmul.mubr.f32.gmra.mrb[0].mxu0 %v2945
        %v3164 = vpop.f32.mrb[0].mxu0
        %v3165 = vadd.f32 %v294, %v3164
        %v3166 = vpop.f32.mrb[0].mxu0
        %3167 = vmatprep.mubr.f32.mxu0 0.0
        %3168 = vmatmul.mubr.f32.gmra.mrb[0].mxu0 %v2948
        %v3169 = vpop.f32.mrb[0].mxu0
        %v3170 = vadd.f32 %v294, %v3169
        %v3171 = vpop.f32.mrb[0].mxu0
        %3172 = vmatprep.mubr.f32.mxu0 0.0
        %3173 = vmatmul.mubr.f32.gmra.mrb[0].mxu0 %v2951
        %v3174 = vpop.f32.mrb[0].mxu0
        %v3175 = vadd.f32 %v294, %v3174
        %v3176 = vpop.f32.mrb[0].mxu0
        %3177 = vdwg.mxu0
        %v3178 = vmax.f32 %v3020, 0.0
        %v3179 = vmax.f32 %v3025, 0.0
        %v3180 = vmax.f32 %v3030, 0.0
        %v3181 = vmax.f32 %v3035, 0.0
        %v3182 = vmax.f32 %v3040, 0.0
        %v3183 = vmax.f32 %v3045, 0.0
        %v3184 = vmax.f32 %v3050, 0.0
        %v3185 = vmax.f32 %v3055, 0.0
        %v3186 = vmax.f32 %v3060, 0.0
        %v3187 = vmax.f32 %v3065, 0.0
        %v3188 = vmax.f32 %v3070, 0.0
        %v3189 = vmax.f32 %v3075, 0.0
        %v3190 = vmax.f32 %v3080, 0.0
        %v3191 = vmax.f32 %v3085, 0.0
        %v3192 = vmax.f32 %v3090, 0.0
        %v3193 = vmax.f32 %v3095, 0.0
        %v3194 = vmax.f32 %v3100, 0.0
        %v3195 = vmax.f32 %v3105, 0.0
        %v3196 = vmax.f32 %v3110, 0.0
        %v3197 = vmax.f32 %v3115, 0.0
        %v3198 = vmax.f32 %v3120, 0.0
        %v3199 = vmax.f32 %v3125, 0.0
        %v3200 = vmax.f32 %v3130, 0.0
        %v3201 = vmax.f32 %v3135, 0.0
        %v3202 = vmax.f32 %v3140, 0.0
        %v3203 = vmax.f32 %v3145, 0.0
        %v3204 = vmax.f32 %v3150, 0.0
        %v3205 = vmax.f32 %v3155, 0.0
        %v3206 = vmax.f32 %v3160, 0.0
        %v3207 = vmax.f32 %v3165, 0.0
        %v3208 = vmax.f32 %v3170, 0.0
        %v3209 = vmax.f32 %v3175, 0.0
        %v3210 = vadd.f32 %v3178, %v221
        %v3211 = vadd.f32 %v3179, %v222
        %v3212 = vadd.f32 %v3180, %v223
        %v3213 = vadd.f32 %v3181, %v224
        %v3214 = vadd.f32 %v3182, %v225
        %v3215 = vadd.f32 %v3183, %v226
        %v3216 = vadd.f32 %v3184, %v227
        %v3217 = vadd.f32 %v3185, %v228
        %v3218 = vadd.f32 %v3186, %v229
        %v3219 = vadd.f32 %v3187, %v230
        %v3220 = vadd.f32 %v3188, %v231
        %v3221 = vadd.f32 %v3189, %v232
        %v3222 = vadd.f32 %v3190, %v233
        %v3223 = vadd.f32 %v3191, %v234
        %v3224 = vadd.f32 %v3192, %v235
        %v3225 = vadd.f32 %v3193, %v236
        %v3226 = vadd.f32 %v3194, %v237
        %v3227 = vadd.f32 %v3195, %v238
        %v3228 = vadd.f32 %v3196, %v239
        %v3229 = vadd.f32 %v3197, %v240
        %v3230 = vadd.f32 %v3198, %v241
        %v3231 = vadd.f32 %v3199, %v242
        %v3232 = vadd.f32 %v3200, %v243
        %v3233 = vadd.f32 %v3201, %v244
        %v3234 = vadd.f32 %v3202, %v245
        %v3235 = vadd.f32 %v3203, %v246
        %v3236 = vadd.f32 %v3204, %v247
        %v3237 = vadd.f32 %v3205, %v248
        %v3238 = vadd.f32 %v3206, %v249
        %v3239 = vadd.f32 %v3207, %v250
        %v3240 = vadd.f32 %v3208, %v251
        %v3241 = vadd.f32 %v3209, %v252
        %v3242 = vlaneseq
        %v3243 = vshrl.u32 %v3242, 7
        %v3244 = vsub.s32 0, %v3243
        %v3245 = vrot.slane %v3210, %v3244
        %v3246 = vlaneseq
        %v3247 = vshrl.u32 %v3246, 7
        %v3248 = vsub.s32 0, %v3247
        %v3249 = vrot.slane %v3211, %v3248
        %v3250 = vlaneseq
        %v3251 = vshrl.u32 %v3250, 7
        %v3252 = vsub.s32 0, %v3251
        %v3253 = vrot.slane %v3212, %v3252
        %v3254 = vlaneseq
        %v3255 = vshrl.u32 %v3254, 7
        %v3256 = vsub.s32 0, %v3255
        %v3257 = vrot.slane %v3213, %v3256
        %v3258 = vlaneseq
        %v3259 = vshrl.u32 %v3258, 7
        %v3260 = vsub.s32 0, %v3259
        %v3261 = vrot.slane %v3214, %v3260
        %v3262 = vlaneseq
        %v3263 = vshrl.u32 %v3262, 7
        %v3264 = vsub.s32 0, %v3263
        %v3265 = vrot.slane %v3215, %v3264
        %v3266 = vlaneseq
        %v3267 = vshrl.u32 %v3266, 7
        %v3268 = vsub.s32 0, %v3267
        %v3269 = vrot.slane %v3216, %v3268
        %v3270 = vlaneseq
        %v3271 = vshrl.u32 %v3270, 7
        %v3272 = vsub.s32 0, %v3271
        %v3273 = vrot.slane %v3217, %v3272
        %v3274 = vlaneseq
        %v3275 = vshrl.u32 %v3274, 7
        %v3276 = vsub.s32 0, %v3275
        %v3277 = vrot.slane %v3218, %v3276
        %v3278 = vlaneseq
        %v3279 = vshrl.u32 %v3278, 7
        %v3280 = vsub.s32 0, %v3279
        %v3281 = vrot.slane %v3219, %v3280
        %v3282 = vlaneseq
        %v3283 = vshrl.u32 %v3282, 7
        %v3284 = vsub.s32 0, %v3283
        %v3285 = vrot.slane %v3220, %v3284
        %v3286 = vlaneseq
        %v3287 = vshrl.u32 %v3286, 7
        %v3288 = vsub.s32 0, %v3287
        %v3289 = vrot.slane %v3221, %v3288
        %v3290 = vlaneseq
        %v3291 = vshrl.u32 %v3290, 7
        %v3292 = vsub.s32 0, %v3291
        %v3293 = vrot.slane %v3222, %v3292
        %v3294 = vlaneseq
        %v3295 = vshrl.u32 %v3294, 7
        %v3296 = vsub.s32 0, %v3295
        %v3297 = vrot.slane %v3223, %v3296
        %v3298 = vlaneseq
        %v3299 = vshrl.u32 %v3298, 7
        %v3300 = vsub.s32 0, %v3299
        %v3301 = vrot.slane %v3224, %v3300
        %v3302 = vlaneseq
        %v3303 = vshrl.u32 %v3302, 7
        %v3304 = vsub.s32 0, %v3303
        %v3305 = vrot.slane %v3225, %v3304
        %v3306 = vlaneseq
        %v3307 = vshrl.u32 %v3306, 7
        %v3308 = vsub.s32 0, %v3307
        %v3309 = vrot.slane %v3226, %v3308
        %v3310 = vlaneseq
        %v3311 = vshrl.u32 %v3310, 7
        %v3312 = vsub.s32 0, %v3311
        %v3313 = vrot.slane %v3227, %v3312
        %v3314 = vlaneseq
        %v3315 = vshrl.u32 %v3314, 7
        %v3316 = vsub.s32 0, %v3315
        %v3317 = vrot.slane %v3228, %v3316
        %v3318 = vlaneseq
        %v3319 = vshrl.u32 %v3318, 7
        %v3320 = vsub.s32 0, %v3319
        %v3321 = vrot.slane %v3229, %v3320
        %v3322 = vlaneseq
        %v3323 = vshrl.u32 %v3322, 7
        %v3324 = vsub.s32 0, %v3323
        %v3325 = vrot.slane %v3230, %v3324
        %v3326 = vlaneseq
        %v3327 = vshrl.u32 %v3326, 7
        %v3328 = vsub.s32 0, %v3327
        %v3329 = vrot.slane %v3231, %v3328
        %v3330 = vlaneseq
        %v3331 = vshrl.u32 %v3330, 7
        %v3332 = vsub.s32 0, %v3331
        %v3333 = vrot.slane %v3232, %v3332
        %v3334 = vlaneseq
        %v3335 = vshrl.u32 %v3334, 7
        %v3336 = vsub.s32 0, %v3335
        %v3337 = vrot.slane %v3233, %v3336
        %v3338 = vlaneseq
        %v3339 = vshrl.u32 %v3338, 7
        %v3340 = vsub.s32 0, %v3339
        %v3341 = vrot.slane %v3234, %v3340
        %v3342 = vlaneseq
        %v3343 = vshrl.u32 %v3342, 7
        %v3344 = vsub.s32 0, %v3343
        %v3345 = vrot.slane %v3235, %v3344
        %v3346 = vlaneseq
        %v3347 = vshrl.u32 %v3346, 7
        %v3348 = vsub.s32 0, %v3347
        %v3349 = vrot.slane %v3236, %v3348
        %v3350 = vlaneseq
        %v3351 = vshrl.u32 %v3350, 7
        %v3352 = vsub.s32 0, %v3351
        %v3353 = vrot.slane %v3237, %v3352
        %v3354 = vlaneseq
        %v3355 = vshrl.u32 %v3354, 7
        %v3356 = vsub.s32 0, %v3355
        %v3357 = vrot.slane %v3238, %v3356
        %v3358 = vlaneseq
        %v3359 = vshrl.u32 %v3358, 7
        %v3360 = vsub.s32 0, %v3359
        %v3361 = vrot.slane %v3239, %v3360
        %v3362 = vlaneseq
        %v3363 = vshrl.u32 %v3362, 7
        %v3364 = vsub.s32 0, %v3363
        %v3365 = vrot.slane %v3240, %v3364
        %v3366 = vlaneseq
        %v3367 = vshrl.u32 %v3366, 7
        %v3368 = vsub.s32 0, %v3367
        %v3369 = vrot.slane %v3241, %v3368
        %v3370 = vmul.f32 %v299, %v3245
        %v3371 = vmul.f32 %v304, %v3249
        %v3372 = vmul.f32 %v309, %v3253
        %v3373 = vmul.f32 %v314, %v3257
        %v3374 = vmul.f32 %v319, %v3261
        %v3375 = vmul.f32 %v324, %v3265
        %v3376 = vmul.f32 %v329, %v3269
        %v3377 = vmul.f32 %v334, %v3273
        %v3378 = vmul.f32 %v339, %v3277
        %v3379 = vmul.f32 %v344, %v3281
        %v3380 = vmul.f32 %v349, %v3285
        %v3381 = vmul.f32 %v354, %v3289
        %v3382 = vmul.f32 %v359, %v3293
        %v3383 = vmul.f32 %v364, %v3297
        %v3384 = vmul.f32 %v369, %v3301
        %v3385 = vmul.f32 %v374, %v3305
        %v3386 = vmul.f32 %v379, %v3309
        %v3387 = vmul.f32 %v384, %v3313
        %v3388 = vmul.f32 %v389, %v3317
        %v3389 = vmul.f32 %v394, %v3321
        %v3390 = vmul.f32 %v399, %v3325
        %v3391 = vmul.f32 %v404, %v3329
        %v3392 = vmul.f32 %v409, %v3333
        %v3393 = vmul.f32 %v414, %v3337
        %v3394 = vmul.f32 %v419, %v3341
        %v3395 = vmul.f32 %v424, %v3345
        %v3396 = vmul.f32 %v429, %v3349
        %v3397 = vmul.f32 %v434, %v3353
        %v3398 = vmul.f32 %v439, %v3357
        %v3399 = vmul.f32 %v444, %v3361
        %v3400 = vmul.f32 %v449, %v3365
        %v3401 = vmul.f32 %v454, %v3369
        %v3402 = vlaneseq
        %v3403 = vshrl.u32 %v3402, 7
        %v3404 = vsub.s32 1, %v3403
        %v3405 = vrot.slane %v3210, %v3404
        %v3406 = vlaneseq
        %v3407 = vshrl.u32 %v3406, 7
        %v3408 = vsub.s32 1, %v3407
        %v3409 = vrot.slane %v3211, %v3408
        %v3410 = vlaneseq
        %v3411 = vshrl.u32 %v3410, 7
        %v3412 = vsub.s32 1, %v3411
        %v3413 = vrot.slane %v3212, %v3412
        %v3414 = vlaneseq
        %v3415 = vshrl.u32 %v3414, 7
        %v3416 = vsub.s32 1, %v3415
        %v3417 = vrot.slane %v3213, %v3416
        %v3418 = vlaneseq
        %v3419 = vshrl.u32 %v3418, 7
        %v3420 = vsub.s32 1, %v3419
        %v3421 = vrot.slane %v3214, %v3420
        %v3422 = vlaneseq
        %v3423 = vshrl.u32 %v3422, 7
        %v3424 = vsub.s32 1, %v3423
        %v3425 = vrot.slane %v3215, %v3424
        %v3426 = vlaneseq
        %v3427 = vshrl.u32 %v3426, 7
        %v3428 = vsub.s32 1, %v3427
        %v3429 = vrot.slane %v3216, %v3428
        %v3430 = vlaneseq
        %v3431 = vshrl.u32 %v3430, 7
        %v3432 = vsub.s32 1, %v3431
        %v3433 = vrot.slane %v3217, %v3432
        %v3434 = vlaneseq
        %v3435 = vshrl.u32 %v3434, 7
        %v3436 = vsub.s32 1, %v3435
        %v3437 = vrot.slane %v3218, %v3436
        %v3438 = vlaneseq
        %v3439 = vshrl.u32 %v3438, 7
        %v3440 = vsub.s32 1, %v3439
        %v3441 = vrot.slane %v3219, %v3440
        %v3442 = vlaneseq
        %v3443 = vshrl.u32 %v3442, 7
        %v3444 = vsub.s32 1, %v3443
        %v3445 = vrot.slane %v3220, %v3444
        %v3446 = vlaneseq
        %v3447 = vshrl.u32 %v3446, 7
        %v3448 = vsub.s32 1, %v3447
        %v3449 = vrot.slane %v3221, %v3448
        %v3450 = vlaneseq
        %v3451 = vshrl.u32 %v3450, 7
        %v3452 = vsub.s32 1, %v3451
        %v3453 = vrot.slane %v3222, %v3452
        %v3454 = vlaneseq
        %v3455 = vshrl.u32 %v3454, 7
        %v3456 = vsub.s32 1, %v3455
        %v3457 = vrot.slane %v3223, %v3456
        %v3458 = vlaneseq
        %v3459 = vshrl.u32 %v3458, 7
        %v3460 = vsub.s32 1, %v3459
        %v3461 = vrot.slane %v3224, %v3460
        %v3462 = vlaneseq
        %v3463 = vshrl.u32 %v3462, 7
        %v3464 = vsub.s32 1, %v3463
        %v3465 = vrot.slane %v3225, %v3464
        %v3466 = vlaneseq
        %v3467 = vshrl.u32 %v3466, 7
        %v3468 = vsub.s32 1, %v3467
        %v3469 = vrot.slane %v3226, %v3468
        %v3470 = vlaneseq
        %v3471 = vshrl.u32 %v3470, 7
        %v3472 = vsub.s32 1, %v3471
        %v3473 = vrot.slane %v3227, %v3472
        %v3474 = vlaneseq
        %v3475 = vshrl.u32 %v3474, 7
        %v3476 = vsub.s32 1, %v3475
        %v3477 = vrot.slane %v3228, %v3476
        %v3478 = vlaneseq
        %v3479 = vshrl.u32 %v3478, 7
        %v3480 = vsub.s32 1, %v3479
        %v3481 = vrot.slane %v3229, %v3480
        %v3482 = vlaneseq
        %v3483 = vshrl.u32 %v3482, 7
        %v3484 = vsub.s32 1, %v3483
        %v3485 = vrot.slane %v3230, %v3484
        %v3486 = vlaneseq
        %v3487 = vshrl.u32 %v3486, 7
        %v3488 = vsub.s32 1, %v3487
        %v3489 = vrot.slane %v3231, %v3488
        %v3490 = vlaneseq
        %v3491 = vshrl.u32 %v3490, 7
        %v3492 = vsub.s32 1, %v3491
        %v3493 = vrot.slane %v3232, %v3492
        %v3494 = vlaneseq
        %v3495 = vshrl.u32 %v3494, 7
        %v3496 = vsub.s32 1, %v3495
        %v3497 = vrot.slane %v3233, %v3496
        %v3498 = vlaneseq
        %v3499 = vshrl.u32 %v3498, 7
        %v3500 = vsub.s32 1, %v3499
        %v3501 = vrot.slane %v3234, %v3500
        %v3502 = vlaneseq
        %v3503 = vshrl.u32 %v3502, 7
        %v3504 = vsub.s32 1, %v3503
        %v3505 = vrot.slane %v3235, %v3504
        %v3506 = vlaneseq
        %v3507 = vshrl.u32 %v3506, 7
        %v3508 = vsub.s32 1, %v3507
        %v3509 = vrot.slane %v3236, %v3508
        %v3510 = vlaneseq
        %v3511 = vshrl.u32 %v3510, 7
        %v3512 = vsub.s32 1, %v3511
        %v3513 = vrot.slane %v3237, %v3512
        %v3514 = vlaneseq
        %v3515 = vshrl.u32 %v3514, 7
        %v3516 = vsub.s32 1, %v3515
        %v3517 = vrot.slane %v3238, %v3516
        %v3518 = vlaneseq
        %v3519 = vshrl.u32 %v3518, 7
        %v3520 = vsub.s32 1, %v3519
        %v3521 = vrot.slane %v3239, %v3520
        %v3522 = vlaneseq
        %v3523 = vshrl.u32 %v3522, 7
        %v3524 = vsub.s32 1, %v3523
        %v3525 = vrot.slane %v3240, %v3524
        %v3526 = vlaneseq
        %v3527 = vshrl.u32 %v3526, 7
        %v3528 = vsub.s32 1, %v3527
        %v3529 = vrot.slane %v3241, %v3528
        %v3530 = vmul.f32 %v618, %v3405
        %v3531 = vmul.f32 %v622, %v3409
        %v3532 = vmul.f32 %v626, %v3413
        %v3533 = vmul.f32 %v630, %v3417
        %v3534 = vmul.f32 %v634, %v3421
        %v3535 = vmul.f32 %v638, %v3425
        %v3536 = vmul.f32 %v642, %v3429
        %v3537 = vmul.f32 %v646, %v3433
        %v3538 = vmul.f32 %v650, %v3437
        %v3539 = vmul.f32 %v654, %v3441
        %v3540 = vmul.f32 %v658, %v3445
        %v3541 = vmul.f32 %v662, %v3449
        %v3542 = vmul.f32 %v666, %v3453
        %v3543 = vmul.f32 %v670, %v3457
        %v3544 = vmul.f32 %v674, %v3461
        %v3545 = vmul.f32 %v678, %v3465
        %v3546 = vmul.f32 %v682, %v3469
        %v3547 = vmul.f32 %v686, %v3473
        %v3548 = vmul.f32 %v690, %v3477
        %v3549 = vmul.f32 %v694, %v3481
        %v3550 = vmul.f32 %v698, %v3485
        %v3551 = vmul.f32 %v702, %v3489
        %v3552 = vmul.f32 %v706, %v3493
        %v3553 = vmul.f32 %v710, %v3497
        %v3554 = vmul.f32 %v714, %v3501
        %v3555 = vmul.f32 %v718, %v3505
        %v3556 = vmul.f32 %v722, %v3509
        %v3557 = vmul.f32 %v726, %v3513
        %v3558 = vmul.f32 %v730, %v3517
        %v3559 = vmul.f32 %v734, %v3521
        %v3560 = vmul.f32 %v738, %v3525
        %v3561 = vmul.f32 %v742, %v3529
        %v3562 = vadd.f32 %v3370, %v3530
        %v3563 = vadd.f32 %v3371, %v3531
        %v3564 = vadd.f32 %v3372, %v3532
        %v3565 = vadd.f32 %v3373, %v3533
        %v3566 = vadd.f32 %v3374, %v3534
        %v3567 = vadd.f32 %v3375, %v3535
        %v3568 = vadd.f32 %v3376, %v3536
        %v3569 = vadd.f32 %v3377, %v3537
        %v3570 = vadd.f32 %v3378, %v3538
        %v3571 = vadd.f32 %v3379, %v3539
        %v3572 = vadd.f32 %v3380, %v3540
        %v3573 = vadd.f32 %v3381, %v3541
        %v3574 = vadd.f32 %v3382, %v3542
        %v3575 = vadd.f32 %v3383, %v3543
        %v3576 = vadd.f32 %v3384, %v3544
        %v3577 = vadd.f32 %v3385, %v3545
        %v3578 = vadd.f32 %v3386, %v3546
        %v3579 = vadd.f32 %v3387, %v3547
        %v3580 = vadd.f32 %v3388, %v3548
        %v3581 = vadd.f32 %v3389, %v3549
        %v3582 = vadd.f32 %v3390, %v3550
        %v3583 = vadd.f32 %v3391, %v3551
        %v3584 = vadd.f32 %v3392, %v3552
        %v3585 = vadd.f32 %v3393, %v3553
        %v3586 = vadd.f32 %v3394, %v3554
        %v3587 = vadd.f32 %v3395, %v3555
        %v3588 = vadd.f32 %v3396, %v3556
        %v3589 = vadd.f32 %v3397, %v3557
        %v3590 = vadd.f32 %v3398, %v3558
        %v3591 = vadd.f32 %v3399, %v3559
        %v3592 = vadd.f32 %v3400, %v3560
        %v3593 = vadd.f32 %v3401, %v3561
        %v3594 = vlaneseq
        %v3595 = vshrl.u32 %v3594, 7
        %v3596 = vsub.s32 2, %v3595
        %v3597 = vrot.slane %v3210, %v3596
        %v3598 = vlaneseq
        %v3599 = vshrl.u32 %v3598, 7
        %v3600 = vsub.s32 2, %v3599
        %v3601 = vrot.slane %v3211, %v3600
        %v3602 = vlaneseq
        %v3603 = vshrl.u32 %v3602, 7
        %v3604 = vsub.s32 2, %v3603
        %v3605 = vrot.slane %v3212, %v3604
        %v3606 = vlaneseq
        %v3607 = vshrl.u32 %v3606, 7
        %v3608 = vsub.s32 2, %v3607
        %v3609 = vrot.slane %v3213, %v3608
        %v3610 = vlaneseq
        %v3611 = vshrl.u32 %v3610, 7
        %v3612 = vsub.s32 2, %v3611
        %v3613 = vrot.slane %v3214, %v3612
        %v3614 = vlaneseq
        %v3615 = vshrl.u32 %v3614, 7
        %v3616 = vsub.s32 2, %v3615
        %v3617 = vrot.slane %v3215, %v3616
        %v3618 = vlaneseq
        %v3619 = vshrl.u32 %v3618, 7
        %v3620 = vsub.s32 2, %v3619
        %v3621 = vrot.slane %v3216, %v3620
        %v3622 = vlaneseq
        %v3623 = vshrl.u32 %v3622, 7
        %v3624 = vsub.s32 2, %v3623
        %v3625 = vrot.slane %v3217, %v3624
        %v3626 = vlaneseq
        %v3627 = vshrl.u32 %v3626, 7
        %v3628 = vsub.s32 2, %v3627
        %v3629 = vrot.slane %v3218, %v3628
        %v3630 = vlaneseq
        %v3631 = vshrl.u32 %v3630, 7
        %v3632 = vsub.s32 2, %v3631
        %v3633 = vrot.slane %v3219, %v3632
        %v3634 = vlaneseq
        %v3635 = vshrl.u32 %v3634, 7
        %v3636 = vsub.s32 2, %v3635
        %v3637 = vrot.slane %v3220, %v3636
        %v3638 = vlaneseq
        %v3639 = vshrl.u32 %v3638, 7
        %v3640 = vsub.s32 2, %v3639
        %v3641 = vrot.slane %v3221, %v3640
        %v3642 = vlaneseq
        %v3643 = vshrl.u32 %v3642, 7
        %v3644 = vsub.s32 2, %v3643
        %v3645 = vrot.slane %v3222, %v3644
        %v3646 = vlaneseq
        %v3647 = vshrl.u32 %v3646, 7
        %v3648 = vsub.s32 2, %v3647
        %v3649 = vrot.slane %v3223, %v3648
        %v3650 = vlaneseq
        %v3651 = vshrl.u32 %v3650, 7
        %v3652 = vsub.s32 2, %v3651
        %v3653 = vrot.slane %v3224, %v3652
        %v3654 = vlaneseq
        %v3655 = vshrl.u32 %v3654, 7
        %v3656 = vsub.s32 2, %v3655
        %v3657 = vrot.slane %v3225, %v3656
        %v3658 = vlaneseq
        %v3659 = vshrl.u32 %v3658, 7
        %v3660 = vsub.s32 2, %v3659
        %v3661 = vrot.slane %v3226, %v3660
        %v3662 = vlaneseq
        %v3663 = vshrl.u32 %v3662, 7
        %v3664 = vsub.s32 2, %v3663
        %v3665 = vrot.slane %v3227, %v3664
        %v3666 = vlaneseq
        %v3667 = vshrl.u32 %v3666, 7
        %v3668 = vsub.s32 2, %v3667
        %v3669 = vrot.slane %v3228, %v3668
        %v3670 = vlaneseq
        %v3671 = vshrl.u32 %v3670, 7
        %v3672 = vsub.s32 2, %v3671
        %v3673 = vrot.slane %v3229, %v3672
        %v3674 = vlaneseq
        %v3675 = vshrl.u32 %v3674, 7
        %v3676 = vsub.s32 2, %v3675
        %v3677 = vrot.slane %v3230, %v3676
        %v3678 = vlaneseq
        %v3679 = vshrl.u32 %v3678, 7
        %v3680 = vsub.s32 2, %v3679
        %v3681 = vrot.slane %v3231, %v3680
        %v3682 = vlaneseq
        %v3683 = vshrl.u32 %v3682, 7
        %v3684 = vsub.s32 2, %v3683
        %v3685 = vrot.slane %v3232, %v3684
        %v3686 = vlaneseq
        %v3687 = vshrl.u32 %v3686, 7
        %v3688 = vsub.s32 2, %v3687
        %v3689 = vrot.slane %v3233, %v3688
        %v3690 = vlaneseq
        %v3691 = vshrl.u32 %v3690, 7
        %v3692 = vsub.s32 2, %v3691
        %v3693 = vrot.slane %v3234, %v3692
        %v3694 = vlaneseq
        %v3695 = vshrl.u32 %v3694, 7
        %v3696 = vsub.s32 2, %v3695
        %v3697 = vrot.slane %v3235, %v3696
        %v3698 = vlaneseq
        %v3699 = vshrl.u32 %v3698, 7
        %v3700 = vsub.s32 2, %v3699
        %v3701 = vrot.slane %v3236, %v3700
        %v3702 = vlaneseq
        %v3703 = vshrl.u32 %v3702, 7
        %v3704 = vsub.s32 2, %v3703
        %v3705 = vrot.slane %v3237, %v3704
        %v3706 = vlaneseq
        %v3707 = vshrl.u32 %v3706, 7
        %v3708 = vsub.s32 2, %v3707
        %v3709 = vrot.slane %v3238, %v3708
        %v3710 = vlaneseq
        %v3711 = vshrl.u32 %v3710, 7
        %v3712 = vsub.s32 2, %v3711
        %v3713 = vrot.slane %v3239, %v3712
        %v3714 = vlaneseq
        %v3715 = vshrl.u32 %v3714, 7
        %v3716 = vsub.s32 2, %v3715
        %v3717 = vrot.slane %v3240, %v3716
        %v3718 = vlaneseq
        %v3719 = vshrl.u32 %v3718, 7
        %v3720 = vsub.s32 2, %v3719
        %v3721 = vrot.slane %v3241, %v3720
        %v3722 = vmul.f32 %v938, %v3597
        %v3723 = vmul.f32 %v942, %v3601
        %v3724 = vmul.f32 %v946, %v3605
        %v3725 = vmul.f32 %v950, %v3609
        %v3726 = vmul.f32 %v954, %v3613
        %v3727 = vmul.f32 %v958, %v3617
        %v3728 = vmul.f32 %v962, %v3621
        %v3729 = vmul.f32 %v966, %v3625
        %v3730 = vmul.f32 %v970, %v3629
        %v3731 = vmul.f32 %v974, %v3633
        %v3732 = vmul.f32 %v978, %v3637
        %v3733 = vmul.f32 %v982, %v3641
        %v3734 = vmul.f32 %v986, %v3645
        %v3735 = vmul.f32 %v990, %v3649
        %v3736 = vmul.f32 %v994, %v3653
        %v3737 = vmul.f32 %v998, %v3657
        %v3738 = vmul.f32 %v1002, %v3661
        %v3739 = vmul.f32 %v1006, %v3665
        %v3740 = vmul.f32 %v1010, %v3669
        %v3741 = vmul.f32 %v1014, %v3673
        %v3742 = vmul.f32 %v1018, %v3677
        %v3743 = vmul.f32 %v1022, %v3681
        %v3744 = vmul.f32 %v1026, %v3685
        %v3745 = vmul.f32 %v1030, %v3689
        %v3746 = vmul.f32 %v1034, %v3693
        %v3747 = vmul.f32 %v1038, %v3697
        %v3748 = vmul.f32 %v1042, %v3701
        %v3749 = vmul.f32 %v1046, %v3705
        %v3750 = vmul.f32 %v1050, %v3709
        %v3751 = vmul.f32 %v1054, %v3713
        %v3752 = vmul.f32 %v1058, %v3717
        %v3753 = vmul.f32 %v1062, %v3721
        %v3754 = vadd.f32 %v3562, %v3722
        %v3755 = vadd.f32 %v3563, %v3723
        %v3756 = vadd.f32 %v3564, %v3724
        %v3757 = vadd.f32 %v3565, %v3725
        %v3758 = vadd.f32 %v3566, %v3726
        %v3759 = vadd.f32 %v3567, %v3727
        %v3760 = vadd.f32 %v3568, %v3728
        %v3761 = vadd.f32 %v3569, %v3729
        %v3762 = vadd.f32 %v3570, %v3730
        %v3763 = vadd.f32 %v3571, %v3731
        %v3764 = vadd.f32 %v3572, %v3732
        %v3765 = vadd.f32 %v3573, %v3733
        %v3766 = vadd.f32 %v3574, %v3734
        %v3767 = vadd.f32 %v3575, %v3735
        %v3768 = vadd.f32 %v3576, %v3736
        %v3769 = vadd.f32 %v3577, %v3737
        %v3770 = vadd.f32 %v3578, %v3738
        %v3771 = vadd.f32 %v3579, %v3739
        %v3772 = vadd.f32 %v3580, %v3740
        %v3773 = vadd.f32 %v3581, %v3741
        %v3774 = vadd.f32 %v3582, %v3742
        %v3775 = vadd.f32 %v3583, %v3743
        %v3776 = vadd.f32 %v3584, %v3744
        %v3777 = vadd.f32 %v3585, %v3745
        %v3778 = vadd.f32 %v3586, %v3746
        %v3779 = vadd.f32 %v3587, %v3747
        %v3780 = vadd.f32 %v3588, %v3748
        %v3781 = vadd.f32 %v3589, %v3749
        %v3782 = vadd.f32 %v3590, %v3750
        %v3783 = vadd.f32 %v3591, %v3751
        %v3784 = vadd.f32 %v3592, %v3752
        %v3785 = vadd.f32 %v3593, %v3753
        %v3786 = vlaneseq
        %v3787 = vshrl.u32 %v3786, 7
        %v3788 = vsub.s32 3, %v3787
        %v3789 = vrot.slane %v3210, %v3788
        %v3790 = vlaneseq
        %v3791 = vshrl.u32 %v3790, 7
        %v3792 = vsub.s32 3, %v3791
        %v3793 = vrot.slane %v3211, %v3792
        %v3794 = vlaneseq
        %v3795 = vshrl.u32 %v3794, 7
        %v3796 = vsub.s32 3, %v3795
        %v3797 = vrot.slane %v3212, %v3796
        %v3798 = vlaneseq
        %v3799 = vshrl.u32 %v3798, 7
        %v3800 = vsub.s32 3, %v3799
        %v3801 = vrot.slane %v3213, %v3800
        %v3802 = vlaneseq
        %v3803 = vshrl.u32 %v3802, 7
        %v3804 = vsub.s32 3, %v3803
        %v3805 = vrot.slane %v3214, %v3804
        %v3806 = vlaneseq
        %v3807 = vshrl.u32 %v3806, 7
        %v3808 = vsub.s32 3, %v3807
        %v3809 = vrot.slane %v3215, %v3808
        %v3810 = vlaneseq
        %v3811 = vshrl.u32 %v3810, 7
        %v3812 = vsub.s32 3, %v3811
        %v3813 = vrot.slane %v3216, %v3812
        %v3814 = vlaneseq
        %v3815 = vshrl.u32 %v3814, 7
        %v3816 = vsub.s32 3, %v3815
        %v3817 = vrot.slane %v3217, %v3816
        %v3818 = vlaneseq
        %v3819 = vshrl.u32 %v3818, 7
        %v3820 = vsub.s32 3, %v3819
        %v3821 = vrot.slane %v3218, %v3820
        %v3822 = vlaneseq
        %v3823 = vshrl.u32 %v3822, 7
        %v3824 = vsub.s32 3, %v3823
        %v3825 = vrot.slane %v3219, %v3824
        %v3826 = vlaneseq
        %v3827 = vshrl.u32 %v3826, 7
        %v3828 = vsub.s32 3, %v3827
        %v3829 = vrot.slane %v3220, %v3828
        %v3830 = vlaneseq
        %v3831 = vshrl.u32 %v3830, 7
        %v3832 = vsub.s32 3, %v3831
        %v3833 = vrot.slane %v3221, %v3832
        %v3834 = vlaneseq
        %v3835 = vshrl.u32 %v3834, 7
        %v3836 = vsub.s32 3, %v3835
        %v3837 = vrot.slane %v3222, %v3836
        %v3838 = vlaneseq
        %v3839 = vshrl.u32 %v3838, 7
        %v3840 = vsub.s32 3, %v3839
        %v3841 = vrot.slane %v3223, %v3840
        %v3842 = vlaneseq
        %v3843 = vshrl.u32 %v3842, 7
        %v3844 = vsub.s32 3, %v3843
        %v3845 = vrot.slane %v3224, %v3844
        %v3846 = vlaneseq
        %v3847 = vshrl.u32 %v3846, 7
        %v3848 = vsub.s32 3, %v3847
        %v3849 = vrot.slane %v3225, %v3848
        %v3850 = vlaneseq
        %v3851 = vshrl.u32 %v3850, 7
        %v3852 = vsub.s32 3, %v3851
        %v3853 = vrot.slane %v3226, %v3852
        %v3854 = vlaneseq
        %v3855 = vshrl.u32 %v3854, 7
        %v3856 = vsub.s32 3, %v3855
        %v3857 = vrot.slane %v3227, %v3856
        %v3858 = vlaneseq
        %v3859 = vshrl.u32 %v3858, 7
        %v3860 = vsub.s32 3, %v3859
        %v3861 = vrot.slane %v3228, %v3860
        %v3862 = vlaneseq
        %v3863 = vshrl.u32 %v3862, 7
        %v3864 = vsub.s32 3, %v3863
        %v3865 = vrot.slane %v3229, %v3864
        %v3866 = vlaneseq
        %v3867 = vshrl.u32 %v3866, 7
        %v3868 = vsub.s32 3, %v3867
        %v3869 = vrot.slane %v3230, %v3868
        %v3870 = vlaneseq
        %v3871 = vshrl.u32 %v3870, 7
        %v3872 = vsub.s32 3, %v3871
        %v3873 = vrot.slane %v3231, %v3872
        %v3874 = vlaneseq
        %v3875 = vshrl.u32 %v3874, 7
        %v3876 = vsub.s32 3, %v3875
        %v3877 = vrot.slane %v3232, %v3876
        %v3878 = vlaneseq
        %v3879 = vshrl.u32 %v3878, 7
        %v3880 = vsub.s32 3, %v3879
        %v3881 = vrot.slane %v3233, %v3880
        %v3882 = vlaneseq
        %v3883 = vshrl.u32 %v3882, 7
        %v3884 = vsub.s32 3, %v3883
        %v3885 = vrot.slane %v3234, %v3884
        %v3886 = vlaneseq
        %v3887 = vshrl.u32 %v3886, 7
        %v3888 = vsub.s32 3, %v3887
        %v3889 = vrot.slane %v3235, %v3888
        %v3890 = vlaneseq
        %v3891 = vshrl.u32 %v3890, 7
        %v3892 = vsub.s32 3, %v3891
        %v3893 = vrot.slane %v3236, %v3892
        %v3894 = vlaneseq
        %v3895 = vshrl.u32 %v3894, 7
        %v3896 = vsub.s32 3, %v3895
        %v3897 = vrot.slane %v3237, %v3896
        %v3898 = vlaneseq
        %v3899 = vshrl.u32 %v3898, 7
        %v3900 = vsub.s32 3, %v3899
        %v3901 = vrot.slane %v3238, %v3900
        %v3902 = vlaneseq
        %v3903 = vshrl.u32 %v3902, 7
        %v3904 = vsub.s32 3, %v3903
        %v3905 = vrot.slane %v3239, %v3904
        %v3906 = vlaneseq
        %v3907 = vshrl.u32 %v3906, 7
        %v3908 = vsub.s32 3, %v3907
        %v3909 = vrot.slane %v3240, %v3908
        %v3910 = vlaneseq
        %v3911 = vshrl.u32 %v3910, 7
        %v3912 = vsub.s32 3, %v3911
        %v3913 = vrot.slane %v3241, %v3912
        %v3914 = vmul.f32 %v1258, %v3789
        %v3915 = vmul.f32 %v1262, %v3793
        %v3916 = vmul.f32 %v1266, %v3797
        %v3917 = vmul.f32 %v1270, %v3801
        %v3918 = vmul.f32 %v1274, %v3805
        %v3919 = vmul.f32 %v1278, %v3809
        %v3920 = vmul.f32 %v1282, %v3813
        %v3921 = vmul.f32 %v1286, %v3817
        %v3922 = vmul.f32 %v1290, %v3821
        %v3923 = vmul.f32 %v1294, %v3825
        %v3924 = vmul.f32 %v1298, %v3829
        %v3925 = vmul.f32 %v1302, %v3833
        %v3926 = vmul.f32 %v1306, %v3837
        %v3927 = vmul.f32 %v1310, %v3841
        %v3928 = vmul.f32 %v1314, %v3845
        %v3929 = vmul.f32 %v1318, %v3849
        %v3930 = vmul.f32 %v1322, %v3853
        %v3931 = vmul.f32 %v1326, %v3857
        %v3932 = vmul.f32 %v1330, %v3861
        %v3933 = vmul.f32 %v1334, %v3865
        %v3934 = vmul.f32 %v1338, %v3869
        %v3935 = vmul.f32 %v1342, %v3873
        %v3936 = vmul.f32 %v1346, %v3877
        %v3937 = vmul.f32 %v1350, %v3881
        %v3938 = vmul.f32 %v1354, %v3885
        %v3939 = vmul.f32 %v1358, %v3889
        %v3940 = vmul.f32 %v1362, %v3893
        %v3941 = vmul.f32 %v1366, %v3897
        %v3942 = vmul.f32 %v1370, %v3901
        %v3943 = vmul.f32 %v1374, %v3905
        %v3944 = vmul.f32 %v1378, %v3909
        %v3945 = vmul.f32 %v1382, %v3913
        %v3946 = vadd.f32 %v3754, %v3914
        %v3947 = vadd.f32 %v3755, %v3915
        %v3948 = vadd.f32 %v3756, %v3916
        %v3949 = vadd.f32 %v3757, %v3917
        %v3950 = vadd.f32 %v3758, %v3918
        %v3951 = vadd.f32 %v3759, %v3919
        %v3952 = vadd.f32 %v3760, %v3920
        %v3953 = vadd.f32 %v3761, %v3921
        %v3954 = vadd.f32 %v3762, %v3922
        %v3955 = vadd.f32 %v3763, %v3923
        %v3956 = vadd.f32 %v3764, %v3924
        %v3957 = vadd.f32 %v3765, %v3925
        %v3958 = vadd.f32 %v3766, %v3926
        %v3959 = vadd.f32 %v3767, %v3927
        %v3960 = vadd.f32 %v3768, %v3928
        %v3961 = vadd.f32 %v3769, %v3929
        %v3962 = vadd.f32 %v3770, %v3930
        %v3963 = vadd.f32 %v3771, %v3931
        %v3964 = vadd.f32 %v3772, %v3932
        %v3965 = vadd.f32 %v3773, %v3933
        %v3966 = vadd.f32 %v3774, %v3934
        %v3967 = vadd.f32 %v3775, %v3935
        %v3968 = vadd.f32 %v3776, %v3936
        %v3969 = vadd.f32 %v3777, %v3937
        %v3970 = vadd.f32 %v3778, %v3938
        %v3971 = vadd.f32 %v3779, %v3939
        %v3972 = vadd.f32 %v3780, %v3940
        %v3973 = vadd.f32 %v3781, %v3941
        %v3974 = vadd.f32 %v3782, %v3942
        %v3975 = vadd.f32 %v3783, %v3943
        %v3976 = vadd.f32 %v3784, %v3944
        %v3977 = vadd.f32 %v3785, %v3945
        %v3978 = vlaneseq
        %v3979 = vshrl.u32 %v3978, 7
        %v3980 = vsub.s32 4, %v3979
        %v3981 = vrot.slane %v3210, %v3980
        %v3982 = vlaneseq
        %v3983 = vshrl.u32 %v3982, 7
        %v3984 = vsub.s32 4, %v3983
        %v3985 = vrot.slane %v3211, %v3984
        %v3986 = vlaneseq
        %v3987 = vshrl.u32 %v3986, 7
        %v3988 = vsub.s32 4, %v3987
        %v3989 = vrot.slane %v3212, %v3988
        %v3990 = vlaneseq
        %v3991 = vshrl.u32 %v3990, 7
        %v3992 = vsub.s32 4, %v3991
        %v3993 = vrot.slane %v3213, %v3992
        %v3994 = vlaneseq
        %v3995 = vshrl.u32 %v3994, 7
        %v3996 = vsub.s32 4, %v3995
        %v3997 = vrot.slane %v3214, %v3996
        %v3998 = vlaneseq
        %v3999 = vshrl.u32 %v3998, 7
        %v4000 = vsub.s32 4, %v3999
        %v4001 = vrot.slane %v3215, %v4000
        %v4002 = vlaneseq
        %v4003 = vshrl.u32 %v4002, 7
        %v4004 = vsub.s32 4, %v4003
        %v4005 = vrot.slane %v3216, %v4004
        %v4006 = vlaneseq
        %v4007 = vshrl.u32 %v4006, 7
        %v4008 = vsub.s32 4, %v4007
        %v4009 = vrot.slane %v3217, %v4008
        %v4010 = vlaneseq
        %v4011 = vshrl.u32 %v4010, 7
        %v4012 = vsub.s32 4, %v4011
        %v4013 = vrot.slane %v3218, %v4012
        %v4014 = vlaneseq
        %v4015 = vshrl.u32 %v4014, 7
        %v4016 = vsub.s32 4, %v4015
        %v4017 = vrot.slane %v3219, %v4016
        %v4018 = vlaneseq
        %v4019 = vshrl.u32 %v4018, 7
        %v4020 = vsub.s32 4, %v4019
        %v4021 = vrot.slane %v3220, %v4020
        %v4022 = vlaneseq
        %v4023 = vshrl.u32 %v4022, 7
        %v4024 = vsub.s32 4, %v4023
        %v4025 = vrot.slane %v3221, %v4024
        %v4026 = vlaneseq
        %v4027 = vshrl.u32 %v4026, 7
        %v4028 = vsub.s32 4, %v4027
        %v4029 = vrot.slane %v3222, %v4028
        %v4030 = vlaneseq
        %v4031 = vshrl.u32 %v4030, 7
        %v4032 = vsub.s32 4, %v4031
        %v4033 = vrot.slane %v3223, %v4032
        %v4034 = vlaneseq
        %v4035 = vshrl.u32 %v4034, 7
        %v4036 = vsub.s32 4, %v4035
        %v4037 = vrot.slane %v3224, %v4036
        %v4038 = vlaneseq
        %v4039 = vshrl.u32 %v4038, 7
        %v4040 = vsub.s32 4, %v4039
        %v4041 = vrot.slane %v3225, %v4040
        %v4042 = vlaneseq
        %v4043 = vshrl.u32 %v4042, 7
        %v4044 = vsub.s32 4, %v4043
        %v4045 = vrot.slane %v3226, %v4044
        %v4046 = vlaneseq
        %v4047 = vshrl.u32 %v4046, 7
        %v4048 = vsub.s32 4, %v4047
        %v4049 = vrot.slane %v3227, %v4048
        %v4050 = vlaneseq
        %v4051 = vshrl.u32 %v4050, 7
        %v4052 = vsub.s32 4, %v4051
        %v4053 = vrot.slane %v3228, %v4052
        %v4054 = vlaneseq
        %v4055 = vshrl.u32 %v4054, 7
        %v4056 = vsub.s32 4, %v4055
        %v4057 = vrot.slane %v3229, %v4056
        %v4058 = vlaneseq
        %v4059 = vshrl.u32 %v4058, 7
        %v4060 = vsub.s32 4, %v4059
        %v4061 = vrot.slane %v3230, %v4060
        %v4062 = vlaneseq
        %v4063 = vshrl.u32 %v4062, 7
        %v4064 = vsub.s32 4, %v4063
        %v4065 = vrot.slane %v3231, %v4064
        %v4066 = vlaneseq
        %v4067 = vshrl.u32 %v4066, 7
        %v4068 = vsub.s32 4, %v4067
        %v4069 = vrot.slane %v3232, %v4068
        %v4070 = vlaneseq
        %v4071 = vshrl.u32 %v4070, 7
        %v4072 = vsub.s32 4, %v4071
        %v4073 = vrot.slane %v3233, %v4072
        %v4074 = vlaneseq
        %v4075 = vshrl.u32 %v4074, 7
        %v4076 = vsub.s32 4, %v4075
        %v4077 = vrot.slane %v3234, %v4076
        %v4078 = vlaneseq
        %v4079 = vshrl.u32 %v4078, 7
        %v4080 = vsub.s32 4, %v4079
        %v4081 = vrot.slane %v3235, %v4080
        %v4082 = vlaneseq
        %v4083 = vshrl.u32 %v4082, 7
        %v4084 = vsub.s32 4, %v4083
        %v4085 = vrot.slane %v3236, %v4084
        %v4086 = vlaneseq
        %v4087 = vshrl.u32 %v4086, 7
        %v4088 = vsub.s32 4, %v4087
        %v4089 = vrot.slane %v3237, %v4088
        %v4090 = vlaneseq
        %v4091 = vshrl.u32 %v4090, 7
        %v4092 = vsub.s32 4, %v4091
        %v4093 = vrot.slane %v3238, %v4092
        %v4094 = vlaneseq
        %v4095 = vshrl.u32 %v4094, 7
        %v4096 = vsub.s32 4, %v4095
        %v4097 = vrot.slane %v3239, %v4096
        %v4098 = vlaneseq
        %v4099 = vshrl.u32 %v4098, 7
        %v4100 = vsub.s32 4, %v4099
        %v4101 = vrot.slane %v3240, %v4100
        %v4102 = vlaneseq
        %v4103 = vshrl.u32 %v4102, 7
        %v4104 = vsub.s32 4, %v4103
        %v4105 = vrot.slane %v3241, %v4104
        %v4106 = vmul.f32 %v1578, %v3981
        %v4107 = vmul.f32 %v1582, %v3985
        %v4108 = vmul.f32 %v1586, %v3989
        %v4109 = vmul.f32 %v1590, %v3993
        %v4110 = vmul.f32 %v1594, %v3997
        %v4111 = vmul.f32 %v1598, %v4001
        %v4112 = vmul.f32 %v1602, %v4005
        %v4113 = vmul.f32 %v1606, %v4009
        %v4114 = vmul.f32 %v1610, %v4013
        %v4115 = vmul.f32 %v1614, %v4017
        %v4116 = vmul.f32 %v1618, %v4021
        %v4117 = vmul.f32 %v1622, %v4025
        %v4118 = vmul.f32 %v1626, %v4029
        %v4119 = vmul.f32 %v1630, %v4033
        %v4120 = vmul.f32 %v1634, %v4037
        %v4121 = vmul.f32 %v1638, %v4041
        %v4122 = vmul.f32 %v1642, %v4045
        %v4123 = vmul.f32 %v1646, %v4049
        %v4124 = vmul.f32 %v1650, %v4053
        %v4125 = vmul.f32 %v1654, %v4057
        %v4126 = vmul.f32 %v1658, %v4061
        %v4127 = vmul.f32 %v1662, %v4065
        %v4128 = vmul.f32 %v1666, %v4069
        %v4129 = vmul.f32 %v1670, %v4073
        %v4130 = vmul.f32 %v1674, %v4077
        %v4131 = vmul.f32 %v1678, %v4081
        %v4132 = vmul.f32 %v1682, %v4085
        %v4133 = vmul.f32 %v1686, %v4089
        %v4134 = vmul.f32 %v1690, %v4093
        %v4135 = vmul.f32 %v1694, %v4097
        %v4136 = vmul.f32 %v1698, %v4101
        %v4137 = vmul.f32 %v1702, %v4105
        %v4138 = vadd.f32 %v3946, %v4106
        %v4139 = vadd.f32 %v3947, %v4107
        %v4140 = vadd.f32 %v3948, %v4108
        %v4141 = vadd.f32 %v3949, %v4109
        %v4142 = vadd.f32 %v3950, %v4110
        %v4143 = vadd.f32 %v3951, %v4111
        %v4144 = vadd.f32 %v3952, %v4112
        %v4145 = vadd.f32 %v3953, %v4113
        %v4146 = vadd.f32 %v3954, %v4114
        %v4147 = vadd.f32 %v3955, %v4115
        %v4148 = vadd.f32 %v3956, %v4116
        %v4149 = vadd.f32 %v3957, %v4117
        %v4150 = vadd.f32 %v3958, %v4118
        %v4151 = vadd.f32 %v3959, %v4119
        %v4152 = vadd.f32 %v3960, %v4120
        %v4153 = vadd.f32 %v3961, %v4121
        %v4154 = vadd.f32 %v3962, %v4122
        %v4155 = vadd.f32 %v3963, %v4123
        %v4156 = vadd.f32 %v3964, %v4124
        %v4157 = vadd.f32 %v3965, %v4125
        %v4158 = vadd.f32 %v3966, %v4126
        %v4159 = vadd.f32 %v3967, %v4127
        %v4160 = vadd.f32 %v3968, %v4128
        %v4161 = vadd.f32 %v3969, %v4129
        %v4162 = vadd.f32 %v3970, %v4130
        %v4163 = vadd.f32 %v3971, %v4131
        %v4164 = vadd.f32 %v3972, %v4132
        %v4165 = vadd.f32 %v3973, %v4133
        %v4166 = vadd.f32 %v3974, %v4134
        %v4167 = vadd.f32 %v3975, %v4135
        %v4168 = vadd.f32 %v3976, %v4136
        %v4169 = vadd.f32 %v3977, %v4137
        %v4170 = vlaneseq
        %v4171 = vshrl.u32 %v4170, 7
        %v4172 = vsub.s32 5, %v4171
        %v4173 = vrot.slane %v3210, %v4172
        %v4174 = vlaneseq
        %v4175 = vshrl.u32 %v4174, 7
        %v4176 = vsub.s32 5, %v4175
        %v4177 = vrot.slane %v3211, %v4176
        %v4178 = vlaneseq
        %v4179 = vshrl.u32 %v4178, 7
        %v4180 = vsub.s32 5, %v4179
        %v4181 = vrot.slane %v3212, %v4180
        %v4182 = vlaneseq
        %v4183 = vshrl.u32 %v4182, 7
        %v4184 = vsub.s32 5, %v4183
        %v4185 = vrot.slane %v3213, %v4184
        %v4186 = vlaneseq
        %v4187 = vshrl.u32 %v4186, 7
        %v4188 = vsub.s32 5, %v4187
        %v4189 = vrot.slane %v3214, %v4188
        %v4190 = vlaneseq
        %v4191 = vshrl.u32 %v4190, 7
        %v4192 = vsub.s32 5, %v4191
        %v4193 = vrot.slane %v3215, %v4192
        %v4194 = vlaneseq
        %v4195 = vshrl.u32 %v4194, 7
        %v4196 = vsub.s32 5, %v4195
        %v4197 = vrot.slane %v3216, %v4196
        %v4198 = vlaneseq
        %v4199 = vshrl.u32 %v4198, 7
        %v4200 = vsub.s32 5, %v4199
        %v4201 = vrot.slane %v3217, %v4200
        %v4202 = vlaneseq
        %v4203 = vshrl.u32 %v4202, 7
        %v4204 = vsub.s32 5, %v4203
        %v4205 = vrot.slane %v3218, %v4204
        %v4206 = vlaneseq
        %v4207 = vshrl.u32 %v4206, 7
        %v4208 = vsub.s32 5, %v4207
        %v4209 = vrot.slane %v3219, %v4208
        %v4210 = vlaneseq
        %v4211 = vshrl.u32 %v4210, 7
        %v4212 = vsub.s32 5, %v4211
        %v4213 = vrot.slane %v3220, %v4212
        %v4214 = vlaneseq
        %v4215 = vshrl.u32 %v4214, 7
        %v4216 = vsub.s32 5, %v4215
        %v4217 = vrot.slane %v3221, %v4216
        %v4218 = vlaneseq
        %v4219 = vshrl.u32 %v4218, 7
        %v4220 = vsub.s32 5, %v4219
        %v4221 = vrot.slane %v3222, %v4220
        %v4222 = vlaneseq
        %v4223 = vshrl.u32 %v4222, 7
        %v4224 = vsub.s32 5, %v4223
        %v4225 = vrot.slane %v3223, %v4224
        %v4226 = vlaneseq
        %v4227 = vshrl.u32 %v4226, 7
        %v4228 = vsub.s32 5, %v4227
        %v4229 = vrot.slane %v3224, %v4228
        %v4230 = vlaneseq
        %v4231 = vshrl.u32 %v4230, 7
        %v4232 = vsub.s32 5, %v4231
        %v4233 = vrot.slane %v3225, %v4232
        %v4234 = vlaneseq
        %v4235 = vshrl.u32 %v4234, 7
        %v4236 = vsub.s32 5, %v4235
        %v4237 = vrot.slane %v3226, %v4236
        %v4238 = vlaneseq
        %v4239 = vshrl.u32 %v4238, 7
        %v4240 = vsub.s32 5, %v4239
        %v4241 = vrot.slane %v3227, %v4240
        %v4242 = vlaneseq
        %v4243 = vshrl.u32 %v4242, 7
        %v4244 = vsub.s32 5, %v4243
        %v4245 = vrot.slane %v3228, %v4244
        %v4246 = vlaneseq
        %v4247 = vshrl.u32 %v4246, 7
        %v4248 = vsub.s32 5, %v4247
        %v4249 = vrot.slane %v3229, %v4248
        %v4250 = vlaneseq
        %v4251 = vshrl.u32 %v4250, 7
        %v4252 = vsub.s32 5, %v4251
        %v4253 = vrot.slane %v3230, %v4252
        %v4254 = vlaneseq
        %v4255 = vshrl.u32 %v4254, 7
        %v4256 = vsub.s32 5, %v4255
        %v4257 = vrot.slane %v3231, %v4256
        %v4258 = vlaneseq
        %v4259 = vshrl.u32 %v4258, 7
        %v4260 = vsub.s32 5, %v4259
        %v4261 = vrot.slane %v3232, %v4260
        %v4262 = vlaneseq
        %v4263 = vshrl.u32 %v4262, 7
        %v4264 = vsub.s32 5, %v4263
        %v4265 = vrot.slane %v3233, %v4264
        %v4266 = vlaneseq
        %v4267 = vshrl.u32 %v4266, 7
        %v4268 = vsub.s32 5, %v4267
        %v4269 = vrot.slane %v3234, %v4268
        %v4270 = vlaneseq
        %v4271 = vshrl.u32 %v4270, 7
        %v4272 = vsub.s32 5, %v4271
        %v4273 = vrot.slane %v3235, %v4272
        %v4274 = vlaneseq
        %v4275 = vshrl.u32 %v4274, 7
        %v4276 = vsub.s32 5, %v4275
        %v4277 = vrot.slane %v3236, %v4276
        %v4278 = vlaneseq
        %v4279 = vshrl.u32 %v4278, 7
        %v4280 = vsub.s32 5, %v4279
        %v4281 = vrot.slane %v3237, %v4280
        %v4282 = vlaneseq
        %v4283 = vshrl.u32 %v4282, 7
        %v4284 = vsub.s32 5, %v4283
        %v4285 = vrot.slane %v3238, %v4284
        %v4286 = vlaneseq
        %v4287 = vshrl.u32 %v4286, 7
        %v4288 = vsub.s32 5, %v4287
        %v4289 = vrot.slane %v3239, %v4288
        %v4290 = vlaneseq
        %v4291 = vshrl.u32 %v4290, 7
        %v4292 = vsub.s32 5, %v4291
        %v4293 = vrot.slane %v3240, %v4292
        %v4294 = vlaneseq
        %v4295 = vshrl.u32 %v4294, 7
        %v4296 = vsub.s32 5, %v4295
        %v4297 = vrot.slane %v3241, %v4296
        %v4298 = vmul.f32 %v1898, %v4173
        %v4299 = vmul.f32 %v1902, %v4177
        %v4300 = vmul.f32 %v1906, %v4181
        %v4301 = vmul.f32 %v1910, %v4185
        %v4302 = vmul.f32 %v1914, %v4189
        %v4303 = vmul.f32 %v1918, %v4193
        %v4304 = vmul.f32 %v1922, %v4197
        %v4305 = vmul.f32 %v1926, %v4201
        %v4306 = vmul.f32 %v1930, %v4205
        %v4307 = vmul.f32 %v1934, %v4209
        %v4308 = vmul.f32 %v1938, %v4213
        %v4309 = vmul.f32 %v1942, %v4217
        %v4310 = vmul.f32 %v1946, %v4221
        %v4311 = vmul.f32 %v1950, %v4225
        %v4312 = vmul.f32 %v1954, %v4229
        %v4313 = vmul.f32 %v1958, %v4233
        %v4314 = vmul.f32 %v1962, %v4237
        %v4315 = vmul.f32 %v1966, %v4241
        %v4316 = vmul.f32 %v1970, %v4245
        %v4317 = vmul.f32 %v1974, %v4249
        %v4318 = vmul.f32 %v1978, %v4253
        %v4319 = vmul.f32 %v1982, %v4257
        %v4320 = vmul.f32 %v1986, %v4261
        %v4321 = vmul.f32 %v1990, %v4265
        %v4322 = vmul.f32 %v1994, %v4269
        %v4323 = vmul.f32 %v1998, %v4273
        %v4324 = vmul.f32 %v2002, %v4277
        %v4325 = vmul.f32 %v2006, %v4281
        %v4326 = vmul.f32 %v2010, %v4285
        %v4327 = vmul.f32 %v2014, %v4289
        %v4328 = vmul.f32 %v2018, %v4293
        %v4329 = vmul.f32 %v2022, %v4297
        %v4330 = vadd.f32 %v4138, %v4298
        %v4331 = vadd.f32 %v4139, %v4299
        %v4332 = vadd.f32 %v4140, %v4300
        %v4333 = vadd.f32 %v4141, %v4301
        %v4334 = vadd.f32 %v4142, %v4302
        %v4335 = vadd.f32 %v4143, %v4303
        %v4336 = vadd.f32 %v4144, %v4304
        %v4337 = vadd.f32 %v4145, %v4305
        %v4338 = vadd.f32 %v4146, %v4306
        %v4339 = vadd.f32 %v4147, %v4307
        %v4340 = vadd.f32 %v4148, %v4308
        %v4341 = vadd.f32 %v4149, %v4309
        %v4342 = vadd.f32 %v4150, %v4310
        %v4343 = vadd.f32 %v4151, %v4311
        %v4344 = vadd.f32 %v4152, %v4312
        %v4345 = vadd.f32 %v4153, %v4313
        %v4346 = vadd.f32 %v4154, %v4314
        %v4347 = vadd.f32 %v4155, %v4315
        %v4348 = vadd.f32 %v4156, %v4316
        %v4349 = vadd.f32 %v4157, %v4317
        %v4350 = vadd.f32 %v4158, %v4318
        %v4351 = vadd.f32 %v4159, %v4319
        %v4352 = vadd.f32 %v4160, %v4320
        %v4353 = vadd.f32 %v4161, %v4321
        %v4354 = vadd.f32 %v4162, %v4322
        %v4355 = vadd.f32 %v4163, %v4323
        %v4356 = vadd.f32 %v4164, %v4324
        %v4357 = vadd.f32 %v4165, %v4325
        %v4358 = vadd.f32 %v4166, %v4326
        %v4359 = vadd.f32 %v4167, %v4327
        %v4360 = vadd.f32 %v4168, %v4328
        %v4361 = vadd.f32 %v4169, %v4329
        %v4362 = vlaneseq
        %v4363 = vshrl.u32 %v4362, 7
        %v4364 = vsub.s32 6, %v4363
        %v4365 = vrot.slane %v3210, %v4364
        %v4366 = vlaneseq
        %v4367 = vshrl.u32 %v4366, 7
        %v4368 = vsub.s32 6, %v4367
        %v4369 = vrot.slane %v3211, %v4368
        %v4370 = vlaneseq
        %v4371 = vshrl.u32 %v4370, 7
        %v4372 = vsub.s32 6, %v4371
        %v4373 = vrot.slane %v3212, %v4372
        %v4374 = vlaneseq
        %v4375 = vshrl.u32 %v4374, 7
        %v4376 = vsub.s32 6, %v4375
        %v4377 = vrot.slane %v3213, %v4376
        %v4378 = vlaneseq
        %v4379 = vshrl.u32 %v4378, 7
        %v4380 = vsub.s32 6, %v4379
        %v4381 = vrot.slane %v3214, %v4380
        %v4382 = vlaneseq
        %v4383 = vshrl.u32 %v4382, 7
        %v4384 = vsub.s32 6, %v4383
        %v4385 = vrot.slane %v3215, %v4384
        %v4386 = vlaneseq
        %v4387 = vshrl.u32 %v4386, 7
        %v4388 = vsub.s32 6, %v4387
        %v4389 = vrot.slane %v3216, %v4388
        %v4390 = vlaneseq
        %v4391 = vshrl.u32 %v4390, 7
        %v4392 = vsub.s32 6, %v4391
        %v4393 = vrot.slane %v3217, %v4392
        %v4394 = vlaneseq
        %v4395 = vshrl.u32 %v4394, 7
        %v4396 = vsub.s32 6, %v4395
        %v4397 = vrot.slane %v3218, %v4396
        %v4398 = vlaneseq
        %v4399 = vshrl.u32 %v4398, 7
        %v4400 = vsub.s32 6, %v4399
        %v4401 = vrot.slane %v3219, %v4400
        %v4402 = vlaneseq
        %v4403 = vshrl.u32 %v4402, 7
        %v4404 = vsub.s32 6, %v4403
        %v4405 = vrot.slane %v3220, %v4404
        %v4406 = vlaneseq
        %v4407 = vshrl.u32 %v4406, 7
        %v4408 = vsub.s32 6, %v4407
        %v4409 = vrot.slane %v3221, %v4408
        %v4410 = vlaneseq
        %v4411 = vshrl.u32 %v4410, 7
        %v4412 = vsub.s32 6, %v4411
        %v4413 = vrot.slane %v3222, %v4412
        %v4414 = vlaneseq
        %v4415 = vshrl.u32 %v4414, 7
        %v4416 = vsub.s32 6, %v4415
        %v4417 = vrot.slane %v3223, %v4416
        %v4418 = vlaneseq
        %v4419 = vshrl.u32 %v4418, 7
        %v4420 = vsub.s32 6, %v4419
        %v4421 = vrot.slane %v3224, %v4420
        %v4422 = vlaneseq
        %v4423 = vshrl.u32 %v4422, 7
        %v4424 = vsub.s32 6, %v4423
        %v4425 = vrot.slane %v3225, %v4424
        %v4426 = vlaneseq
        %v4427 = vshrl.u32 %v4426, 7
        %v4428 = vsub.s32 6, %v4427
        %v4429 = vrot.slane %v3226, %v4428
        %v4430 = vlaneseq
        %v4431 = vshrl.u32 %v4430, 7
        %v4432 = vsub.s32 6, %v4431
        %v4433 = vrot.slane %v3227, %v4432
        %v4434 = vlaneseq
        %v4435 = vshrl.u32 %v4434, 7
        %v4436 = vsub.s32 6, %v4435
        %v4437 = vrot.slane %v3228, %v4436
        %v4438 = vlaneseq
        %v4439 = vshrl.u32 %v4438, 7
        %v4440 = vsub.s32 6, %v4439
        %v4441 = vrot.slane %v3229, %v4440
        %v4442 = vlaneseq
        %v4443 = vshrl.u32 %v4442, 7
        %v4444 = vsub.s32 6, %v4443
        %v4445 = vrot.slane %v3230, %v4444
        %v4446 = vlaneseq
        %v4447 = vshrl.u32 %v4446, 7
        %v4448 = vsub.s32 6, %v4447
        %v4449 = vrot.slane %v3231, %v4448
        %v4450 = vlaneseq
        %v4451 = vshrl.u32 %v4450, 7
        %v4452 = vsub.s32 6, %v4451
        %v4453 = vrot.slane %v3232, %v4452
        %v4454 = vlaneseq
        %v4455 = vshrl.u32 %v4454, 7
        %v4456 = vsub.s32 6, %v4455
        %v4457 = vrot.slane %v3233, %v4456
        %v4458 = vlaneseq
        %v4459 = vshrl.u32 %v4458, 7
        %v4460 = vsub.s32 6, %v4459
        %v4461 = vrot.slane %v3234, %v4460
        %v4462 = vlaneseq
        %v4463 = vshrl.u32 %v4462, 7
        %v4464 = vsub.s32 6, %v4463
        %v4465 = vrot.slane %v3235, %v4464
        %v4466 = vlaneseq
        %v4467 = vshrl.u32 %v4466, 7
        %v4468 = vsub.s32 6, %v4467
        %v4469 = vrot.slane %v3236, %v4468
        %v4470 = vlaneseq
        %v4471 = vshrl.u32 %v4470, 7
        %v4472 = vsub.s32 6, %v4471
        %v4473 = vrot.slane %v3237, %v4472
        %v4474 = vlaneseq
        %v4475 = vshrl.u32 %v4474, 7
        %v4476 = vsub.s32 6, %v4475
        %v4477 = vrot.slane %v3238, %v4476
        %v4478 = vlaneseq
        %v4479 = vshrl.u32 %v4478, 7
        %v4480 = vsub.s32 6, %v4479
        %v4481 = vrot.slane %v3239, %v4480
        %v4482 = vlaneseq
        %v4483 = vshrl.u32 %v4482, 7
        %v4484 = vsub.s32 6, %v4483
        %v4485 = vrot.slane %v3240, %v4484
        %v4486 = vlaneseq
        %v4487 = vshrl.u32 %v4486, 7
        %v4488 = vsub.s32 6, %v4487
        %v4489 = vrot.slane %v3241, %v4488
        %v4490 = vmul.f32 %v2218, %v4365
        %v4491 = vmul.f32 %v2222, %v4369
        %v4492 = vmul.f32 %v2226, %v4373
        %v4493 = vmul.f32 %v2230, %v4377
        %v4494 = vmul.f32 %v2234, %v4381
        %v4495 = vmul.f32 %v2238, %v4385
        %v4496 = vmul.f32 %v2242, %v4389
        %v4497 = vmul.f32 %v2246, %v4393
        %v4498 = vmul.f32 %v2250, %v4397
        %v4499 = vmul.f32 %v2254, %v4401
        %v4500 = vmul.f32 %v2258, %v4405
        %v4501 = vmul.f32 %v2262, %v4409
        %v4502 = vmul.f32 %v2266, %v4413
        %v4503 = vmul.f32 %v2270, %v4417
        %v4504 = vmul.f32 %v2274, %v4421
        %v4505 = vmul.f32 %v2278, %v4425
        %v4506 = vmul.f32 %v2282, %v4429
        %v4507 = vmul.f32 %v2286, %v4433
        %v4508 = vmul.f32 %v2290, %v4437
        %v4509 = vmul.f32 %v2294, %v4441
        %v4510 = vmul.f32 %v2298, %v4445
        %v4511 = vmul.f32 %v2302, %v4449
        %v4512 = vmul.f32 %v2306, %v4453
        %v4513 = vmul.f32 %v2310, %v4457
        %v4514 = vmul.f32 %v2314, %v4461
        %v4515 = vmul.f32 %v2318, %v4465
        %v4516 = vmul.f32 %v2322, %v4469
        %v4517 = vmul.f32 %v2326, %v4473
        %v4518 = vmul.f32 %v2330, %v4477
        %v4519 = vmul.f32 %v2334, %v4481
        %v4520 = vmul.f32 %v2338, %v4485
        %v4521 = vmul.f32 %v2342, %v4489
        %v4522 = vadd.f32 %v4330, %v4490
        %v4523 = vadd.f32 %v4331, %v4491
        %v4524 = vadd.f32 %v4332, %v4492
        %v4525 = vadd.f32 %v4333, %v4493
        %v4526 = vadd.f32 %v4334, %v4494
        %v4527 = vadd.f32 %v4335, %v4495
        %v4528 = vadd.f32 %v4336, %v4496
        %v4529 = vadd.f32 %v4337, %v4497
        %v4530 = vadd.f32 %v4338, %v4498
        %v4531 = vadd.f32 %v4339, %v4499
        %v4532 = vadd.f32 %v4340, %v4500
        %v4533 = vadd.f32 %v4341, %v4501
        %v4534 = vadd.f32 %v4342, %v4502
        %v4535 = vadd.f32 %v4343, %v4503
        %v4536 = vadd.f32 %v4344, %v4504
        %v4537 = vadd.f32 %v4345, %v4505
        %v4538 = vadd.f32 %v4346, %v4506
        %v4539 = vadd.f32 %v4347, %v4507
        %v4540 = vadd.f32 %v4348, %v4508
        %v4541 = vadd.f32 %v4349, %v4509
        %v4542 = vadd.f32 %v4350, %v4510
        %v4543 = vadd.f32 %v4351, %v4511
        %v4544 = vadd.f32 %v4352, %v4512
        %v4545 = vadd.f32 %v4353, %v4513
        %v4546 = vadd.f32 %v4354, %v4514
        %v4547 = vadd.f32 %v4355, %v4515
        %v4548 = vadd.f32 %v4356, %v4516
        %v4549 = vadd.f32 %v4357, %v4517
        %v4550 = vadd.f32 %v4358, %v4518
        %v4551 = vadd.f32 %v4359, %v4519
        %v4552 = vadd.f32 %v4360, %v4520
        %v4553 = vadd.f32 %v4361, %v4521
        %v4554 = vlaneseq
        %v4555 = vshrl.u32 %v4554, 7
        %v4556 = vsub.s32 7, %v4555
        %v4557 = vrot.slane %v3210, %v4556
        %v4558 = vlaneseq
        %v4559 = vshrl.u32 %v4558, 7
        %v4560 = vsub.s32 7, %v4559
        %v4561 = vrot.slane %v3211, %v4560
        %v4562 = vlaneseq
        %v4563 = vshrl.u32 %v4562, 7
        %v4564 = vsub.s32 7, %v4563
        %v4565 = vrot.slane %v3212, %v4564
        %v4566 = vlaneseq
        %v4567 = vshrl.u32 %v4566, 7
        %v4568 = vsub.s32 7, %v4567
        %v4569 = vrot.slane %v3213, %v4568
        %v4570 = vlaneseq
        %v4571 = vshrl.u32 %v4570, 7
        %v4572 = vsub.s32 7, %v4571
        %v4573 = vrot.slane %v3214, %v4572
        %v4574 = vlaneseq
        %v4575 = vshrl.u32 %v4574, 7
        %v4576 = vsub.s32 7, %v4575
        %v4577 = vrot.slane %v3215, %v4576
        %v4578 = vlaneseq
        %v4579 = vshrl.u32 %v4578, 7
        %v4580 = vsub.s32 7, %v4579
        %v4581 = vrot.slane %v3216, %v4580
        %v4582 = vlaneseq
        %v4583 = vshrl.u32 %v4582, 7
        %v4584 = vsub.s32 7, %v4583
        %v4585 = vrot.slane %v3217, %v4584
        %v4586 = vlaneseq
        %v4587 = vshrl.u32 %v4586, 7
        %v4588 = vsub.s32 7, %v4587
        %v4589 = vrot.slane %v3218, %v4588
        %v4590 = vlaneseq
        %v4591 = vshrl.u32 %v4590, 7
        %v4592 = vsub.s32 7, %v4591
        %v4593 = vrot.slane %v3219, %v4592
        %v4594 = vlaneseq
        %v4595 = vshrl.u32 %v4594, 7
        %v4596 = vsub.s32 7, %v4595
        %v4597 = vrot.slane %v3220, %v4596
        %v4598 = vlaneseq
        %v4599 = vshrl.u32 %v4598, 7
        %v4600 = vsub.s32 7, %v4599
        %v4601 = vrot.slane %v3221, %v4600
        %v4602 = vlaneseq
        %v4603 = vshrl.u32 %v4602, 7
        %v4604 = vsub.s32 7, %v4603
        %v4605 = vrot.slane %v3222, %v4604
        %v4606 = vlaneseq
        %v4607 = vshrl.u32 %v4606, 7
        %v4608 = vsub.s32 7, %v4607
        %v4609 = vrot.slane %v3223, %v4608
        %v4610 = vlaneseq
        %v4611 = vshrl.u32 %v4610, 7
        %v4612 = vsub.s32 7, %v4611
        %v4613 = vrot.slane %v3224, %v4612
        %v4614 = vlaneseq
        %v4615 = vshrl.u32 %v4614, 7
        %v4616 = vsub.s32 7, %v4615
        %v4617 = vrot.slane %v3225, %v4616
        %v4618 = vlaneseq
        %v4619 = vshrl.u32 %v4618, 7
        %v4620 = vsub.s32 7, %v4619
        %v4621 = vrot.slane %v3226, %v4620
        %v4622 = vlaneseq
        %v4623 = vshrl.u32 %v4622, 7
        %v4624 = vsub.s32 7, %v4623
        %v4625 = vrot.slane %v3227, %v4624
        %v4626 = vlaneseq
        %v4627 = vshrl.u32 %v4626, 7
        %v4628 = vsub.s32 7, %v4627
        %v4629 = vrot.slane %v3228, %v4628
        %v4630 = vlaneseq
        %v4631 = vshrl.u32 %v4630, 7
        %v4632 = vsub.s32 7, %v4631
        %v4633 = vrot.slane %v3229, %v4632
        %v4634 = vlaneseq
        %v4635 = vshrl.u32 %v4634, 7
        %v4636 = vsub.s32 7, %v4635
        %v4637 = vrot.slane %v3230, %v4636
        %v4638 = vlaneseq
        %v4639 = vshrl.u32 %v4638, 7
        %v4640 = vsub.s32 7, %v4639
        %v4641 = vrot.slane %v3231, %v4640
        %v4642 = vlaneseq
        %v4643 = vshrl.u32 %v4642, 7
        %v4644 = vsub.s32 7, %v4643
        %v4645 = vrot.slane %v3232, %v4644
        %v4646 = vlaneseq
        %v4647 = vshrl.u32 %v4646, 7
        %v4648 = vsub.s32 7, %v4647
        %v4649 = vrot.slane %v3233, %v4648
        %v4650 = vlaneseq
        %v4651 = vshrl.u32 %v4650, 7
        %v4652 = vsub.s32 7, %v4651
        %v4653 = vrot.slane %v3234, %v4652
        %v4654 = vlaneseq
        %v4655 = vshrl.u32 %v4654, 7
        %v4656 = vsub.s32 7, %v4655
        %v4657 = vrot.slane %v3235, %v4656
        %v4658 = vlaneseq
        %v4659 = vshrl.u32 %v4658, 7
        %v4660 = vsub.s32 7, %v4659
        %v4661 = vrot.slane %v3236, %v4660
        %v4662 = vlaneseq
        %v4663 = vshrl.u32 %v4662, 7
        %v4664 = vsub.s32 7, %v4663
        %v4665 = vrot.slane %v3237, %v4664
        %v4666 = vlaneseq
        %v4667 = vshrl.u32 %v4666, 7
        %v4668 = vsub.s32 7, %v4667
        %v4669 = vrot.slane %v3238, %v4668
        %v4670 = vlaneseq
        %v4671 = vshrl.u32 %v4670, 7
        %v4672 = vsub.s32 7, %v4671
        %v4673 = vrot.slane %v3239, %v4672
        %v4674 = vlaneseq
        %v4675 = vshrl.u32 %v4674, 7
        %v4676 = vsub.s32 7, %v4675
        %v4677 = vrot.slane %v3240, %v4676
        %v4678 = vlaneseq
        %v4679 = vshrl.u32 %v4678, 7
        %v4680 = vsub.s32 7, %v4679
        %v4681 = vrot.slane %v3241, %v4680
        %v4682 = vmul.f32 %v2538, %v4557
        %v4683 = vmul.f32 %v2542, %v4561
        %v4684 = vmul.f32 %v2546, %v4565
        %v4685 = vmul.f32 %v2550, %v4569
        %v4686 = vmul.f32 %v2554, %v4573
        %v4687 = vmul.f32 %v2558, %v4577
        %v4688 = vmul.f32 %v2562, %v4581
        %v4689 = vmul.f32 %v2566, %v4585
        %v4690 = vmul.f32 %v2570, %v4589
        %v4691 = vmul.f32 %v2574, %v4593
        %v4692 = vmul.f32 %v2578, %v4597
        %v4693 = vmul.f32 %v2582, %v4601
        %v4694 = vmul.f32 %v2586, %v4605
        %v4695 = vmul.f32 %v2590, %v4609
        %v4696 = vmul.f32 %v2594, %v4613
        %v4697 = vmul.f32 %v2598, %v4617
        %v4698 = vmul.f32 %v2602, %v4621
        %v4699 = vmul.f32 %v2606, %v4625
        %v4700 = vmul.f32 %v2610, %v4629
        %v4701 = vmul.f32 %v2614, %v4633
        %v4702 = vmul.f32 %v2618, %v4637
        %v4703 = vmul.f32 %v2622, %v4641
        %v4704 = vmul.f32 %v2626, %v4645
        %v4705 = vmul.f32 %v2630, %v4649
        %v4706 = vmul.f32 %v2634, %v4653
        %v4707 = vmul.f32 %v2638, %v4657
        %v4708 = vmul.f32 %v2642, %v4661
        %v4709 = vmul.f32 %v2646, %v4665
        %v4710 = vmul.f32 %v2650, %v4669
        %v4711 = vmul.f32 %v2654, %v4673
        %v4712 = vmul.f32 %v2658, %v4677
        %v4713 = vmul.f32 %v2662, %v4681
        %v4714 = vadd.f32 %v4522, %v4682
        %v4715 = vadd.f32 %v4523, %v4683
        %v4716 = vadd.f32 %v4524, %v4684
        %v4717 = vadd.f32 %v4525, %v4685
        %v4718 = vadd.f32 %v4526, %v4686
        %v4719 = vadd.f32 %v4527, %v4687
        %v4720 = vadd.f32 %v4528, %v4688
        %v4721 = vadd.f32 %v4529, %v4689
        %v4722 = vadd.f32 %v4530, %v4690
        %v4723 = vadd.f32 %v4531, %v4691
        %v4724 = vadd.f32 %v4532, %v4692
        %v4725 = vadd.f32 %v4533, %v4693
        %v4726 = vadd.f32 %v4534, %v4694
        %v4727 = vadd.f32 %v4535, %v4695
        %v4728 = vadd.f32 %v4536, %v4696
        %v4729 = vadd.f32 %v4537, %v4697
        %v4730 = vadd.f32 %v4538, %v4698
        %v4731 = vadd.f32 %v4539, %v4699
        %v4732 = vadd.f32 %v4540, %v4700
        %v4733 = vadd.f32 %v4541, %v4701
        %v4734 = vadd.f32 %v4542, %v4702
        %v4735 = vadd.f32 %v4543, %v4703
        %v4736 = vadd.f32 %v4544, %v4704
        %v4737 = vadd.f32 %v4545, %v4705
        %v4738 = vadd.f32 %v4546, %v4706
        %v4739 = vadd.f32 %v4547, %v4707
        %v4740 = vadd.f32 %v4548, %v4708
        %v4741 = vadd.f32 %v4549, %v4709
        %v4742 = vadd.f32 %v4550, %v4710
        %v4743 = vadd.f32 %v4551, %v4711
        %v4744 = vadd.f32 %v4552, %v4712
        %v4745 = vadd.f32 %v4553, %v4713
        %v4747 = vsel %vm2856, %v4714, 0
        %v4750 = vsel %vm2856, %v4715, 0
        %v4753 = vsel %vm2856, %v4716, 0
        %v4756 = vsel %vm2856, %v4717, 0
        %v4759 = vsel %vm2856, %v4718, 0
        %v4762 = vsel %vm2856, %v4719, 0
        %v4765 = vsel %vm2856, %v4720, 0
        %v4768 = vsel %vm2856, %v4721, 0
        %v4771 = vsel %vm2856, %v4722, 0
        %v4774 = vsel %vm2856, %v4723, 0
        %v4777 = vsel %vm2856, %v4724, 0
        %v4780 = vsel %vm2856, %v4725, 0
        %v4783 = vsel %vm2856, %v4726, 0
        %v4786 = vsel %vm2856, %v4727, 0
        %v4789 = vsel %vm2856, %v4728, 0
        %v4792 = vsel %vm2856, %v4729, 0
        %v4795 = vsel %vm2856, %v4730, 0
        %v4798 = vsel %vm2856, %v4731, 0
        %v4801 = vsel %vm2856, %v4732, 0
        %v4804 = vsel %vm2856, %v4733, 0
        %v4807 = vsel %vm2856, %v4734, 0
        %v4810 = vsel %vm2856, %v4735, 0
        %v4813 = vsel %vm2856, %v4736, 0
        %v4816 = vsel %vm2856, %v4737, 0
        %v4819 = vsel %vm2856, %v4738, 0
        %v4822 = vsel %vm2856, %v4739, 0
        %v4825 = vsel %vm2856, %v4740, 0
        %v4828 = vsel %vm2856, %v4741, 0
        %v4831 = vsel %vm2856, %v4742, 0
        %v4834 = vsel %vm2856, %v4743, 0
        %v4837 = vsel %vm2856, %v4744, 0
        %v4840 = vsel %vm2856, %v4745, 0
        %4842 = vmatprep.subr.mxu0 0.0
        %4843 = vmatpush1.msra.mxu0 %v285
        %4844 = vmatprep.subr.mxu0 0.0
        %4845 = vmatpush1.msra.mxu0 %v286
        %4846 = vmatprep.subr.mxu0 0.0
        %4847 = vmatpush1.msra.mxu0 %v287
        %4848 = vmatprep.subr.mxu0 0.0
        %4849 = vmatpush1.msra.mxu0 %v288
        %4850 = vmatprep.subr.mxu0 0.0
        %4851 = vmatpush1.msra.mxu0 0.0
        %4852 = vmatprep.subr.mxu0 0.0
        %4853 = vmatpush1.msra.mxu0 0.0
        %4854 = vmatprep.subr.mxu0 0.0
        %4855 = vmatpush1.msra.mxu0 0.0
        %4856 = vmatprep.subr.mxu0 0.0
        %4857 = vmatpush1.msra.mxu0 0.0
        %4858 = vmatprep.subr.mxu0 0.0
        %4859 = vmatpush1.msra.mxu0 0.0
        %4860 = vmatprep.subr.mxu0 0.0
        %4861 = vmatpush1.msra.mxu0 0.0
        %4862 = vmatprep.subr.mxu0 0.0
        %4863 = vmatpush1.msra.mxu0 0.0
        %4864 = vmatprep.subr.mxu0 0.0
        %4865 = vmatpush1.msra.mxu0 0.0
        %4866 = vmatprep.subr.mxu0 0.0
        %4867 = vmatpush1.msra.mxu0 0.0
        %4868 = vmatprep.subr.mxu0 0.0
        %4869 = vmatpush1.msra.mxu0 0.0
        %4870 = vmatprep.subr.mxu0 0.0
        %4871 = vmatpush1.msra.mxu0 0.0
        %4872 = vmatprep.subr.mxu0 0.0
        %4873 = vmatpush1.msra.mxu0 0.0
        %4874 = vmatprep.subr.mxu0 0.0
        %4875 = vmatpush1.msra.mxu0 0.0
        %4876 = vmatprep.subr.mxu0 0.0
        %4877 = vmatpush1.msra.mxu0 0.0
        %4878 = vmatprep.subr.mxu0 0.0
        %4879 = vmatpush1.msra.mxu0 0.0
        %4880 = vmatprep.subr.mxu0 0.0
        %4881 = vmatpush1.msra.mxu0 0.0
        %4882 = vmatprep.subr.mxu0 0.0
        %4883 = vmatpush1.msra.mxu0 0.0
        %4884 = vmatprep.subr.mxu0 0.0
        %4885 = vmatpush1.msra.mxu0 0.0
        %4886 = vmatprep.subr.mxu0 0.0
        %4887 = vmatpush1.msra.mxu0 0.0
        %4888 = vmatprep.subr.mxu0 0.0
        %4889 = vmatpush1.msra.mxu0 0.0
        %4890 = vmatprep.subr.mxu0 0.0
        %4891 = vmatpush1.msra.mxu0 0.0
        %4892 = vmatprep.subr.mxu0 0.0
        %4893 = vmatpush1.msra.mxu0 0.0
        %4894 = vmatprep.subr.mxu0 0.0
        %4895 = vmatpush1.msra.mxu0 0.0
        %4896 = vmatprep.subr.mxu0 0.0
        %4897 = vmatpush1.msra.mxu0 0.0
        %4898 = vmatprep.subr.mxu0 0.0
        %4899 = vmatpush1.msra.mxu0 0.0
        %4900 = vmatprep.subr.mxu0 0.0
        %4901 = vmatpush1.msra.mxu0 0.0
        %4902 = vmatprep.subr.mxu0 0.0
        %4903 = vmatpush1.msra.mxu0 0.0
        %4904 = vmatprep.subr.mxu0 0.0
        %4905 = vmatpush1.msra.mxu0 0.0
        %4906 = vmatprep.mubr.f32.mxu0 0.0
        %4907 = vmatmul.mubr.f32.gmra.mrb[0].mxu0 %v4747
        %v4908 = vpop.f32.mrb[0].mxu0
        %v4909 = vadd.f32 %v294, %v4908
        %v4910 = vpop.f32.mrb[0].mxu0
        %4911 = vmatprep.mubr.f32.mxu0 0.0
        %4912 = vmatmul.mubr.f32.gmra.mrb[0].mxu0 %v4750
        %v4913 = vpop.f32.mrb[0].mxu0
        %v4914 = vadd.f32 %v294, %v4913
        %v4915 = vpop.f32.mrb[0].mxu0
        %4916 = vmatprep.mubr.f32.mxu0 0.0
        %4917 = vmatmul.mubr.f32.gmra.mrb[0].mxu0 %v4753
        %v4918 = vpop.f32.mrb[0].mxu0
        %v4919 = vadd.f32 %v294, %v4918
        %v4920 = vpop.f32.mrb[0].mxu0
        %4921 = vmatprep.mubr.f32.mxu0 0.0
        %4922 = vmatmul.mubr.f32.gmra.mrb[0].mxu0 %v4756
        %v4923 = vpop.f32.mrb[0].mxu0
        %v4924 = vadd.f32 %v294, %v4923
        %v4925 = vpop.f32.mrb[0].mxu0
        %4926 = vmatprep.mubr.f32.mxu0 0.0
        %4927 = vmatmul.mubr.f32.gmra.mrb[0].mxu0 %v4759
        %v4928 = vpop.f32.mrb[0].mxu0
        %v4929 = vadd.f32 %v294, %v4928
        %v4930 = vpop.f32.mrb[0].mxu0
        %4931 = vmatprep.mubr.f32.mxu0 0.0
        %4932 = vmatmul.mubr.f32.gmra.mrb[0].mxu0 %v4762
        %v4933 = vpop.f32.mrb[0].mxu0
        %v4934 = vadd.f32 %v294, %v4933
        %v4935 = vpop.f32.mrb[0].mxu0
        %4936 = vmatprep.mubr.f32.mxu0 0.0
        %4937 = vmatmul.mubr.f32.gmra.mrb[0].mxu0 %v4765
        %v4938 = vpop.f32.mrb[0].mxu0
        %v4939 = vadd.f32 %v294, %v4938
        %v4940 = vpop.f32.mrb[0].mxu0
        %4941 = vmatprep.mubr.f32.mxu0 0.0
        %4942 = vmatmul.mubr.f32.gmra.mrb[0].mxu0 %v4768
        %v4943 = vpop.f32.mrb[0].mxu0
        %v4944 = vadd.f32 %v294, %v4943
        %v4945 = vpop.f32.mrb[0].mxu0
        %4946 = vmatprep.mubr.f32.mxu0 0.0
        %4947 = vmatmul.mubr.f32.gmra.mrb[0].mxu0 %v4771
        %v4948 = vpop.f32.mrb[0].mxu0
        %v4949 = vadd.f32 %v294, %v4948
        %v4950 = vpop.f32.mrb[0].mxu0
        %4951 = vmatprep.mubr.f32.mxu0 0.0
        %4952 = vmatmul.mubr.f32.gmra.mrb[0].mxu0 %v4774
        %v4953 = vpop.f32.mrb[0].mxu0
        %v4954 = vadd.f32 %v294, %v4953
        %v4955 = vpop.f32.mrb[0].mxu0
        %4956 = vmatprep.mubr.f32.mxu0 0.0
        %4957 = vmatmul.mubr.f32.gmra.mrb[0].mxu0 %v4777
        %v4958 = vpop.f32.mrb[0].mxu0
        %v4959 = vadd.f32 %v294, %v4958
        %v4960 = vpop.f32.mrb[0].mxu0
        %4961 = vmatprep.mubr.f32.mxu0 0.0
        %4962 = vmatmul.mubr.f32.gmra.mrb[0].mxu0 %v4780
        %v4963 = vpop.f32.mrb[0].mxu0
        %v4964 = vadd.f32 %v294, %v4963
        %v4965 = vpop.f32.mrb[0].mxu0
        %4966 = vmatprep.mubr.f32.mxu0 0.0
        %4967 = vmatmul.mubr.f32.gmra.mrb[0].mxu0 %v4783
        %v4968 = vpop.f32.mrb[0].mxu0
        %v4969 = vadd.f32 %v294, %v4968
        %v4970 = vpop.f32.mrb[0].mxu0
        %4971 = vmatprep.mubr.f32.mxu0 0.0
        %4972 = vmatmul.mubr.f32.gmra.mrb[0].mxu0 %v4786
        %v4973 = vpop.f32.mrb[0].mxu0
        %v4974 = vadd.f32 %v294, %v4973
        %v4975 = vpop.f32.mrb[0].mxu0
        %4976 = vmatprep.mubr.f32.mxu0 0.0
        %4977 = vmatmul.mubr.f32.gmra.mrb[0].mxu0 %v4789
        %v4978 = vpop.f32.mrb[0].mxu0
        %v4979 = vadd.f32 %v294, %v4978
        %v4980 = vpop.f32.mrb[0].mxu0
        %4981 = vmatprep.mubr.f32.mxu0 0.0
        %4982 = vmatmul.mubr.f32.gmra.mrb[0].mxu0 %v4792
        %v4983 = vpop.f32.mrb[0].mxu0
        %v4984 = vadd.f32 %v294, %v4983
        %v4985 = vpop.f32.mrb[0].mxu0
        %4986 = vmatprep.mubr.f32.mxu0 0.0
        %4987 = vmatmul.mubr.f32.gmra.mrb[0].mxu0 %v4795
        %v4988 = vpop.f32.mrb[0].mxu0
        %v4989 = vadd.f32 %v294, %v4988
        %v4990 = vpop.f32.mrb[0].mxu0
        %4991 = vmatprep.mubr.f32.mxu0 0.0
        %4992 = vmatmul.mubr.f32.gmra.mrb[0].mxu0 %v4798
        %v4993 = vpop.f32.mrb[0].mxu0
        %v4994 = vadd.f32 %v294, %v4993
        %v4995 = vpop.f32.mrb[0].mxu0
        %4996 = vmatprep.mubr.f32.mxu0 0.0
        %4997 = vmatmul.mubr.f32.gmra.mrb[0].mxu0 %v4801
        %v4998 = vpop.f32.mrb[0].mxu0
        %v4999 = vadd.f32 %v294, %v4998
        %v5000 = vpop.f32.mrb[0].mxu0
        %5001 = vmatprep.mubr.f32.mxu0 0.0
        %5002 = vmatmul.mubr.f32.gmra.mrb[0].mxu0 %v4804
        %v5003 = vpop.f32.mrb[0].mxu0
        %v5004 = vadd.f32 %v294, %v5003
        %v5005 = vpop.f32.mrb[0].mxu0
        %5006 = vmatprep.mubr.f32.mxu0 0.0
        %5007 = vmatmul.mubr.f32.gmra.mrb[0].mxu0 %v4807
        %v5008 = vpop.f32.mrb[0].mxu0
        %v5009 = vadd.f32 %v294, %v5008
        %v5010 = vpop.f32.mrb[0].mxu0
        %5011 = vmatprep.mubr.f32.mxu0 0.0
        %5012 = vmatmul.mubr.f32.gmra.mrb[0].mxu0 %v4810
        %v5013 = vpop.f32.mrb[0].mxu0
        %v5014 = vadd.f32 %v294, %v5013
        %v5015 = vpop.f32.mrb[0].mxu0
        %5016 = vmatprep.mubr.f32.mxu0 0.0
        %5017 = vmatmul.mubr.f32.gmra.mrb[0].mxu0 %v4813
        %v5018 = vpop.f32.mrb[0].mxu0
        %v5019 = vadd.f32 %v294, %v5018
        %v5020 = vpop.f32.mrb[0].mxu0
        %5021 = vmatprep.mubr.f32.mxu0 0.0
        %5022 = vmatmul.mubr.f32.gmra.mrb[0].mxu0 %v4816
        %v5023 = vpop.f32.mrb[0].mxu0
        %v5024 = vadd.f32 %v294, %v5023
        %v5025 = vpop.f32.mrb[0].mxu0
        %5026 = vmatprep.mubr.f32.mxu0 0.0
        %5027 = vmatmul.mubr.f32.gmra.mrb[0].mxu0 %v4819
        %v5028 = vpop.f32.mrb[0].mxu0
        %v5029 = vadd.f32 %v294, %v5028
        %v5030 = vpop.f32.mrb[0].mxu0
        %5031 = vmatprep.mubr.f32.mxu0 0.0
        %5032 = vmatmul.mubr.f32.gmra.mrb[0].mxu0 %v4822
        %v5033 = vpop.f32.mrb[0].mxu0
        %v5034 = vadd.f32 %v294, %v5033
        %v5035 = vpop.f32.mrb[0].mxu0
        %5036 = vmatprep.mubr.f32.mxu0 0.0
        %5037 = vmatmul.mubr.f32.gmra.mrb[0].mxu0 %v4825
        %v5038 = vpop.f32.mrb[0].mxu0
        %v5039 = vadd.f32 %v294, %v5038
        %v5040 = vpop.f32.mrb[0].mxu0
        %5041 = vmatprep.mubr.f32.mxu0 0.0
        %5042 = vmatmul.mubr.f32.gmra.mrb[0].mxu0 %v4828
        %v5043 = vpop.f32.mrb[0].mxu0
        %v5044 = vadd.f32 %v294, %v5043
        %v5045 = vpop.f32.mrb[0].mxu0
        %5046 = vmatprep.mubr.f32.mxu0 0.0
        %5047 = vmatmul.mubr.f32.gmra.mrb[0].mxu0 %v4831
        %v5048 = vpop.f32.mrb[0].mxu0
        %v5049 = vadd.f32 %v294, %v5048
        %v5050 = vpop.f32.mrb[0].mxu0
        %5051 = vmatprep.mubr.f32.mxu0 0.0
        %5052 = vmatmul.mubr.f32.gmra.mrb[0].mxu0 %v4834
        %v5053 = vpop.f32.mrb[0].mxu0
        %v5054 = vadd.f32 %v294, %v5053
        %v5055 = vpop.f32.mrb[0].mxu0
        %5056 = vmatprep.mubr.f32.mxu0 0.0
        %5057 = vmatmul.mubr.f32.gmra.mrb[0].mxu0 %v4837
        %v5058 = vpop.f32.mrb[0].mxu0
        %v5059 = vadd.f32 %v294, %v5058
        %v5060 = vpop.f32.mrb[0].mxu0
        %5061 = vmatprep.mubr.f32.mxu0 0.0
        %5062 = vmatmul.mubr.f32.gmra.mrb[0].mxu0 %v4840
        %v5063 = vpop.f32.mrb[0].mxu0
        %v5064 = vadd.f32 %v294, %v5063
        %v5065 = vpop.f32.mrb[0].mxu0
        %5066 = vdwg.mxu0
        %v5067 = vmax.f32 %v4909, 0.0
        %v5068 = vmax.f32 %v4914, 0.0
        %v5069 = vmax.f32 %v4919, 0.0
        %v5070 = vmax.f32 %v4924, 0.0
        %v5071 = vmax.f32 %v4929, 0.0
        %v5072 = vmax.f32 %v4934, 0.0
        %v5073 = vmax.f32 %v4939, 0.0
        %v5074 = vmax.f32 %v4944, 0.0
        %v5075 = vmax.f32 %v4949, 0.0
        %v5076 = vmax.f32 %v4954, 0.0
        %v5077 = vmax.f32 %v4959, 0.0
        %v5078 = vmax.f32 %v4964, 0.0
        %v5079 = vmax.f32 %v4969, 0.0
        %v5080 = vmax.f32 %v4974, 0.0
        %v5081 = vmax.f32 %v4979, 0.0
        %v5082 = vmax.f32 %v4984, 0.0
        %v5083 = vmax.f32 %v4989, 0.0
        %v5084 = vmax.f32 %v4994, 0.0
        %v5085 = vmax.f32 %v4999, 0.0
        %v5086 = vmax.f32 %v5004, 0.0
        %v5087 = vmax.f32 %v5009, 0.0
        %v5088 = vmax.f32 %v5014, 0.0
        %v5089 = vmax.f32 %v5019, 0.0
        %v5090 = vmax.f32 %v5024, 0.0
        %v5091 = vmax.f32 %v5029, 0.0
        %v5092 = vmax.f32 %v5034, 0.0
        %v5093 = vmax.f32 %v5039, 0.0
        %v5094 = vmax.f32 %v5044, 0.0
        %v5095 = vmax.f32 %v5049, 0.0
        %v5096 = vmax.f32 %v5054, 0.0
        %v5097 = vmax.f32 %v5059, 0.0
        %v5098 = vmax.f32 %v5064, 0.0
        %v5099 = vadd.f32 %v5067, %v3210
        %v5100 = vadd.f32 %v5068, %v3211
        %v5101 = vadd.f32 %v5069, %v3212
        %v5102 = vadd.f32 %v5070, %v3213
        %v5103 = vadd.f32 %v5071, %v3214
        %v5104 = vadd.f32 %v5072, %v3215
        %v5105 = vadd.f32 %v5073, %v3216
        %v5106 = vadd.f32 %v5074, %v3217
        %v5107 = vadd.f32 %v5075, %v3218
        %v5108 = vadd.f32 %v5076, %v3219
        %v5109 = vadd.f32 %v5077, %v3220
        %v5110 = vadd.f32 %v5078, %v3221
        %v5111 = vadd.f32 %v5079, %v3222
        %v5112 = vadd.f32 %v5080, %v3223
        %v5113 = vadd.f32 %v5081, %v3224
        %v5114 = vadd.f32 %v5082, %v3225
        %v5115 = vadd.f32 %v5083, %v3226
        %v5116 = vadd.f32 %v5084, %v3227
        %v5117 = vadd.f32 %v5085, %v3228
        %v5118 = vadd.f32 %v5086, %v3229
        %v5119 = vadd.f32 %v5087, %v3230
        %v5120 = vadd.f32 %v5088, %v3231
        %v5121 = vadd.f32 %v5089, %v3232
        %v5122 = vadd.f32 %v5090, %v3233
        %v5123 = vadd.f32 %v5091, %v3234
        %v5124 = vadd.f32 %v5092, %v3235
        %v5125 = vadd.f32 %v5093, %v3236
        %v5126 = vadd.f32 %v5094, %v3237
        %v5127 = vadd.f32 %v5095, %v3238
        %v5128 = vadd.f32 %v5096, %v3239
        %v5129 = vadd.f32 %v5097, %v3240
        %v5130 = vadd.f32 %v5098, %v3241
        %v5131 = vlaneseq
        %v5132 = vshrl.u32 %v5131, 7
        %v5133 = vsub.s32 0, %v5132
        %v5134 = vrot.slane %v5099, %v5133
        %v5135 = vlaneseq
        %v5136 = vshrl.u32 %v5135, 7
        %v5137 = vsub.s32 0, %v5136
        %v5138 = vrot.slane %v5100, %v5137
        %v5139 = vlaneseq
        %v5140 = vshrl.u32 %v5139, 7
        %v5141 = vsub.s32 0, %v5140
        %v5142 = vrot.slane %v5101, %v5141
        %v5143 = vlaneseq
        %v5144 = vshrl.u32 %v5143, 7
        %v5145 = vsub.s32 0, %v5144
        %v5146 = vrot.slane %v5102, %v5145
        %v5147 = vlaneseq
        %v5148 = vshrl.u32 %v5147, 7
        %v5149 = vsub.s32 0, %v5148
        %v5150 = vrot.slane %v5103, %v5149
        %v5151 = vlaneseq
        %v5152 = vshrl.u32 %v5151, 7
        %v5153 = vsub.s32 0, %v5152
        %v5154 = vrot.slane %v5104, %v5153
        %v5155 = vlaneseq
        %v5156 = vshrl.u32 %v5155, 7
        %v5157 = vsub.s32 0, %v5156
        %v5158 = vrot.slane %v5105, %v5157
        %v5159 = vlaneseq
        %v5160 = vshrl.u32 %v5159, 7
        %v5161 = vsub.s32 0, %v5160
        %v5162 = vrot.slane %v5106, %v5161
        %v5163 = vlaneseq
        %v5164 = vshrl.u32 %v5163, 7
        %v5165 = vsub.s32 0, %v5164
        %v5166 = vrot.slane %v5107, %v5165
        %v5167 = vlaneseq
        %v5168 = vshrl.u32 %v5167, 7
        %v5169 = vsub.s32 0, %v5168
        %v5170 = vrot.slane %v5108, %v5169
        %v5171 = vlaneseq
        %v5172 = vshrl.u32 %v5171, 7
        %v5173 = vsub.s32 0, %v5172
        %v5174 = vrot.slane %v5109, %v5173
        %v5175 = vlaneseq
        %v5176 = vshrl.u32 %v5175, 7
        %v5177 = vsub.s32 0, %v5176
        %v5178 = vrot.slane %v5110, %v5177
        %v5179 = vlaneseq
        %v5180 = vshrl.u32 %v5179, 7
        %v5181 = vsub.s32 0, %v5180
        %v5182 = vrot.slane %v5111, %v5181
        %v5183 = vlaneseq
        %v5184 = vshrl.u32 %v5183, 7
        %v5185 = vsub.s32 0, %v5184
        %v5186 = vrot.slane %v5112, %v5185
        %v5187 = vlaneseq
        %v5188 = vshrl.u32 %v5187, 7
        %v5189 = vsub.s32 0, %v5188
        %v5190 = vrot.slane %v5113, %v5189
        %v5191 = vlaneseq
        %v5192 = vshrl.u32 %v5191, 7
        %v5193 = vsub.s32 0, %v5192
        %v5194 = vrot.slane %v5114, %v5193
        %v5195 = vlaneseq
        %v5196 = vshrl.u32 %v5195, 7
        %v5197 = vsub.s32 0, %v5196
        %v5198 = vrot.slane %v5115, %v5197
        %v5199 = vlaneseq
        %v5200 = vshrl.u32 %v5199, 7
        %v5201 = vsub.s32 0, %v5200
        %v5202 = vrot.slane %v5116, %v5201
        %v5203 = vlaneseq
        %v5204 = vshrl.u32 %v5203, 7
        %v5205 = vsub.s32 0, %v5204
        %v5206 = vrot.slane %v5117, %v5205
        %v5207 = vlaneseq
        %v5208 = vshrl.u32 %v5207, 7
        %v5209 = vsub.s32 0, %v5208
        %v5210 = vrot.slane %v5118, %v5209
        %v5211 = vlaneseq
        %v5212 = vshrl.u32 %v5211, 7
        %v5213 = vsub.s32 0, %v5212
        %v5214 = vrot.slane %v5119, %v5213
        %v5215 = vlaneseq
        %v5216 = vshrl.u32 %v5215, 7
        %v5217 = vsub.s32 0, %v5216
        %v5218 = vrot.slane %v5120, %v5217
        %v5219 = vlaneseq
        %v5220 = vshrl.u32 %v5219, 7
        %v5221 = vsub.s32 0, %v5220
        %v5222 = vrot.slane %v5121, %v5221
        %v5223 = vlaneseq
        %v5224 = vshrl.u32 %v5223, 7
        %v5225 = vsub.s32 0, %v5224
        %v5226 = vrot.slane %v5122, %v5225
        %v5227 = vlaneseq
        %v5228 = vshrl.u32 %v5227, 7
        %v5229 = vsub.s32 0, %v5228
        %v5230 = vrot.slane %v5123, %v5229
        %v5231 = vlaneseq
        %v5232 = vshrl.u32 %v5231, 7
        %v5233 = vsub.s32 0, %v5232
        %v5234 = vrot.slane %v5124, %v5233
        %v5235 = vlaneseq
        %v5236 = vshrl.u32 %v5235, 7
        %v5237 = vsub.s32 0, %v5236
        %v5238 = vrot.slane %v5125, %v5237
        %v5239 = vlaneseq
        %v5240 = vshrl.u32 %v5239, 7
        %v5241 = vsub.s32 0, %v5240
        %v5242 = vrot.slane %v5126, %v5241
        %v5243 = vlaneseq
        %v5244 = vshrl.u32 %v5243, 7
        %v5245 = vsub.s32 0, %v5244
        %v5246 = vrot.slane %v5127, %v5245
        %v5247 = vlaneseq
        %v5248 = vshrl.u32 %v5247, 7
        %v5249 = vsub.s32 0, %v5248
        %v5250 = vrot.slane %v5128, %v5249
        %v5251 = vlaneseq
        %v5252 = vshrl.u32 %v5251, 7
        %v5253 = vsub.s32 0, %v5252
        %v5254 = vrot.slane %v5129, %v5253
        %v5255 = vlaneseq
        %v5256 = vshrl.u32 %v5255, 7
        %v5257 = vsub.s32 0, %v5256
        %v5258 = vrot.slane %v5130, %v5257
        %v5259 = vmul.f32 %v299, %v5134
        %v5260 = vmul.f32 %v304, %v5138
        %v5261 = vmul.f32 %v309, %v5142
        %v5262 = vmul.f32 %v314, %v5146
        %v5263 = vmul.f32 %v319, %v5150
        %v5264 = vmul.f32 %v324, %v5154
        %v5265 = vmul.f32 %v329, %v5158
        %v5266 = vmul.f32 %v334, %v5162
        %v5267 = vmul.f32 %v339, %v5166
        %v5268 = vmul.f32 %v344, %v5170
        %v5269 = vmul.f32 %v349, %v5174
        %v5270 = vmul.f32 %v354, %v5178
        %v5271 = vmul.f32 %v359, %v5182
        %v5272 = vmul.f32 %v364, %v5186
        %v5273 = vmul.f32 %v369, %v5190
        %v5274 = vmul.f32 %v374, %v5194
        %v5275 = vmul.f32 %v379, %v5198
        %v5276 = vmul.f32 %v384, %v5202
        %v5277 = vmul.f32 %v389, %v5206
        %v5278 = vmul.f32 %v394, %v5210
        %v5279 = vmul.f32 %v399, %v5214
        %v5280 = vmul.f32 %v404, %v5218
        %v5281 = vmul.f32 %v409, %v5222
        %v5282 = vmul.f32 %v414, %v5226
        %v5283 = vmul.f32 %v419, %v5230
        %v5284 = vmul.f32 %v424, %v5234
        %v5285 = vmul.f32 %v429, %v5238
        %v5286 = vmul.f32 %v434, %v5242
        %v5287 = vmul.f32 %v439, %v5246
        %v5288 = vmul.f32 %v444, %v5250
        %v5289 = vmul.f32 %v449, %v5254
        %v5290 = vmul.f32 %v454, %v5258
        %v5291 = vlaneseq
        %v5292 = vshrl.u32 %v5291, 7
        %v5293 = vsub.s32 1, %v5292
        %v5294 = vrot.slane %v5099, %v5293
        %v5295 = vlaneseq
        %v5296 = vshrl.u32 %v5295, 7
        %v5297 = vsub.s32 1, %v5296
        %v5298 = vrot.slane %v5100, %v5297
        %v5299 = vlaneseq
        %v5300 = vshrl.u32 %v5299, 7
        %v5301 = vsub.s32 1, %v5300
        %v5302 = vrot.slane %v5101, %v5301
        %v5303 = vlaneseq
        %v5304 = vshrl.u32 %v5303, 7
        %v5305 = vsub.s32 1, %v5304
        %v5306 = vrot.slane %v5102, %v5305
        %v5307 = vlaneseq
        %v5308 = vshrl.u32 %v5307, 7
        %v5309 = vsub.s32 1, %v5308
        %v5310 = vrot.slane %v5103, %v5309
        %v5311 = vlaneseq
        %v5312 = vshrl.u32 %v5311, 7
        %v5313 = vsub.s32 1, %v5312
        %v5314 = vrot.slane %v5104, %v5313
        %v5315 = vlaneseq
        %v5316 = vshrl.u32 %v5315, 7
        %v5317 = vsub.s32 1, %v5316
        %v5318 = vrot.slane %v5105, %v5317
        %v5319 = vlaneseq
        %v5320 = vshrl.u32 %v5319, 7
        %v5321 = vsub.s32 1, %v5320
        %v5322 = vrot.slane %v5106, %v5321
        %v5323 = vlaneseq
        %v5324 = vshrl.u32 %v5323, 7
        %v5325 = vsub.s32 1, %v5324
        %v5326 = vrot.slane %v5107, %v5325
        %v5327 = vlaneseq
        %v5328 = vshrl.u32 %v5327, 7
        %v5329 = vsub.s32 1, %v5328
        %v5330 = vrot.slane %v5108, %v5329
        %v5331 = vlaneseq
        %v5332 = vshrl.u32 %v5331, 7
        %v5333 = vsub.s32 1, %v5332
        %v5334 = vrot.slane %v5109, %v5333
        %v5335 = vlaneseq
        %v5336 = vshrl.u32 %v5335, 7
        %v5337 = vsub.s32 1, %v5336
        %v5338 = vrot.slane %v5110, %v5337
        %v5339 = vlaneseq
        %v5340 = vshrl.u32 %v5339, 7
        %v5341 = vsub.s32 1, %v5340
        %v5342 = vrot.slane %v5111, %v5341
        %v5343 = vlaneseq
        %v5344 = vshrl.u32 %v5343, 7
        %v5345 = vsub.s32 1, %v5344
        %v5346 = vrot.slane %v5112, %v5345
        %v5347 = vlaneseq
        %v5348 = vshrl.u32 %v5347, 7
        %v5349 = vsub.s32 1, %v5348
        %v5350 = vrot.slane %v5113, %v5349
        %v5351 = vlaneseq
        %v5352 = vshrl.u32 %v5351, 7
        %v5353 = vsub.s32 1, %v5352
        %v5354 = vrot.slane %v5114, %v5353
        %v5355 = vlaneseq
        %v5356 = vshrl.u32 %v5355, 7
        %v5357 = vsub.s32 1, %v5356
        %v5358 = vrot.slane %v5115, %v5357
        %v5359 = vlaneseq
        %v5360 = vshrl.u32 %v5359, 7
        %v5361 = vsub.s32 1, %v5360
        %v5362 = vrot.slane %v5116, %v5361
        %v5363 = vlaneseq
        %v5364 = vshrl.u32 %v5363, 7
        %v5365 = vsub.s32 1, %v5364
        %v5366 = vrot.slane %v5117, %v5365
        %v5367 = vlaneseq
        %v5368 = vshrl.u32 %v5367, 7
        %v5369 = vsub.s32 1, %v5368
        %v5370 = vrot.slane %v5118, %v5369
        %v5371 = vlaneseq
        %v5372 = vshrl.u32 %v5371, 7
        %v5373 = vsub.s32 1, %v5372
        %v5374 = vrot.slane %v5119, %v5373
        %v5375 = vlaneseq
        %v5376 = vshrl.u32 %v5375, 7
        %v5377 = vsub.s32 1, %v5376
        %v5378 = vrot.slane %v5120, %v5377
        %v5379 = vlaneseq
        %v5380 = vshrl.u32 %v5379, 7
        %v5381 = vsub.s32 1, %v5380
        %v5382 = vrot.slane %v5121, %v5381
        %v5383 = vlaneseq
        %v5384 = vshrl.u32 %v5383, 7
        %v5385 = vsub.s32 1, %v5384
        %v5386 = vrot.slane %v5122, %v5385
        %v5387 = vlaneseq
        %v5388 = vshrl.u32 %v5387, 7
        %v5389 = vsub.s32 1, %v5388
        %v5390 = vrot.slane %v5123, %v5389
        %v5391 = vlaneseq
        %v5392 = vshrl.u32 %v5391, 7
        %v5393 = vsub.s32 1, %v5392
        %v5394 = vrot.slane %v5124, %v5393
        %v5395 = vlaneseq
        %v5396 = vshrl.u32 %v5395, 7
        %v5397 = vsub.s32 1, %v5396
        %v5398 = vrot.slane %v5125, %v5397
        %v5399 = vlaneseq
        %v5400 = vshrl.u32 %v5399, 7
        %v5401 = vsub.s32 1, %v5400
        %v5402 = vrot.slane %v5126, %v5401
        %v5403 = vlaneseq
        %v5404 = vshrl.u32 %v5403, 7
        %v5405 = vsub.s32 1, %v5404
        %v5406 = vrot.slane %v5127, %v5405
        %v5407 = vlaneseq
        %v5408 = vshrl.u32 %v5407, 7
        %v5409 = vsub.s32 1, %v5408
        %v5410 = vrot.slane %v5128, %v5409
        %v5411 = vlaneseq
        %v5412 = vshrl.u32 %v5411, 7
        %v5413 = vsub.s32 1, %v5412
        %v5414 = vrot.slane %v5129, %v5413
        %v5415 = vlaneseq
        %v5416 = vshrl.u32 %v5415, 7
        %v5417 = vsub.s32 1, %v5416
        %v5418 = vrot.slane %v5130, %v5417
        %v5419 = vmul.f32 %v618, %v5294
        %v5420 = vmul.f32 %v622, %v5298
        %v5421 = vmul.f32 %v626, %v5302
        %v5422 = vmul.f32 %v630, %v5306
        %v5423 = vmul.f32 %v634, %v5310
        %v5424 = vmul.f32 %v638, %v5314
        %v5425 = vmul.f32 %v642, %v5318
        %v5426 = vmul.f32 %v646, %v5322
        %v5427 = vmul.f32 %v650, %v5326
        %v5428 = vmul.f32 %v654, %v5330
        %v5429 = vmul.f32 %v658, %v5334
        %v5430 = vmul.f32 %v662, %v5338
        %v5431 = vmul.f32 %v666, %v5342
        %v5432 = vmul.f32 %v670, %v5346
        %v5433 = vmul.f32 %v674, %v5350
        %v5434 = vmul.f32 %v678, %v5354
        %v5435 = vmul.f32 %v682, %v5358
        %v5436 = vmul.f32 %v686, %v5362
        %v5437 = vmul.f32 %v690, %v5366
        %v5438 = vmul.f32 %v694, %v5370
        %v5439 = vmul.f32 %v698, %v5374
        %v5440 = vmul.f32 %v702, %v5378
        %v5441 = vmul.f32 %v706, %v5382
        %v5442 = vmul.f32 %v710, %v5386
        %v5443 = vmul.f32 %v714, %v5390
        %v5444 = vmul.f32 %v718, %v5394
        %v5445 = vmul.f32 %v722, %v5398
        %v5446 = vmul.f32 %v726, %v5402
        %v5447 = vmul.f32 %v730, %v5406
        %v5448 = vmul.f32 %v734, %v5410
        %v5449 = vmul.f32 %v738, %v5414
        %v5450 = vmul.f32 %v742, %v5418
        %v5451 = vadd.f32 %v5259, %v5419
        %v5452 = vadd.f32 %v5260, %v5420
        %v5453 = vadd.f32 %v5261, %v5421
        %v5454 = vadd.f32 %v5262, %v5422
        %v5455 = vadd.f32 %v5263, %v5423
        %v5456 = vadd.f32 %v5264, %v5424
        %v5457 = vadd.f32 %v5265, %v5425
        %v5458 = vadd.f32 %v5266, %v5426
        %v5459 = vadd.f32 %v5267, %v5427
        %v5460 = vadd.f32 %v5268, %v5428
        %v5461 = vadd.f32 %v5269, %v5429
        %v5462 = vadd.f32 %v5270, %v5430
        %v5463 = vadd.f32 %v5271, %v5431
        %v5464 = vadd.f32 %v5272, %v5432
        %v5465 = vadd.f32 %v5273, %v5433
        %v5466 = vadd.f32 %v5274, %v5434
        %v5467 = vadd.f32 %v5275, %v5435
        %v5468 = vadd.f32 %v5276, %v5436
        %v5469 = vadd.f32 %v5277, %v5437
        %v5470 = vadd.f32 %v5278, %v5438
        %v5471 = vadd.f32 %v5279, %v5439
        %v5472 = vadd.f32 %v5280, %v5440
        %v5473 = vadd.f32 %v5281, %v5441
        %v5474 = vadd.f32 %v5282, %v5442
        %v5475 = vadd.f32 %v5283, %v5443
        %v5476 = vadd.f32 %v5284, %v5444
        %v5477 = vadd.f32 %v5285, %v5445
        %v5478 = vadd.f32 %v5286, %v5446
        %v5479 = vadd.f32 %v5287, %v5447
        %v5480 = vadd.f32 %v5288, %v5448
        %v5481 = vadd.f32 %v5289, %v5449
        %v5482 = vadd.f32 %v5290, %v5450
        %v5483 = vlaneseq
        %v5484 = vshrl.u32 %v5483, 7
        %v5485 = vsub.s32 2, %v5484
        %v5486 = vrot.slane %v5099, %v5485
        %v5487 = vlaneseq
        %v5488 = vshrl.u32 %v5487, 7
        %v5489 = vsub.s32 2, %v5488
        %v5490 = vrot.slane %v5100, %v5489
        %v5491 = vlaneseq
        %v5492 = vshrl.u32 %v5491, 7
        %v5493 = vsub.s32 2, %v5492
        %v5494 = vrot.slane %v5101, %v5493
        %v5495 = vlaneseq
        %v5496 = vshrl.u32 %v5495, 7
        %v5497 = vsub.s32 2, %v5496
        %v5498 = vrot.slane %v5102, %v5497
        %v5499 = vlaneseq
        %v5500 = vshrl.u32 %v5499, 7
        %v5501 = vsub.s32 2, %v5500
        %v5502 = vrot.slane %v5103, %v5501
        %v5503 = vlaneseq
        %v5504 = vshrl.u32 %v5503, 7
        %v5505 = vsub.s32 2, %v5504
        %v5506 = vrot.slane %v5104, %v5505
        %v5507 = vlaneseq
        %v5508 = vshrl.u32 %v5507, 7
        %v5509 = vsub.s32 2, %v5508
        %v5510 = vrot.slane %v5105, %v5509
        %v5511 = vlaneseq
        %v5512 = vshrl.u32 %v5511, 7
        %v5513 = vsub.s32 2, %v5512
        %v5514 = vrot.slane %v5106, %v5513
        %v5515 = vlaneseq
        %v5516 = vshrl.u32 %v5515, 7
        %v5517 = vsub.s32 2, %v5516
        %v5518 = vrot.slane %v5107, %v5517
        %v5519 = vlaneseq
        %v5520 = vshrl.u32 %v5519, 7
        %v5521 = vsub.s32 2, %v5520
        %v5522 = vrot.slane %v5108, %v5521
        %v5523 = vlaneseq
        %v5524 = vshrl.u32 %v5523, 7
        %v5525 = vsub.s32 2, %v5524
        %v5526 = vrot.slane %v5109, %v5525
        %v5527 = vlaneseq
        %v5528 = vshrl.u32 %v5527, 7
        %v5529 = vsub.s32 2, %v5528
        %v5530 = vrot.slane %v5110, %v5529
        %v5531 = vlaneseq
        %v5532 = vshrl.u32 %v5531, 7
        %v5533 = vsub.s32 2, %v5532
        %v5534 = vrot.slane %v5111, %v5533
        %v5535 = vlaneseq
        %v5536 = vshrl.u32 %v5535, 7
        %v5537 = vsub.s32 2, %v5536
        %v5538 = vrot.slane %v5112, %v5537
        %v5539 = vlaneseq
        %v5540 = vshrl.u32 %v5539, 7
        %v5541 = vsub.s32 2, %v5540
        %v5542 = vrot.slane %v5113, %v5541
        %v5543 = vlaneseq
        %v5544 = vshrl.u32 %v5543, 7
        %v5545 = vsub.s32 2, %v5544
        %v5546 = vrot.slane %v5114, %v5545
        %v5547 = vlaneseq
        %v5548 = vshrl.u32 %v5547, 7
        %v5549 = vsub.s32 2, %v5548
        %v5550 = vrot.slane %v5115, %v5549
        %v5551 = vlaneseq
        %v5552 = vshrl.u32 %v5551, 7
        %v5553 = vsub.s32 2, %v5552
        %v5554 = vrot.slane %v5116, %v5553
        %v5555 = vlaneseq
        %v5556 = vshrl.u32 %v5555, 7
        %v5557 = vsub.s32 2, %v5556
        %v5558 = vrot.slane %v5117, %v5557
        %v5559 = vlaneseq
        %v5560 = vshrl.u32 %v5559, 7
        %v5561 = vsub.s32 2, %v5560
        %v5562 = vrot.slane %v5118, %v5561
        %v5563 = vlaneseq
        %v5564 = vshrl.u32 %v5563, 7
        %v5565 = vsub.s32 2, %v5564
        %v5566 = vrot.slane %v5119, %v5565
        %v5567 = vlaneseq
        %v5568 = vshrl.u32 %v5567, 7
        %v5569 = vsub.s32 2, %v5568
        %v5570 = vrot.slane %v5120, %v5569
        %v5571 = vlaneseq
        %v5572 = vshrl.u32 %v5571, 7
        %v5573 = vsub.s32 2, %v5572
        %v5574 = vrot.slane %v5121, %v5573
        %v5575 = vlaneseq
        %v5576 = vshrl.u32 %v5575, 7
        %v5577 = vsub.s32 2, %v5576
        %v5578 = vrot.slane %v5122, %v5577
        %v5579 = vlaneseq
        %v5580 = vshrl.u32 %v5579, 7
        %v5581 = vsub.s32 2, %v5580
        %v5582 = vrot.slane %v5123, %v5581
        %v5583 = vlaneseq
        %v5584 = vshrl.u32 %v5583, 7
        %v5585 = vsub.s32 2, %v5584
        %v5586 = vrot.slane %v5124, %v5585
        %v5587 = vlaneseq
        %v5588 = vshrl.u32 %v5587, 7
        %v5589 = vsub.s32 2, %v5588
        %v5590 = vrot.slane %v5125, %v5589
        %v5591 = vlaneseq
        %v5592 = vshrl.u32 %v5591, 7
        %v5593 = vsub.s32 2, %v5592
        %v5594 = vrot.slane %v5126, %v5593
        %v5595 = vlaneseq
        %v5596 = vshrl.u32 %v5595, 7
        %v5597 = vsub.s32 2, %v5596
        %v5598 = vrot.slane %v5127, %v5597
        %v5599 = vlaneseq
        %v5600 = vshrl.u32 %v5599, 7
        %v5601 = vsub.s32 2, %v5600
        %v5602 = vrot.slane %v5128, %v5601
        %v5603 = vlaneseq
        %v5604 = vshrl.u32 %v5603, 7
        %v5605 = vsub.s32 2, %v5604
        %v5606 = vrot.slane %v5129, %v5605
        %v5607 = vlaneseq
        %v5608 = vshrl.u32 %v5607, 7
        %v5609 = vsub.s32 2, %v5608
        %v5610 = vrot.slane %v5130, %v5609
        %v5611 = vmul.f32 %v938, %v5486
        %v5612 = vmul.f32 %v942, %v5490
        %v5613 = vmul.f32 %v946, %v5494
        %v5614 = vmul.f32 %v950, %v5498
        %v5615 = vmul.f32 %v954, %v5502
        %v5616 = vmul.f32 %v958, %v5506
        %v5617 = vmul.f32 %v962, %v5510
        %v5618 = vmul.f32 %v966, %v5514
        %v5619 = vmul.f32 %v970, %v5518
        %v5620 = vmul.f32 %v974, %v5522
        %v5621 = vmul.f32 %v978, %v5526
        %v5622 = vmul.f32 %v982, %v5530
        %v5623 = vmul.f32 %v986, %v5534
        %v5624 = vmul.f32 %v990, %v5538
        %v5625 = vmul.f32 %v994, %v5542
        %v5626 = vmul.f32 %v998, %v5546
        %v5627 = vmul.f32 %v1002, %v5550
        %v5628 = vmul.f32 %v1006, %v5554
        %v5629 = vmul.f32 %v1010, %v5558
        %v5630 = vmul.f32 %v1014, %v5562
        %v5631 = vmul.f32 %v1018, %v5566
        %v5632 = vmul.f32 %v1022, %v5570
        %v5633 = vmul.f32 %v1026, %v5574
        %v5634 = vmul.f32 %v1030, %v5578
        %v5635 = vmul.f32 %v1034, %v5582
        %v5636 = vmul.f32 %v1038, %v5586
        %v5637 = vmul.f32 %v1042, %v5590
        %v5638 = vmul.f32 %v1046, %v5594
        %v5639 = vmul.f32 %v1050, %v5598
        %v5640 = vmul.f32 %v1054, %v5602
        %v5641 = vmul.f32 %v1058, %v5606
        %v5642 = vmul.f32 %v1062, %v5610
        %v5643 = vadd.f32 %v5451, %v5611
        %v5644 = vadd.f32 %v5452, %v5612
        %v5645 = vadd.f32 %v5453, %v5613
        %v5646 = vadd.f32 %v5454, %v5614
        %v5647 = vadd.f32 %v5455, %v5615
        %v5648 = vadd.f32 %v5456, %v5616
        %v5649 = vadd.f32 %v5457, %v5617
        %v5650 = vadd.f32 %v5458, %v5618
        %v5651 = vadd.f32 %v5459, %v5619
        %v5652 = vadd.f32 %v5460, %v5620
        %v5653 = vadd.f32 %v5461, %v5621
        %v5654 = vadd.f32 %v5462, %v5622
        %v5655 = vadd.f32 %v5463, %v5623
        %v5656 = vadd.f32 %v5464, %v5624
        %v5657 = vadd.f32 %v5465, %v5625
        %v5658 = vadd.f32 %v5466, %v5626
        %v5659 = vadd.f32 %v5467, %v5627
        %v5660 = vadd.f32 %v5468, %v5628
        %v5661 = vadd.f32 %v5469, %v5629
        %v5662 = vadd.f32 %v5470, %v5630
        %v5663 = vadd.f32 %v5471, %v5631
        %v5664 = vadd.f32 %v5472, %v5632
        %v5665 = vadd.f32 %v5473, %v5633
        %v5666 = vadd.f32 %v5474, %v5634
        %v5667 = vadd.f32 %v5475, %v5635
        %v5668 = vadd.f32 %v5476, %v5636
        %v5669 = vadd.f32 %v5477, %v5637
        %v5670 = vadd.f32 %v5478, %v5638
        %v5671 = vadd.f32 %v5479, %v5639
        %v5672 = vadd.f32 %v5480, %v5640
        %v5673 = vadd.f32 %v5481, %v5641
        %v5674 = vadd.f32 %v5482, %v5642
        %v5675 = vlaneseq
        %v5676 = vshrl.u32 %v5675, 7
        %v5677 = vsub.s32 3, %v5676
        %v5678 = vrot.slane %v5099, %v5677
        %v5679 = vlaneseq
        %v5680 = vshrl.u32 %v5679, 7
        %v5681 = vsub.s32 3, %v5680
        %v5682 = vrot.slane %v5100, %v5681
        %v5683 = vlaneseq
        %v5684 = vshrl.u32 %v5683, 7
        %v5685 = vsub.s32 3, %v5684
        %v5686 = vrot.slane %v5101, %v5685
        %v5687 = vlaneseq
        %v5688 = vshrl.u32 %v5687, 7
        %v5689 = vsub.s32 3, %v5688
        %v5690 = vrot.slane %v5102, %v5689
        %v5691 = vlaneseq
        %v5692 = vshrl.u32 %v5691, 7
        %v5693 = vsub.s32 3, %v5692
        %v5694 = vrot.slane %v5103, %v5693
        %v5695 = vlaneseq
        %v5696 = vshrl.u32 %v5695, 7
        %v5697 = vsub.s32 3, %v5696
        %v5698 = vrot.slane %v5104, %v5697
        %v5699 = vlaneseq
        %v5700 = vshrl.u32 %v5699, 7
        %v5701 = vsub.s32 3, %v5700
        %v5702 = vrot.slane %v5105, %v5701
        %v5703 = vlaneseq
        %v5704 = vshrl.u32 %v5703, 7
        %v5705 = vsub.s32 3, %v5704
        %v5706 = vrot.slane %v5106, %v5705
        %v5707 = vlaneseq
        %v5708 = vshrl.u32 %v5707, 7
        %v5709 = vsub.s32 3, %v5708
        %v5710 = vrot.slane %v5107, %v5709
        %v5711 = vlaneseq
        %v5712 = vshrl.u32 %v5711, 7
        %v5713 = vsub.s32 3, %v5712
        %v5714 = vrot.slane %v5108, %v5713
        %v5715 = vlaneseq
        %v5716 = vshrl.u32 %v5715, 7
        %v5717 = vsub.s32 3, %v5716
        %v5718 = vrot.slane %v5109, %v5717
        %v5719 = vlaneseq
        %v5720 = vshrl.u32 %v5719, 7
        %v5721 = vsub.s32 3, %v5720
        %v5722 = vrot.slane %v5110, %v5721
        %v5723 = vlaneseq
        %v5724 = vshrl.u32 %v5723, 7
        %v5725 = vsub.s32 3, %v5724
        %v5726 = vrot.slane %v5111, %v5725
        %v5727 = vlaneseq
        %v5728 = vshrl.u32 %v5727, 7
        %v5729 = vsub.s32 3, %v5728
        %v5730 = vrot.slane %v5112, %v5729
        %v5731 = vlaneseq
        %v5732 = vshrl.u32 %v5731, 7
        %v5733 = vsub.s32 3, %v5732
        %v5734 = vrot.slane %v5113, %v5733
        %v5735 = vlaneseq
        %v5736 = vshrl.u32 %v5735, 7
        %v5737 = vsub.s32 3, %v5736
        %v5738 = vrot.slane %v5114, %v5737
        %v5739 = vlaneseq
        %v5740 = vshrl.u32 %v5739, 7
        %v5741 = vsub.s32 3, %v5740
        %v5742 = vrot.slane %v5115, %v5741
        %v5743 = vlaneseq
        %v5744 = vshrl.u32 %v5743, 7
        %v5745 = vsub.s32 3, %v5744
        %v5746 = vrot.slane %v5116, %v5745
        %v5747 = vlaneseq
        %v5748 = vshrl.u32 %v5747, 7
        %v5749 = vsub.s32 3, %v5748
        %v5750 = vrot.slane %v5117, %v5749
        %v5751 = vlaneseq
        %v5752 = vshrl.u32 %v5751, 7
        %v5753 = vsub.s32 3, %v5752
        %v5754 = vrot.slane %v5118, %v5753
        %v5755 = vlaneseq
        %v5756 = vshrl.u32 %v5755, 7
        %v5757 = vsub.s32 3, %v5756
        %v5758 = vrot.slane %v5119, %v5757
        %v5759 = vlaneseq
        %v5760 = vshrl.u32 %v5759, 7
        %v5761 = vsub.s32 3, %v5760
        %v5762 = vrot.slane %v5120, %v5761
        %v5763 = vlaneseq
        %v5764 = vshrl.u32 %v5763, 7
        %v5765 = vsub.s32 3, %v5764
        %v5766 = vrot.slane %v5121, %v5765
        %v5767 = vlaneseq
        %v5768 = vshrl.u32 %v5767, 7
        %v5769 = vsub.s32 3, %v5768
        %v5770 = vrot.slane %v5122, %v5769
        %v5771 = vlaneseq
        %v5772 = vshrl.u32 %v5771, 7
        %v5773 = vsub.s32 3, %v5772
        %v5774 = vrot.slane %v5123, %v5773
        %v5775 = vlaneseq
        %v5776 = vshrl.u32 %v5775, 7
        %v5777 = vsub.s32 3, %v5776
        %v5778 = vrot.slane %v5124, %v5777
        %v5779 = vlaneseq
        %v5780 = vshrl.u32 %v5779, 7
        %v5781 = vsub.s32 3, %v5780
        %v5782 = vrot.slane %v5125, %v5781
        %v5783 = vlaneseq
        %v5784 = vshrl.u32 %v5783, 7
        %v5785 = vsub.s32 3, %v5784
        %v5786 = vrot.slane %v5126, %v5785
        %v5787 = vlaneseq
        %v5788 = vshrl.u32 %v5787, 7
        %v5789 = vsub.s32 3, %v5788
        %v5790 = vrot.slane %v5127, %v5789
        %v5791 = vlaneseq
        %v5792 = vshrl.u32 %v5791, 7
        %v5793 = vsub.s32 3, %v5792
        %v5794 = vrot.slane %v5128, %v5793
        %v5795 = vlaneseq
        %v5796 = vshrl.u32 %v5795, 7
        %v5797 = vsub.s32 3, %v5796
        %v5798 = vrot.slane %v5129, %v5797
        %v5799 = vlaneseq
        %v5800 = vshrl.u32 %v5799, 7
        %v5801 = vsub.s32 3, %v5800
        %v5802 = vrot.slane %v5130, %v5801
        %v5803 = vmul.f32 %v1258, %v5678
        %v5804 = vmul.f32 %v1262, %v5682
        %v5805 = vmul.f32 %v1266, %v5686
        %v5806 = vmul.f32 %v1270, %v5690
        %v5807 = vmul.f32 %v1274, %v5694
        %v5808 = vmul.f32 %v1278, %v5698
        %v5809 = vmul.f32 %v1282, %v5702
        %v5810 = vmul.f32 %v1286, %v5706
        %v5811 = vmul.f32 %v1290, %v5710
        %v5812 = vmul.f32 %v1294, %v5714
        %v5813 = vmul.f32 %v1298, %v5718
        %v5814 = vmul.f32 %v1302, %v5722
        %v5815 = vmul.f32 %v1306, %v5726
        %v5816 = vmul.f32 %v1310, %v5730
        %v5817 = vmul.f32 %v1314, %v5734
        %v5818 = vmul.f32 %v1318, %v5738
        %v5819 = vmul.f32 %v1322, %v5742
        %v5820 = vmul.f32 %v1326, %v5746
        %v5821 = vmul.f32 %v1330, %v5750
        %v5822 = vmul.f32 %v1334, %v5754
        %v5823 = vmul.f32 %v1338, %v5758
        %v5824 = vmul.f32 %v1342, %v5762
        %v5825 = vmul.f32 %v1346, %v5766
        %v5826 = vmul.f32 %v1350, %v5770
        %v5827 = vmul.f32 %v1354, %v5774
        %v5828 = vmul.f32 %v1358, %v5778
        %v5829 = vmul.f32 %v1362, %v5782
        %v5830 = vmul.f32 %v1366, %v5786
        %v5831 = vmul.f32 %v1370, %v5790
        %v5832 = vmul.f32 %v1374, %v5794
        %v5833 = vmul.f32 %v1378, %v5798
        %v5834 = vmul.f32 %v1382, %v5802
        %v5835 = vadd.f32 %v5643, %v5803
        %v5836 = vadd.f32 %v5644, %v5804
        %v5837 = vadd.f32 %v5645, %v5805
        %v5838 = vadd.f32 %v5646, %v5806
        %v5839 = vadd.f32 %v5647, %v5807
        %v5840 = vadd.f32 %v5648, %v5808
        %v5841 = vadd.f32 %v5649, %v5809
        %v5842 = vadd.f32 %v5650, %v5810
        %v5843 = vadd.f32 %v5651, %v5811
        %v5844 = vadd.f32 %v5652, %v5812
        %v5845 = vadd.f32 %v5653, %v5813
        %v5846 = vadd.f32 %v5654, %v5814
        %v5847 = vadd.f32 %v5655, %v5815
        %v5848 = vadd.f32 %v5656, %v5816
        %v5849 = vadd.f32 %v5657, %v5817
        %v5850 = vadd.f32 %v5658, %v5818
        %v5851 = vadd.f32 %v5659, %v5819
        %v5852 = vadd.f32 %v5660, %v5820
        %v5853 = vadd.f32 %v5661, %v5821
        %v5854 = vadd.f32 %v5662, %v5822
        %v5855 = vadd.f32 %v5663, %v5823
        %v5856 = vadd.f32 %v5664, %v5824
        %v5857 = vadd.f32 %v5665, %v5825
        %v5858 = vadd.f32 %v5666, %v5826
        %v5859 = vadd.f32 %v5667, %v5827
        %v5860 = vadd.f32 %v5668, %v5828
        %v5861 = vadd.f32 %v5669, %v5829
        %v5862 = vadd.f32 %v5670, %v5830
        %v5863 = vadd.f32 %v5671, %v5831
        %v5864 = vadd.f32 %v5672, %v5832
        %v5865 = vadd.f32 %v5673, %v5833
        %v5866 = vadd.f32 %v5674, %v5834
        %v5867 = vlaneseq
        %v5868 = vshrl.u32 %v5867, 7
        %v5869 = vsub.s32 4, %v5868
        %v5870 = vrot.slane %v5099, %v5869
        %v5871 = vlaneseq
        %v5872 = vshrl.u32 %v5871, 7
        %v5873 = vsub.s32 4, %v5872
        %v5874 = vrot.slane %v5100, %v5873
        %v5875 = vlaneseq
        %v5876 = vshrl.u32 %v5875, 7
        %v5877 = vsub.s32 4, %v5876
        %v5878 = vrot.slane %v5101, %v5877
        %v5879 = vlaneseq
        %v5880 = vshrl.u32 %v5879, 7
        %v5881 = vsub.s32 4, %v5880
        %v5882 = vrot.slane %v5102, %v5881
        %v5883 = vlaneseq
        %v5884 = vshrl.u32 %v5883, 7
        %v5885 = vsub.s32 4, %v5884
        %v5886 = vrot.slane %v5103, %v5885
        %v5887 = vlaneseq
        %v5888 = vshrl.u32 %v5887, 7
        %v5889 = vsub.s32 4, %v5888
        %v5890 = vrot.slane %v5104, %v5889
        %v5891 = vlaneseq
        %v5892 = vshrl.u32 %v5891, 7
        %v5893 = vsub.s32 4, %v5892
        %v5894 = vrot.slane %v5105, %v5893
        %v5895 = vlaneseq
        %v5896 = vshrl.u32 %v5895, 7
        %v5897 = vsub.s32 4, %v5896
        %v5898 = vrot.slane %v5106, %v5897
        %v5899 = vlaneseq
        %v5900 = vshrl.u32 %v5899, 7
        %v5901 = vsub.s32 4, %v5900
        %v5902 = vrot.slane %v5107, %v5901
        %v5903 = vlaneseq
        %v5904 = vshrl.u32 %v5903, 7
        %v5905 = vsub.s32 4, %v5904
        %v5906 = vrot.slane %v5108, %v5905
        %v5907 = vlaneseq
        %v5908 = vshrl.u32 %v5907, 7
        %v5909 = vsub.s32 4, %v5908
        %v5910 = vrot.slane %v5109, %v5909
        %v5911 = vlaneseq
        %v5912 = vshrl.u32 %v5911, 7
        %v5913 = vsub.s32 4, %v5912
        %v5914 = vrot.slane %v5110, %v5913
        %v5915 = vlaneseq
        %v5916 = vshrl.u32 %v5915, 7
        %v5917 = vsub.s32 4, %v5916
        %v5918 = vrot.slane %v5111, %v5917
        %v5919 = vlaneseq
        %v5920 = vshrl.u32 %v5919, 7
        %v5921 = vsub.s32 4, %v5920
        %v5922 = vrot.slane %v5112, %v5921
        %v5923 = vlaneseq
        %v5924 = vshrl.u32 %v5923, 7
        %v5925 = vsub.s32 4, %v5924
        %v5926 = vrot.slane %v5113, %v5925
        %v5927 = vlaneseq
        %v5928 = vshrl.u32 %v5927, 7
        %v5929 = vsub.s32 4, %v5928
        %v5930 = vrot.slane %v5114, %v5929
        %v5931 = vlaneseq
        %v5932 = vshrl.u32 %v5931, 7
        %v5933 = vsub.s32 4, %v5932
        %v5934 = vrot.slane %v5115, %v5933
        %v5935 = vlaneseq
        %v5936 = vshrl.u32 %v5935, 7
        %v5937 = vsub.s32 4, %v5936
        %v5938 = vrot.slane %v5116, %v5937
        %v5939 = vlaneseq
        %v5940 = vshrl.u32 %v5939, 7
        %v5941 = vsub.s32 4, %v5940
        %v5942 = vrot.slane %v5117, %v5941
        %v5943 = vlaneseq
        %v5944 = vshrl.u32 %v5943, 7
        %v5945 = vsub.s32 4, %v5944
        %v5946 = vrot.slane %v5118, %v5945
        %v5947 = vlaneseq
        %v5948 = vshrl.u32 %v5947, 7
        %v5949 = vsub.s32 4, %v5948
        %v5950 = vrot.slane %v5119, %v5949
        %v5951 = vlaneseq
        %v5952 = vshrl.u32 %v5951, 7
        %v5953 = vsub.s32 4, %v5952
        %v5954 = vrot.slane %v5120, %v5953
        %v5955 = vlaneseq
        %v5956 = vshrl.u32 %v5955, 7
        %v5957 = vsub.s32 4, %v5956
        %v5958 = vrot.slane %v5121, %v5957
        %v5959 = vlaneseq
        %v5960 = vshrl.u32 %v5959, 7
        %v5961 = vsub.s32 4, %v5960
        %v5962 = vrot.slane %v5122, %v5961
        %v5963 = vlaneseq
        %v5964 = vshrl.u32 %v5963, 7
        %v5965 = vsub.s32 4, %v5964
        %v5966 = vrot.slane %v5123, %v5965
        %v5967 = vlaneseq
        %v5968 = vshrl.u32 %v5967, 7
        %v5969 = vsub.s32 4, %v5968
        %v5970 = vrot.slane %v5124, %v5969
        %v5971 = vlaneseq
        %v5972 = vshrl.u32 %v5971, 7
        %v5973 = vsub.s32 4, %v5972
        %v5974 = vrot.slane %v5125, %v5973
        %v5975 = vlaneseq
        %v5976 = vshrl.u32 %v5975, 7
        %v5977 = vsub.s32 4, %v5976
        %v5978 = vrot.slane %v5126, %v5977
        %v5979 = vlaneseq
        %v5980 = vshrl.u32 %v5979, 7
        %v5981 = vsub.s32 4, %v5980
        %v5982 = vrot.slane %v5127, %v5981
        %v5983 = vlaneseq
        %v5984 = vshrl.u32 %v5983, 7
        %v5985 = vsub.s32 4, %v5984
        %v5986 = vrot.slane %v5128, %v5985
        %v5987 = vlaneseq
        %v5988 = vshrl.u32 %v5987, 7
        %v5989 = vsub.s32 4, %v5988
        %v5990 = vrot.slane %v5129, %v5989
        %v5991 = vlaneseq
        %v5992 = vshrl.u32 %v5991, 7
        %v5993 = vsub.s32 4, %v5992
        %v5994 = vrot.slane %v5130, %v5993
        %v5995 = vmul.f32 %v1578, %v5870
        %v5996 = vmul.f32 %v1582, %v5874
        %v5997 = vmul.f32 %v1586, %v5878
        %v5998 = vmul.f32 %v1590, %v5882
        %v5999 = vmul.f32 %v1594, %v5886
        %v6000 = vmul.f32 %v1598, %v5890
        %v6001 = vmul.f32 %v1602, %v5894
        %v6002 = vmul.f32 %v1606, %v5898
        %v6003 = vmul.f32 %v1610, %v5902
        %v6004 = vmul.f32 %v1614, %v5906
        %v6005 = vmul.f32 %v1618, %v5910
        %v6006 = vmul.f32 %v1622, %v5914
        %v6007 = vmul.f32 %v1626, %v5918
        %v6008 = vmul.f32 %v1630, %v5922
        %v6009 = vmul.f32 %v1634, %v5926
        %v6010 = vmul.f32 %v1638, %v5930
        %v6011 = vmul.f32 %v1642, %v5934
        %v6012 = vmul.f32 %v1646, %v5938
        %v6013 = vmul.f32 %v1650, %v5942
        %v6014 = vmul.f32 %v1654, %v5946
        %v6015 = vmul.f32 %v1658, %v5950
        %v6016 = vmul.f32 %v1662, %v5954
        %v6017 = vmul.f32 %v1666, %v5958
        %v6018 = vmul.f32 %v1670, %v5962
        %v6019 = vmul.f32 %v1674, %v5966
        %v6020 = vmul.f32 %v1678, %v5970
        %v6021 = vmul.f32 %v1682, %v5974
        %v6022 = vmul.f32 %v1686, %v5978
        %v6023 = vmul.f32 %v1690, %v5982
        %v6024 = vmul.f32 %v1694, %v5986
        %v6025 = vmul.f32 %v1698, %v5990
        %v6026 = vmul.f32 %v1702, %v5994
        %v6027 = vadd.f32 %v5835, %v5995
        %v6028 = vadd.f32 %v5836, %v5996
        %v6029 = vadd.f32 %v5837, %v5997
        %v6030 = vadd.f32 %v5838, %v5998
        %v6031 = vadd.f32 %v5839, %v5999
        %v6032 = vadd.f32 %v5840, %v6000
        %v6033 = vadd.f32 %v5841, %v6001
        %v6034 = vadd.f32 %v5842, %v6002
        %v6035 = vadd.f32 %v5843, %v6003
        %v6036 = vadd.f32 %v5844, %v6004
        %v6037 = vadd.f32 %v5845, %v6005
        %v6038 = vadd.f32 %v5846, %v6006
        %v6039 = vadd.f32 %v5847, %v6007
        %v6040 = vadd.f32 %v5848, %v6008
        %v6041 = vadd.f32 %v5849, %v6009
        %v6042 = vadd.f32 %v5850, %v6010
        %v6043 = vadd.f32 %v5851, %v6011
        %v6044 = vadd.f32 %v5852, %v6012
        %v6045 = vadd.f32 %v5853, %v6013
        %v6046 = vadd.f32 %v5854, %v6014
        %v6047 = vadd.f32 %v5855, %v6015
        %v6048 = vadd.f32 %v5856, %v6016
        %v6049 = vadd.f32 %v5857, %v6017
        %v6050 = vadd.f32 %v5858, %v6018
        %v6051 = vadd.f32 %v5859, %v6019
        %v6052 = vadd.f32 %v5860, %v6020
        %v6053 = vadd.f32 %v5861, %v6021
        %v6054 = vadd.f32 %v5862, %v6022
        %v6055 = vadd.f32 %v5863, %v6023
        %v6056 = vadd.f32 %v5864, %v6024
        %v6057 = vadd.f32 %v5865, %v6025
        %v6058 = vadd.f32 %v5866, %v6026
        %v6059 = vlaneseq
        %v6060 = vshrl.u32 %v6059, 7
        %v6061 = vsub.s32 5, %v6060
        %v6062 = vrot.slane %v5099, %v6061
        %v6063 = vlaneseq
        %v6064 = vshrl.u32 %v6063, 7
        %v6065 = vsub.s32 5, %v6064
        %v6066 = vrot.slane %v5100, %v6065
        %v6067 = vlaneseq
        %v6068 = vshrl.u32 %v6067, 7
        %v6069 = vsub.s32 5, %v6068
        %v6070 = vrot.slane %v5101, %v6069
        %v6071 = vlaneseq
        %v6072 = vshrl.u32 %v6071, 7
        %v6073 = vsub.s32 5, %v6072
        %v6074 = vrot.slane %v5102, %v6073
        %v6075 = vlaneseq
        %v6076 = vshrl.u32 %v6075, 7
        %v6077 = vsub.s32 5, %v6076
        %v6078 = vrot.slane %v5103, %v6077
        %v6079 = vlaneseq
        %v6080 = vshrl.u32 %v6079, 7
        %v6081 = vsub.s32 5, %v6080
        %v6082 = vrot.slane %v5104, %v6081
        %v6083 = vlaneseq
        %v6084 = vshrl.u32 %v6083, 7
        %v6085 = vsub.s32 5, %v6084
        %v6086 = vrot.slane %v5105, %v6085
        %v6087 = vlaneseq
        %v6088 = vshrl.u32 %v6087, 7
        %v6089 = vsub.s32 5, %v6088
        %v6090 = vrot.slane %v5106, %v6089
        %v6091 = vlaneseq
        %v6092 = vshrl.u32 %v6091, 7
        %v6093 = vsub.s32 5, %v6092
        %v6094 = vrot.slane %v5107, %v6093
        %v6095 = vlaneseq
        %v6096 = vshrl.u32 %v6095, 7
        %v6097 = vsub.s32 5, %v6096
        %v6098 = vrot.slane %v5108, %v6097
        %v6099 = vlaneseq
        %v6100 = vshrl.u32 %v6099, 7
        %v6101 = vsub.s32 5, %v6100
        %v6102 = vrot.slane %v5109, %v6101
        %v6103 = vlaneseq
        %v6104 = vshrl.u32 %v6103, 7
        %v6105 = vsub.s32 5, %v6104
        %v6106 = vrot.slane %v5110, %v6105
        %v6107 = vlaneseq
        %v6108 = vshrl.u32 %v6107, 7
        %v6109 = vsub.s32 5, %v6108
        %v6110 = vrot.slane %v5111, %v6109
        %v6111 = vlaneseq
        %v6112 = vshrl.u32 %v6111, 7
        %v6113 = vsub.s32 5, %v6112
        %v6114 = vrot.slane %v5112, %v6113
        %v6115 = vlaneseq
        %v6116 = vshrl.u32 %v6115, 7
        %v6117 = vsub.s32 5, %v6116
        %v6118 = vrot.slane %v5113, %v6117
        %v6119 = vlaneseq
        %v6120 = vshrl.u32 %v6119, 7
        %v6121 = vsub.s32 5, %v6120
        %v6122 = vrot.slane %v5114, %v6121
        %v6123 = vlaneseq
        %v6124 = vshrl.u32 %v6123, 7
        %v6125 = vsub.s32 5, %v6124
        %v6126 = vrot.slane %v5115, %v6125
        %v6127 = vlaneseq
        %v6128 = vshrl.u32 %v6127, 7
        %v6129 = vsub.s32 5, %v6128
        %v6130 = vrot.slane %v5116, %v6129
        %v6131 = vlaneseq
        %v6132 = vshrl.u32 %v6131, 7
        %v6133 = vsub.s32 5, %v6132
        %v6134 = vrot.slane %v5117, %v6133
        %v6135 = vlaneseq
        %v6136 = vshrl.u32 %v6135, 7
        %v6137 = vsub.s32 5, %v6136
        %v6138 = vrot.slane %v5118, %v6137
        %v6139 = vlaneseq
        %v6140 = vshrl.u32 %v6139, 7
        %v6141 = vsub.s32 5, %v6140
        %v6142 = vrot.slane %v5119, %v6141
        %v6143 = vlaneseq
        %v6144 = vshrl.u32 %v6143, 7
        %v6145 = vsub.s32 5, %v6144
        %v6146 = vrot.slane %v5120, %v6145
        %v6147 = vlaneseq
        %v6148 = vshrl.u32 %v6147, 7
        %v6149 = vsub.s32 5, %v6148
        %v6150 = vrot.slane %v5121, %v6149
        %v6151 = vlaneseq
        %v6152 = vshrl.u32 %v6151, 7
        %v6153 = vsub.s32 5, %v6152
        %v6154 = vrot.slane %v5122, %v6153
        %v6155 = vlaneseq
        %v6156 = vshrl.u32 %v6155, 7
        %v6157 = vsub.s32 5, %v6156
        %v6158 = vrot.slane %v5123, %v6157
        %v6159 = vlaneseq
        %v6160 = vshrl.u32 %v6159, 7
        %v6161 = vsub.s32 5, %v6160
        %v6162 = vrot.slane %v5124, %v6161
        %v6163 = vlaneseq
        %v6164 = vshrl.u32 %v6163, 7
        %v6165 = vsub.s32 5, %v6164
        %v6166 = vrot.slane %v5125, %v6165
        %v6167 = vlaneseq
        %v6168 = vshrl.u32 %v6167, 7
        %v6169 = vsub.s32 5, %v6168
        %v6170 = vrot.slane %v5126, %v6169
        %v6171 = vlaneseq
        %v6172 = vshrl.u32 %v6171, 7
        %v6173 = vsub.s32 5, %v6172
        %v6174 = vrot.slane %v5127, %v6173
        %v6175 = vlaneseq
        %v6176 = vshrl.u32 %v6175, 7
        %v6177 = vsub.s32 5, %v6176
        %v6178 = vrot.slane %v5128, %v6177
        %v6179 = vlaneseq
        %v6180 = vshrl.u32 %v6179, 7
        %v6181 = vsub.s32 5, %v6180
        %v6182 = vrot.slane %v5129, %v6181
        %v6183 = vlaneseq
        %v6184 = vshrl.u32 %v6183, 7
        %v6185 = vsub.s32 5, %v6184
        %v6186 = vrot.slane %v5130, %v6185
        %v6187 = vmul.f32 %v1898, %v6062
        %v6188 = vmul.f32 %v1902, %v6066
        %v6189 = vmul.f32 %v1906, %v6070
        %v6190 = vmul.f32 %v1910, %v6074
        %v6191 = vmul.f32 %v1914, %v6078
        %v6192 = vmul.f32 %v1918, %v6082
        %v6193 = vmul.f32 %v1922, %v6086
        %v6194 = vmul.f32 %v1926, %v6090
        %v6195 = vmul.f32 %v1930, %v6094
        %v6196 = vmul.f32 %v1934, %v6098
        %v6197 = vmul.f32 %v1938, %v6102
        %v6198 = vmul.f32 %v1942, %v6106
        %v6199 = vmul.f32 %v1946, %v6110
        %v6200 = vmul.f32 %v1950, %v6114
        %v6201 = vmul.f32 %v1954, %v6118
        %v6202 = vmul.f32 %v1958, %v6122
        %v6203 = vmul.f32 %v1962, %v6126
        %v6204 = vmul.f32 %v1966, %v6130
        %v6205 = vmul.f32 %v1970, %v6134
        %v6206 = vmul.f32 %v1974, %v6138
        %v6207 = vmul.f32 %v1978, %v6142
        %v6208 = vmul.f32 %v1982, %v6146
        %v6209 = vmul.f32 %v1986, %v6150
        %v6210 = vmul.f32 %v1990, %v6154
        %v6211 = vmul.f32 %v1994, %v6158
        %v6212 = vmul.f32 %v1998, %v6162
        %v6213 = vmul.f32 %v2002, %v6166
        %v6214 = vmul.f32 %v2006, %v6170
        %v6215 = vmul.f32 %v2010, %v6174
        %v6216 = vmul.f32 %v2014, %v6178
        %v6217 = vmul.f32 %v2018, %v6182
        %v6218 = vmul.f32 %v2022, %v6186
        %v6219 = vadd.f32 %v6027, %v6187
        %v6220 = vadd.f32 %v6028, %v6188
        %v6221 = vadd.f32 %v6029, %v6189
        %v6222 = vadd.f32 %v6030, %v6190
        %v6223 = vadd.f32 %v6031, %v6191
        %v6224 = vadd.f32 %v6032, %v6192
        %v6225 = vadd.f32 %v6033, %v6193
        %v6226 = vadd.f32 %v6034, %v6194
        %v6227 = vadd.f32 %v6035, %v6195
        %v6228 = vadd.f32 %v6036, %v6196
        %v6229 = vadd.f32 %v6037, %v6197
        %v6230 = vadd.f32 %v6038, %v6198
        %v6231 = vadd.f32 %v6039, %v6199
        %v6232 = vadd.f32 %v6040, %v6200
        %v6233 = vadd.f32 %v6041, %v6201
        %v6234 = vadd.f32 %v6042, %v6202
        %v6235 = vadd.f32 %v6043, %v6203
        %v6236 = vadd.f32 %v6044, %v6204
        %v6237 = vadd.f32 %v6045, %v6205
        %v6238 = vadd.f32 %v6046, %v6206
        %v6239 = vadd.f32 %v6047, %v6207
        %v6240 = vadd.f32 %v6048, %v6208
        %v6241 = vadd.f32 %v6049, %v6209
        %v6242 = vadd.f32 %v6050, %v6210
        %v6243 = vadd.f32 %v6051, %v6211
        %v6244 = vadd.f32 %v6052, %v6212
        %v6245 = vadd.f32 %v6053, %v6213
        %v6246 = vadd.f32 %v6054, %v6214
        %v6247 = vadd.f32 %v6055, %v6215
        %v6248 = vadd.f32 %v6056, %v6216
        %v6249 = vadd.f32 %v6057, %v6217
        %v6250 = vadd.f32 %v6058, %v6218
        %v6251 = vlaneseq
        %v6252 = vshrl.u32 %v6251, 7
        %v6253 = vsub.s32 6, %v6252
        %v6254 = vrot.slane %v5099, %v6253
        %v6255 = vlaneseq
        %v6256 = vshrl.u32 %v6255, 7
        %v6257 = vsub.s32 6, %v6256
        %v6258 = vrot.slane %v5100, %v6257
        %v6259 = vlaneseq
        %v6260 = vshrl.u32 %v6259, 7
        %v6261 = vsub.s32 6, %v6260
        %v6262 = vrot.slane %v5101, %v6261
        %v6263 = vlaneseq
        %v6264 = vshrl.u32 %v6263, 7
        %v6265 = vsub.s32 6, %v6264
        %v6266 = vrot.slane %v5102, %v6265
        %v6267 = vlaneseq
        %v6268 = vshrl.u32 %v6267, 7
        %v6269 = vsub.s32 6, %v6268
        %v6270 = vrot.slane %v5103, %v6269
        %v6271 = vlaneseq
        %v6272 = vshrl.u32 %v6271, 7
        %v6273 = vsub.s32 6, %v6272
        %v6274 = vrot.slane %v5104, %v6273
        %v6275 = vlaneseq
        %v6276 = vshrl.u32 %v6275, 7
        %v6277 = vsub.s32 6, %v6276
        %v6278 = vrot.slane %v5105, %v6277
        %v6279 = vlaneseq
        %v6280 = vshrl.u32 %v6279, 7
        %v6281 = vsub.s32 6, %v6280
        %v6282 = vrot.slane %v5106, %v6281
        %v6283 = vlaneseq
        %v6284 = vshrl.u32 %v6283, 7
        %v6285 = vsub.s32 6, %v6284
        %v6286 = vrot.slane %v5107, %v6285
        %v6287 = vlaneseq
        %v6288 = vshrl.u32 %v6287, 7
        %v6289 = vsub.s32 6, %v6288
        %v6290 = vrot.slane %v5108, %v6289
        %v6291 = vlaneseq
        %v6292 = vshrl.u32 %v6291, 7
        %v6293 = vsub.s32 6, %v6292
        %v6294 = vrot.slane %v5109, %v6293
        %v6295 = vlaneseq
        %v6296 = vshrl.u32 %v6295, 7
        %v6297 = vsub.s32 6, %v6296
        %v6298 = vrot.slane %v5110, %v6297
        %v6299 = vlaneseq
        %v6300 = vshrl.u32 %v6299, 7
        %v6301 = vsub.s32 6, %v6300
        %v6302 = vrot.slane %v5111, %v6301
        %v6303 = vlaneseq
        %v6304 = vshrl.u32 %v6303, 7
        %v6305 = vsub.s32 6, %v6304
        %v6306 = vrot.slane %v5112, %v6305
        %v6307 = vlaneseq
        %v6308 = vshrl.u32 %v6307, 7
        %v6309 = vsub.s32 6, %v6308
        %v6310 = vrot.slane %v5113, %v6309
        %v6311 = vlaneseq
        %v6312 = vshrl.u32 %v6311, 7
        %v6313 = vsub.s32 6, %v6312
        %v6314 = vrot.slane %v5114, %v6313
        %v6315 = vlaneseq
        %v6316 = vshrl.u32 %v6315, 7
        %v6317 = vsub.s32 6, %v6316
        %v6318 = vrot.slane %v5115, %v6317
        %v6319 = vlaneseq
        %v6320 = vshrl.u32 %v6319, 7
        %v6321 = vsub.s32 6, %v6320
        %v6322 = vrot.slane %v5116, %v6321
        %v6323 = vlaneseq
        %v6324 = vshrl.u32 %v6323, 7
        %v6325 = vsub.s32 6, %v6324
        %v6326 = vrot.slane %v5117, %v6325
        %v6327 = vlaneseq
        %v6328 = vshrl.u32 %v6327, 7
        %v6329 = vsub.s32 6, %v6328
        %v6330 = vrot.slane %v5118, %v6329
        %v6331 = vlaneseq
        %v6332 = vshrl.u32 %v6331, 7
        %v6333 = vsub.s32 6, %v6332
        %v6334 = vrot.slane %v5119, %v6333
        %v6335 = vlaneseq
        %v6336 = vshrl.u32 %v6335, 7
        %v6337 = vsub.s32 6, %v6336
        %v6338 = vrot.slane %v5120, %v6337
        %v6339 = vlaneseq
        %v6340 = vshrl.u32 %v6339, 7
        %v6341 = vsub.s32 6, %v6340
        %v6342 = vrot.slane %v5121, %v6341
        %v6343 = vlaneseq
        %v6344 = vshrl.u32 %v6343, 7
        %v6345 = vsub.s32 6, %v6344
        %v6346 = vrot.slane %v5122, %v6345
        %v6347 = vlaneseq
        %v6348 = vshrl.u32 %v6347, 7
        %v6349 = vsub.s32 6, %v6348
        %v6350 = vrot.slane %v5123, %v6349
        %v6351 = vlaneseq
        %v6352 = vshrl.u32 %v6351, 7
        %v6353 = vsub.s32 6, %v6352
        %v6354 = vrot.slane %v5124, %v6353
        %v6355 = vlaneseq
        %v6356 = vshrl.u32 %v6355, 7
        %v6357 = vsub.s32 6, %v6356
        %v6358 = vrot.slane %v5125, %v6357
        %v6359 = vlaneseq
        %v6360 = vshrl.u32 %v6359, 7
        %v6361 = vsub.s32 6, %v6360
        %v6362 = vrot.slane %v5126, %v6361
        %v6363 = vlaneseq
        %v6364 = vshrl.u32 %v6363, 7
        %v6365 = vsub.s32 6, %v6364
        %v6366 = vrot.slane %v5127, %v6365
        %v6367 = vlaneseq
        %v6368 = vshrl.u32 %v6367, 7
        %v6369 = vsub.s32 6, %v6368
        %v6370 = vrot.slane %v5128, %v6369
        %v6371 = vlaneseq
        %v6372 = vshrl.u32 %v6371, 7
        %v6373 = vsub.s32 6, %v6372
        %v6374 = vrot.slane %v5129, %v6373
        %v6375 = vlaneseq
        %v6376 = vshrl.u32 %v6375, 7
        %v6377 = vsub.s32 6, %v6376
        %v6378 = vrot.slane %v5130, %v6377
        %v6379 = vmul.f32 %v2218, %v6254
        %v6380 = vmul.f32 %v2222, %v6258
        %v6381 = vmul.f32 %v2226, %v6262
        %v6382 = vmul.f32 %v2230, %v6266
        %v6383 = vmul.f32 %v2234, %v6270
        %v6384 = vmul.f32 %v2238, %v6274
        %v6385 = vmul.f32 %v2242, %v6278
        %v6386 = vmul.f32 %v2246, %v6282
        %v6387 = vmul.f32 %v2250, %v6286
        %v6388 = vmul.f32 %v2254, %v6290
        %v6389 = vmul.f32 %v2258, %v6294
        %v6390 = vmul.f32 %v2262, %v6298
        %v6391 = vmul.f32 %v2266, %v6302
        %v6392 = vmul.f32 %v2270, %v6306
        %v6393 = vmul.f32 %v2274, %v6310
        %v6394 = vmul.f32 %v2278, %v6314
        %v6395 = vmul.f32 %v2282, %v6318
        %v6396 = vmul.f32 %v2286, %v6322
        %v6397 = vmul.f32 %v2290, %v6326
        %v6398 = vmul.f32 %v2294, %v6330
        %v6399 = vmul.f32 %v2298, %v6334
        %v6400 = vmul.f32 %v2302, %v6338
        %v6401 = vmul.f32 %v2306, %v6342
        %v6402 = vmul.f32 %v2310, %v6346
        %v6403 = vmul.f32 %v2314, %v6350
        %v6404 = vmul.f32 %v2318, %v6354
        %v6405 = vmul.f32 %v2322, %v6358
        %v6406 = vmul.f32 %v2326, %v6362
        %v6407 = vmul.f32 %v2330, %v6366
        %v6408 = vmul.f32 %v2334, %v6370
        %v6409 = vmul.f32 %v2338, %v6374
        %v6410 = vmul.f32 %v2342, %v6378
        %v6411 = vadd.f32 %v6219, %v6379
        %v6412 = vadd.f32 %v6220, %v6380
        %v6413 = vadd.f32 %v6221, %v6381
        %v6414 = vadd.f32 %v6222, %v6382
        %v6415 = vadd.f32 %v6223, %v6383
        %v6416 = vadd.f32 %v6224, %v6384
        %v6417 = vadd.f32 %v6225, %v6385
        %v6418 = vadd.f32 %v6226, %v6386
        %v6419 = vadd.f32 %v6227, %v6387
        %v6420 = vadd.f32 %v6228, %v6388
        %v6421 = vadd.f32 %v6229, %v6389
        %v6422 = vadd.f32 %v6230, %v6390
        %v6423 = vadd.f32 %v6231, %v6391
        %v6424 = vadd.f32 %v6232, %v6392
        %v6425 = vadd.f32 %v6233, %v6393
        %v6426 = vadd.f32 %v6234, %v6394
        %v6427 = vadd.f32 %v6235, %v6395
        %v6428 = vadd.f32 %v6236, %v6396
        %v6429 = vadd.f32 %v6237, %v6397
        %v6430 = vadd.f32 %v6238, %v6398
        %v6431 = vadd.f32 %v6239, %v6399
        %v6432 = vadd.f32 %v6240, %v6400
        %v6433 = vadd.f32 %v6241, %v6401
        %v6434 = vadd.f32 %v6242, %v6402
        %v6435 = vadd.f32 %v6243, %v6403
        %v6436 = vadd.f32 %v6244, %v6404
        %v6437 = vadd.f32 %v6245, %v6405
        %v6438 = vadd.f32 %v6246, %v6406
        %v6439 = vadd.f32 %v6247, %v6407
        %v6440 = vadd.f32 %v6248, %v6408
        %v6441 = vadd.f32 %v6249, %v6409
        %v6442 = vadd.f32 %v6250, %v6410
        %v6443 = vlaneseq
        %v6444 = vshrl.u32 %v6443, 7
        %v6445 = vsub.s32 7, %v6444
        %v6446 = vrot.slane %v5099, %v6445
        %v6447 = vlaneseq
        %v6448 = vshrl.u32 %v6447, 7
        %v6449 = vsub.s32 7, %v6448
        %v6450 = vrot.slane %v5100, %v6449
        %v6451 = vlaneseq
        %v6452 = vshrl.u32 %v6451, 7
        %v6453 = vsub.s32 7, %v6452
        %v6454 = vrot.slane %v5101, %v6453
        %v6455 = vlaneseq
        %v6456 = vshrl.u32 %v6455, 7
        %v6457 = vsub.s32 7, %v6456
        %v6458 = vrot.slane %v5102, %v6457
        %v6459 = vlaneseq
        %v6460 = vshrl.u32 %v6459, 7
        %v6461 = vsub.s32 7, %v6460
        %v6462 = vrot.slane %v5103, %v6461
        %v6463 = vlaneseq
        %v6464 = vshrl.u32 %v6463, 7
        %v6465 = vsub.s32 7, %v6464
        %v6466 = vrot.slane %v5104, %v6465
        %v6467 = vlaneseq
        %v6468 = vshrl.u32 %v6467, 7
        %v6469 = vsub.s32 7, %v6468
        %v6470 = vrot.slane %v5105, %v6469
        %v6471 = vlaneseq
        %v6472 = vshrl.u32 %v6471, 7
        %v6473 = vsub.s32 7, %v6472
        %v6474 = vrot.slane %v5106, %v6473
        %v6475 = vlaneseq
        %v6476 = vshrl.u32 %v6475, 7
        %v6477 = vsub.s32 7, %v6476
        %v6478 = vrot.slane %v5107, %v6477
        %v6479 = vlaneseq
        %v6480 = vshrl.u32 %v6479, 7
        %v6481 = vsub.s32 7, %v6480
        %v6482 = vrot.slane %v5108, %v6481
        %v6483 = vlaneseq
        %v6484 = vshrl.u32 %v6483, 7
        %v6485 = vsub.s32 7, %v6484
        %v6486 = vrot.slane %v5109, %v6485
        %v6487 = vlaneseq
        %v6488 = vshrl.u32 %v6487, 7
        %v6489 = vsub.s32 7, %v6488
        %v6490 = vrot.slane %v5110, %v6489
        %v6491 = vlaneseq
        %v6492 = vshrl.u32 %v6491, 7
        %v6493 = vsub.s32 7, %v6492
        %v6494 = vrot.slane %v5111, %v6493
        %v6495 = vlaneseq
        %v6496 = vshrl.u32 %v6495, 7
        %v6497 = vsub.s32 7, %v6496
        %v6498 = vrot.slane %v5112, %v6497
        %v6499 = vlaneseq
        %v6500 = vshrl.u32 %v6499, 7
        %v6501 = vsub.s32 7, %v6500
        %v6502 = vrot.slane %v5113, %v6501
        %v6503 = vlaneseq
        %v6504 = vshrl.u32 %v6503, 7
        %v6505 = vsub.s32 7, %v6504
        %v6506 = vrot.slane %v5114, %v6505
        %v6507 = vlaneseq
        %v6508 = vshrl.u32 %v6507, 7
        %v6509 = vsub.s32 7, %v6508
        %v6510 = vrot.slane %v5115, %v6509
        %v6511 = vlaneseq
        %v6512 = vshrl.u32 %v6511, 7
        %v6513 = vsub.s32 7, %v6512
        %v6514 = vrot.slane %v5116, %v6513
        %v6515 = vlaneseq
        %v6516 = vshrl.u32 %v6515, 7
        %v6517 = vsub.s32 7, %v6516
        %v6518 = vrot.slane %v5117, %v6517
        %v6519 = vlaneseq
        %v6520 = vshrl.u32 %v6519, 7
        %v6521 = vsub.s32 7, %v6520
        %v6522 = vrot.slane %v5118, %v6521
        %v6523 = vlaneseq
        %v6524 = vshrl.u32 %v6523, 7
        %v6525 = vsub.s32 7, %v6524
        %v6526 = vrot.slane %v5119, %v6525
        %v6527 = vlaneseq
        %v6528 = vshrl.u32 %v6527, 7
        %v6529 = vsub.s32 7, %v6528
        %v6530 = vrot.slane %v5120, %v6529
        %v6531 = vlaneseq
        %v6532 = vshrl.u32 %v6531, 7
        %v6533 = vsub.s32 7, %v6532
        %v6534 = vrot.slane %v5121, %v6533
        %v6535 = vlaneseq
        %v6536 = vshrl.u32 %v6535, 7
        %v6537 = vsub.s32 7, %v6536
        %v6538 = vrot.slane %v5122, %v6537
        %v6539 = vlaneseq
        %v6540 = vshrl.u32 %v6539, 7
        %v6541 = vsub.s32 7, %v6540
        %v6542 = vrot.slane %v5123, %v6541
        %v6543 = vlaneseq
        %v6544 = vshrl.u32 %v6543, 7
        %v6545 = vsub.s32 7, %v6544
        %v6546 = vrot.slane %v5124, %v6545
        %v6547 = vlaneseq
        %v6548 = vshrl.u32 %v6547, 7
        %v6549 = vsub.s32 7, %v6548
        %v6550 = vrot.slane %v5125, %v6549
        %v6551 = vlaneseq
        %v6552 = vshrl.u32 %v6551, 7
        %v6553 = vsub.s32 7, %v6552
        %v6554 = vrot.slane %v5126, %v6553
        %v6555 = vlaneseq
        %v6556 = vshrl.u32 %v6555, 7
        %v6557 = vsub.s32 7, %v6556
        %v6558 = vrot.slane %v5127, %v6557
        %v6559 = vlaneseq
        %v6560 = vshrl.u32 %v6559, 7
        %v6561 = vsub.s32 7, %v6560
        %v6562 = vrot.slane %v5128, %v6561
        %v6563 = vlaneseq
        %v6564 = vshrl.u32 %v6563, 7
        %v6565 = vsub.s32 7, %v6564
        %v6566 = vrot.slane %v5129, %v6565
        %v6567 = vlaneseq
        %v6568 = vshrl.u32 %v6567, 7
        %v6569 = vsub.s32 7, %v6568
        %v6570 = vrot.slane %v5130, %v6569
        %v6571 = vmul.f32 %v2538, %v6446
        %v6572 = vmul.f32 %v2542, %v6450
        %v6573 = vmul.f32 %v2546, %v6454
        %v6574 = vmul.f32 %v2550, %v6458
        %v6575 = vmul.f32 %v2554, %v6462
        %v6576 = vmul.f32 %v2558, %v6466
        %v6577 = vmul.f32 %v2562, %v6470
        %v6578 = vmul.f32 %v2566, %v6474
        %v6579 = vmul.f32 %v2570, %v6478
        %v6580 = vmul.f32 %v2574, %v6482
        %v6581 = vmul.f32 %v2578, %v6486
        %v6582 = vmul.f32 %v2582, %v6490
        %v6583 = vmul.f32 %v2586, %v6494
        %v6584 = vmul.f32 %v2590, %v6498
        %v6585 = vmul.f32 %v2594, %v6502
        %v6586 = vmul.f32 %v2598, %v6506
        %v6587 = vmul.f32 %v2602, %v6510
        %v6588 = vmul.f32 %v2606, %v6514
        %v6589 = vmul.f32 %v2610, %v6518
        %v6590 = vmul.f32 %v2614, %v6522
        %v6591 = vmul.f32 %v2618, %v6526
        %v6592 = vmul.f32 %v2622, %v6530
        %v6593 = vmul.f32 %v2626, %v6534
        %v6594 = vmul.f32 %v2630, %v6538
        %v6595 = vmul.f32 %v2634, %v6542
        %v6596 = vmul.f32 %v2638, %v6546
        %v6597 = vmul.f32 %v2642, %v6550
        %v6598 = vmul.f32 %v2646, %v6554
        %v6599 = vmul.f32 %v2650, %v6558
        %v6600 = vmul.f32 %v2654, %v6562
        %v6601 = vmul.f32 %v2658, %v6566
        %v6602 = vmul.f32 %v2662, %v6570
        %v6603 = vadd.f32 %v6411, %v6571
        %v6604 = vadd.f32 %v6412, %v6572
        %v6605 = vadd.f32 %v6413, %v6573
        %v6606 = vadd.f32 %v6414, %v6574
        %v6607 = vadd.f32 %v6415, %v6575
        %v6608 = vadd.f32 %v6416, %v6576
        %v6609 = vadd.f32 %v6417, %v6577
        %v6610 = vadd.f32 %v6418, %v6578
        %v6611 = vadd.f32 %v6419, %v6579
        %v6612 = vadd.f32 %v6420, %v6580
        %v6613 = vadd.f32 %v6421, %v6581
        %v6614 = vadd.f32 %v6422, %v6582
        %v6615 = vadd.f32 %v6423, %v6583
        %v6616 = vadd.f32 %v6424, %v6584
        %v6617 = vadd.f32 %v6425, %v6585
        %v6618 = vadd.f32 %v6426, %v6586
        %v6619 = vadd.f32 %v6427, %v6587
        %v6620 = vadd.f32 %v6428, %v6588
        %v6621 = vadd.f32 %v6429, %v6589
        %v6622 = vadd.f32 %v6430, %v6590
        %v6623 = vadd.f32 %v6431, %v6591
        %v6624 = vadd.f32 %v6432, %v6592
        %v6625 = vadd.f32 %v6433, %v6593
        %v6626 = vadd.f32 %v6434, %v6594
        %v6627 = vadd.f32 %v6435, %v6595
        %v6628 = vadd.f32 %v6436, %v6596
        %v6629 = vadd.f32 %v6437, %v6597
        %v6630 = vadd.f32 %v6438, %v6598
        %v6631 = vadd.f32 %v6439, %v6599
        %v6632 = vadd.f32 %v6440, %v6600
        %v6633 = vadd.f32 %v6441, %v6601
        %v6634 = vadd.f32 %v6442, %v6602
        %v6636 = vsel %vm2856, %v6603, 0
        %v6639 = vsel %vm2856, %v6604, 0
        %v6642 = vsel %vm2856, %v6605, 0
        %v6645 = vsel %vm2856, %v6606, 0
        %v6648 = vsel %vm2856, %v6607, 0
        %v6651 = vsel %vm2856, %v6608, 0
        %v6654 = vsel %vm2856, %v6609, 0
        %v6657 = vsel %vm2856, %v6610, 0
        %v6660 = vsel %vm2856, %v6611, 0
        %v6663 = vsel %vm2856, %v6612, 0
        %v6666 = vsel %vm2856, %v6613, 0
        %v6669 = vsel %vm2856, %v6614, 0
        %v6672 = vsel %vm2856, %v6615, 0
        %v6675 = vsel %vm2856, %v6616, 0
        %v6678 = vsel %vm2856, %v6617, 0
        %v6681 = vsel %vm2856, %v6618, 0
        %v6684 = vsel %vm2856, %v6619, 0
        %v6687 = vsel %vm2856, %v6620, 0
        %v6690 = vsel %vm2856, %v6621, 0
        %v6693 = vsel %vm2856, %v6622, 0
        %v6696 = vsel %vm2856, %v6623, 0
        %v6699 = vsel %vm2856, %v6624, 0
        %v6702 = vsel %vm2856, %v6625, 0
        %v6705 = vsel %vm2856, %v6626, 0
        %v6708 = vsel %vm2856, %v6627, 0
        %v6711 = vsel %vm2856, %v6628, 0
        %v6714 = vsel %vm2856, %v6629, 0
        %v6717 = vsel %vm2856, %v6630, 0
        %v6720 = vsel %vm2856, %v6631, 0
        %v6723 = vsel %vm2856, %v6632, 0
        %v6726 = vsel %vm2856, %v6633, 0
        %v6729 = vsel %vm2856, %v6634, 0
        %6731 = vmatprep.subr.mxu0 0.0
        %6732 = vmatpush1.msra.mxu0 %v285
        %6733 = vmatprep.subr.mxu0 0.0
        %6734 = vmatpush1.msra.mxu0 %v286
        %6735 = vmatprep.subr.mxu0 0.0
        %6736 = vmatpush1.msra.mxu0 %v287
        %6737 = vmatprep.subr.mxu0 0.0
        %6738 = vmatpush1.msra.mxu0 %v288
        %6739 = vmatprep.subr.mxu0 0.0
        %6740 = vmatpush1.msra.mxu0 0.0
        %6741 = vmatprep.subr.mxu0 0.0
        %6742 = vmatpush1.msra.mxu0 0.0
        %6743 = vmatprep.subr.mxu0 0.0
        %6744 = vmatpush1.msra.mxu0 0.0
        %6745 = vmatprep.subr.mxu0 0.0
        %6746 = vmatpush1.msra.mxu0 0.0
        %6747 = vmatprep.subr.mxu0 0.0
        %6748 = vmatpush1.msra.mxu0 0.0
        %6749 = vmatprep.subr.mxu0 0.0
        %6750 = vmatpush1.msra.mxu0 0.0
        %6751 = vmatprep.subr.mxu0 0.0
        %6752 = vmatpush1.msra.mxu0 0.0
        %6753 = vmatprep.subr.mxu0 0.0
        %6754 = vmatpush1.msra.mxu0 0.0
        %6755 = vmatprep.subr.mxu0 0.0
        %6756 = vmatpush1.msra.mxu0 0.0
        %6757 = vmatprep.subr.mxu0 0.0
        %6758 = vmatpush1.msra.mxu0 0.0
        %6759 = vmatprep.subr.mxu0 0.0
        %6760 = vmatpush1.msra.mxu0 0.0
        %6761 = vmatprep.subr.mxu0 0.0
        %6762 = vmatpush1.msra.mxu0 0.0
        %6763 = vmatprep.subr.mxu0 0.0
        %6764 = vmatpush1.msra.mxu0 0.0
        %6765 = vmatprep.subr.mxu0 0.0
        %6766 = vmatpush1.msra.mxu0 0.0
        %6767 = vmatprep.subr.mxu0 0.0
        %6768 = vmatpush1.msra.mxu0 0.0
        %6769 = vmatprep.subr.mxu0 0.0
        %6770 = vmatpush1.msra.mxu0 0.0
        %6771 = vmatprep.subr.mxu0 0.0
        %6772 = vmatpush1.msra.mxu0 0.0
        %6773 = vmatprep.subr.mxu0 0.0
        %6774 = vmatpush1.msra.mxu0 0.0
        %6775 = vmatprep.subr.mxu0 0.0
        %6776 = vmatpush1.msra.mxu0 0.0
        %6777 = vmatprep.subr.mxu0 0.0
        %6778 = vmatpush1.msra.mxu0 0.0
        %6779 = vmatprep.subr.mxu0 0.0
        %6780 = vmatpush1.msra.mxu0 0.0
        %6781 = vmatprep.subr.mxu0 0.0
        %6782 = vmatpush1.msra.mxu0 0.0
        %6783 = vmatprep.subr.mxu0 0.0
        %6784 = vmatpush1.msra.mxu0 0.0
        %6785 = vmatprep.subr.mxu0 0.0
        %6786 = vmatpush1.msra.mxu0 0.0
        %6787 = vmatprep.subr.mxu0 0.0
        %6788 = vmatpush1.msra.mxu0 0.0
        %6789 = vmatprep.subr.mxu0 0.0
        %6790 = vmatpush1.msra.mxu0 0.0
        %6791 = vmatprep.subr.mxu0 0.0
        %6792 = vmatpush1.msra.mxu0 0.0
        %6793 = vmatprep.subr.mxu0 0.0
        %6794 = vmatpush1.msra.mxu0 0.0
        %6795 = vmatprep.mubr.f32.mxu0 0.0
        %6796 = vmatmul.mubr.f32.gmra.mrb[0].mxu0 %v6636
        %v6797 = vpop.f32.mrb[0].mxu0
        %v6798 = vadd.f32 %v294, %v6797
        %v6799 = vpop.f32.mrb[0].mxu0
        %6800 = vmatprep.mubr.f32.mxu0 0.0
        %6801 = vmatmul.mubr.f32.gmra.mrb[0].mxu0 %v6639
        %v6802 = vpop.f32.mrb[0].mxu0
        %v6803 = vadd.f32 %v294, %v6802
        %v6804 = vpop.f32.mrb[0].mxu0
        %6805 = vmatprep.mubr.f32.mxu0 0.0
        %6806 = vmatmul.mubr.f32.gmra.mrb[0].mxu0 %v6642
        %v6807 = vpop.f32.mrb[0].mxu0
        %v6808 = vadd.f32 %v294, %v6807
        %v6809 = vpop.f32.mrb[0].mxu0
        %6810 = vmatprep.mubr.f32.mxu0 0.0
        %6811 = vmatmul.mubr.f32.gmra.mrb[0].mxu0 %v6645
        %v6812 = vpop.f32.mrb[0].mxu0
        %v6813 = vadd.f32 %v294, %v6812
        %v6814 = vpop.f32.mrb[0].mxu0
        %6815 = vmatprep.mubr.f32.mxu0 0.0
        %6816 = vmatmul.mubr.f32.gmra.mrb[0].mxu0 %v6648
        %v6817 = vpop.f32.mrb[0].mxu0
        %v6818 = vadd.f32 %v294, %v6817
        %v6819 = vpop.f32.mrb[0].mxu0
        %6820 = vmatprep.mubr.f32.mxu0 0.0
        %6821 = vmatmul.mubr.f32.gmra.mrb[0].mxu0 %v6651
        %v6822 = vpop.f32.mrb[0].mxu0
        %v6823 = vadd.f32 %v294, %v6822
        %v6824 = vpop.f32.mrb[0].mxu0
        %6825 = vmatprep.mubr.f32.mxu0 0.0
        %6826 = vmatmul.mubr.f32.gmra.mrb[0].mxu0 %v6654
        %v6827 = vpop.f32.mrb[0].mxu0
        %v6828 = vadd.f32 %v294, %v6827
        %v6829 = vpop.f32.mrb[0].mxu0
        %6830 = vmatprep.mubr.f32.mxu0 0.0
        %6831 = vmatmul.mubr.f32.gmra.mrb[0].mxu0 %v6657
        %v6832 = vpop.f32.mrb[0].mxu0
        %v6833 = vadd.f32 %v294, %v6832
        %v6834 = vpop.f32.mrb[0].mxu0
        %6835 = vmatprep.mubr.f32.mxu0 0.0
        %6836 = vmatmul.mubr.f32.gmra.mrb[0].mxu0 %v6660
        %v6837 = vpop.f32.mrb[0].mxu0
        %v6838 = vadd.f32 %v294, %v6837
        %v6839 = vpop.f32.mrb[0].mxu0
        %6840 = vmatprep.mubr.f32.mxu0 0.0
        %6841 = vmatmul.mubr.f32.gmra.mrb[0].mxu0 %v6663
        %v6842 = vpop.f32.mrb[0].mxu0
        %v6843 = vadd.f32 %v294, %v6842
        %v6844 = vpop.f32.mrb[0].mxu0
        %6845 = vmatprep.mubr.f32.mxu0 0.0
        %6846 = vmatmul.mubr.f32.gmra.mrb[0].mxu0 %v6666
        %v6847 = vpop.f32.mrb[0].mxu0
        %v6848 = vadd.f32 %v294, %v6847
        %v6849 = vpop.f32.mrb[0].mxu0
        %6850 = vmatprep.mubr.f32.mxu0 0.0
        %6851 = vmatmul.mubr.f32.gmra.mrb[0].mxu0 %v6669
        %v6852 = vpop.f32.mrb[0].mxu0
        %v6853 = vadd.f32 %v294, %v6852
        %v6854 = vpop.f32.mrb[0].mxu0
        %6855 = vmatprep.mubr.f32.mxu0 0.0
        %6856 = vmatmul.mubr.f32.gmra.mrb[0].mxu0 %v6672
        %v6857 = vpop.f32.mrb[0].mxu0
        %v6858 = vadd.f32 %v294, %v6857
        %v6859 = vpop.f32.mrb[0].mxu0
        %6860 = vmatprep.mubr.f32.mxu0 0.0
        %6861 = vmatmul.mubr.f32.gmra.mrb[0].mxu0 %v6675
        %v6862 = vpop.f32.mrb[0].mxu0
        %v6863 = vadd.f32 %v294, %v6862
        %v6864 = vpop.f32.mrb[0].mxu0
        %6865 = vmatprep.mubr.f32.mxu0 0.0
        %6866 = vmatmul.mubr.f32.gmra.mrb[0].mxu0 %v6678
        %v6867 = vpop.f32.mrb[0].mxu0
        %v6868 = vadd.f32 %v294, %v6867
        %v6869 = vpop.f32.mrb[0].mxu0
        %6870 = vmatprep.mubr.f32.mxu0 0.0
        %6871 = vmatmul.mubr.f32.gmra.mrb[0].mxu0 %v6681
        %v6872 = vpop.f32.mrb[0].mxu0
        %v6873 = vadd.f32 %v294, %v6872
        %v6874 = vpop.f32.mrb[0].mxu0
        %6875 = vmatprep.mubr.f32.mxu0 0.0
        %6876 = vmatmul.mubr.f32.gmra.mrb[0].mxu0 %v6684
        %v6877 = vpop.f32.mrb[0].mxu0
        %v6878 = vadd.f32 %v294, %v6877
        %v6879 = vpop.f32.mrb[0].mxu0
        %6880 = vmatprep.mubr.f32.mxu0 0.0
        %6881 = vmatmul.mubr.f32.gmra.mrb[0].mxu0 %v6687
        %v6882 = vpop.f32.mrb[0].mxu0
        %v6883 = vadd.f32 %v294, %v6882
        %v6884 = vpop.f32.mrb[0].mxu0
        %6885 = vmatprep.mubr.f32.mxu0 0.0
        %6886 = vmatmul.mubr.f32.gmra.mrb[0].mxu0 %v6690
        %v6887 = vpop.f32.mrb[0].mxu0
        %v6888 = vadd.f32 %v294, %v6887
        %v6889 = vpop.f32.mrb[0].mxu0
        %6890 = vmatprep.mubr.f32.mxu0 0.0
        %6891 = vmatmul.mubr.f32.gmra.mrb[0].mxu0 %v6693
        %v6892 = vpop.f32.mrb[0].mxu0
        %v6893 = vadd.f32 %v294, %v6892
        %v6894 = vpop.f32.mrb[0].mxu0
        %6895 = vmatprep.mubr.f32.mxu0 0.0
        %6896 = vmatmul.mubr.f32.gmra.mrb[0].mxu0 %v6696
        %v6897 = vpop.f32.mrb[0].mxu0
        %v6898 = vadd.f32 %v294, %v6897
        %v6899 = vpop.f32.mrb[0].mxu0
        %6900 = vmatprep.mubr.f32.mxu0 0.0
        %6901 = vmatmul.mubr.f32.gmra.mrb[0].mxu0 %v6699
        %v6902 = vpop.f32.mrb[0].mxu0
        %v6903 = vadd.f32 %v294, %v6902
        %v6904 = vpop.f32.mrb[0].mxu0
        %6905 = vmatprep.mubr.f32.mxu0 0.0
        %6906 = vmatmul.mubr.f32.gmra.mrb[0].mxu0 %v6702
        %v6907 = vpop.f32.mrb[0].mxu0
        %v6908 = vadd.f32 %v294, %v6907
        %v6909 = vpop.f32.mrb[0].mxu0
        %6910 = vmatprep.mubr.f32.mxu0 0.0
        %6911 = vmatmul.mubr.f32.gmra.mrb[0].mxu0 %v6705
        %v6912 = vpop.f32.mrb[0].mxu0
        %v6913 = vadd.f32 %v294, %v6912
        %v6914 = vpop.f32.mrb[0].mxu0
        %6915 = vmatprep.mubr.f32.mxu0 0.0
        %6916 = vmatmul.mubr.f32.gmra.mrb[0].mxu0 %v6708
        %v6917 = vpop.f32.mrb[0].mxu0
        %v6918 = vadd.f32 %v294, %v6917
        %v6919 = vpop.f32.mrb[0].mxu0
        %6920 = vmatprep.mubr.f32.mxu0 0.0
        %6921 = vmatmul.mubr.f32.gmra.mrb[0].mxu0 %v6711
        %v6922 = vpop.f32.mrb[0].mxu0
        %v6923 = vadd.f32 %v294, %v6922
        %v6924 = vpop.f32.mrb[0].mxu0
        %6925 = vmatprep.mubr.f32.mxu0 0.0
        %6926 = vmatmul.mubr.f32.gmra.mrb[0].mxu0 %v6714
        %v6927 = vpop.f32.mrb[0].mxu0
        %v6928 = vadd.f32 %v294, %v6927
        %v6929 = vpop.f32.mrb[0].mxu0
        %6930 = vmatprep.mubr.f32.mxu0 0.0
        %6931 = vmatmul.mubr.f32.gmra.mrb[0].mxu0 %v6717
        %v6932 = vpop.f32.mrb[0].mxu0
        %v6933 = vadd.f32 %v294, %v6932
        %v6934 = vpop.f32.mrb[0].mxu0
        %6935 = vmatprep.mubr.f32.mxu0 0.0
        %6936 = vmatmul.mubr.f32.gmra.mrb[0].mxu0 %v6720
        %v6937 = vpop.f32.mrb[0].mxu0
        %v6938 = vadd.f32 %v294, %v6937
        %v6939 = vpop.f32.mrb[0].mxu0
        %6940 = vmatprep.mubr.f32.mxu0 0.0
        %6941 = vmatmul.mubr.f32.gmra.mrb[0].mxu0 %v6723
        %v6942 = vpop.f32.mrb[0].mxu0
        %v6943 = vadd.f32 %v294, %v6942
        %v6944 = vpop.f32.mrb[0].mxu0
        %6945 = vmatprep.mubr.f32.mxu0 0.0
        %6946 = vmatmul.mubr.f32.gmra.mrb[0].mxu0 %v6726
        %v6947 = vpop.f32.mrb[0].mxu0
        %v6948 = vadd.f32 %v294, %v6947
        %v6949 = vpop.f32.mrb[0].mxu0
        %6950 = vmatprep.mubr.f32.mxu0 0.0
        %6951 = vmatmul.mubr.f32.gmra.mrb[0].mxu0 %v6729
        %v6952 = vpop.f32.mrb[0].mxu0
        %v6953 = vadd.f32 %v294, %v6952
        %v6954 = vpop.f32.mrb[0].mxu0
        %6955 = vdwg.mxu0
        %v6956 = vmax.f32 %v6798, 0.0
        %v6957 = vmax.f32 %v6803, 0.0
        %v6958 = vmax.f32 %v6808, 0.0
        %v6959 = vmax.f32 %v6813, 0.0
        %v6960 = vmax.f32 %v6818, 0.0
        %v6961 = vmax.f32 %v6823, 0.0
        %v6962 = vmax.f32 %v6828, 0.0
        %v6963 = vmax.f32 %v6833, 0.0
        %v6964 = vmax.f32 %v6838, 0.0
        %v6965 = vmax.f32 %v6843, 0.0
        %v6966 = vmax.f32 %v6848, 0.0
        %v6967 = vmax.f32 %v6853, 0.0
        %v6968 = vmax.f32 %v6858, 0.0
        %v6969 = vmax.f32 %v6863, 0.0
        %v6970 = vmax.f32 %v6868, 0.0
        %v6971 = vmax.f32 %v6873, 0.0
        %v6972 = vmax.f32 %v6878, 0.0
        %v6973 = vmax.f32 %v6883, 0.0
        %v6974 = vmax.f32 %v6888, 0.0
        %v6975 = vmax.f32 %v6893, 0.0
        %v6976 = vmax.f32 %v6898, 0.0
        %v6977 = vmax.f32 %v6903, 0.0
        %v6978 = vmax.f32 %v6908, 0.0
        %v6979 = vmax.f32 %v6913, 0.0
        %v6980 = vmax.f32 %v6918, 0.0
        %v6981 = vmax.f32 %v6923, 0.0
        %v6982 = vmax.f32 %v6928, 0.0
        %v6983 = vmax.f32 %v6933, 0.0
        %v6984 = vmax.f32 %v6938, 0.0
        %v6985 = vmax.f32 %v6943, 0.0
        %v6986 = vmax.f32 %v6948, 0.0
        %v6987 = vmax.f32 %v6953, 0.0
        %v6988 = vadd.f32 %v6956, %v5099
        %v6989 = vadd.f32 %v6957, %v5100
        %v6990 = vadd.f32 %v6958, %v5101
        %v6991 = vadd.f32 %v6959, %v5102
        %v6992 = vadd.f32 %v6960, %v5103
        %v6993 = vadd.f32 %v6961, %v5104
        %v6994 = vadd.f32 %v6962, %v5105
        %v6995 = vadd.f32 %v6963, %v5106
        %v6996 = vadd.f32 %v6964, %v5107
        %v6997 = vadd.f32 %v6965, %v5108
        %v6998 = vadd.f32 %v6966, %v5109
        %v6999 = vadd.f32 %v6967, %v5110
        %v7000 = vadd.f32 %v6968, %v5111
        %v7001 = vadd.f32 %v6969, %v5112
        %v7002 = vadd.f32 %v6970, %v5113
        %v7003 = vadd.f32 %v6971, %v5114
        %v7004 = vadd.f32 %v6972, %v5115
        %v7005 = vadd.f32 %v6973, %v5116
        %v7006 = vadd.f32 %v6974, %v5117
        %v7007 = vadd.f32 %v6975, %v5118
        %v7008 = vadd.f32 %v6976, %v5119
        %v7009 = vadd.f32 %v6977, %v5120
        %v7010 = vadd.f32 %v6978, %v5121
        %v7011 = vadd.f32 %v6979, %v5122
        %v7012 = vadd.f32 %v6980, %v5123
        %v7013 = vadd.f32 %v6981, %v5124
        %v7014 = vadd.f32 %v6982, %v5125
        %v7015 = vadd.f32 %v6983, %v5126
        %v7016 = vadd.f32 %v6984, %v5127
        %v7017 = vadd.f32 %v6985, %v5128
        %v7018 = vadd.f32 %v6986, %v5129
        %v7019 = vadd.f32 %v6987, %v5130
        %7052 = vrot.lane.b32.xlu0 %v3210, 32
        %v7053 = vpop.permute.xlu0 %7052
        %7054 = vrot.lane.b32.xlu0 %v3211, 32
        %v7055 = vpop.permute.xlu0 %7054
        %7056 = vrot.lane.b32.xlu0 %v3212, 32
        %v7057 = vpop.permute.xlu0 %7056
        %7058 = vrot.lane.b32.xlu0 %v3213, 32
        %v7059 = vpop.permute.xlu0 %7058
        %7060 = vrot.lane.b32.xlu0 %v3214, 32
        %v7061 = vpop.permute.xlu0 %7060
        %7062 = vrot.lane.b32.xlu0 %v3215, 32
        %v7063 = vpop.permute.xlu0 %7062
        %7064 = vrot.lane.b32.xlu0 %v3216, 32
        %v7065 = vpop.permute.xlu0 %7064
        %7066 = vrot.lane.b32.xlu0 %v3217, 32
        %v7067 = vpop.permute.xlu0 %7066
        %7068 = vrot.lane.b32.xlu0 %v3218, 32
        %v7069 = vpop.permute.xlu0 %7068
        %7070 = vrot.lane.b32.xlu0 %v3219, 32
        %v7071 = vpop.permute.xlu0 %7070
        %7072 = vrot.lane.b32.xlu0 %v3220, 32
        %v7073 = vpop.permute.xlu0 %7072
        %7074 = vrot.lane.b32.xlu0 %v3221, 32
        %v7075 = vpop.permute.xlu0 %7074
        %7076 = vrot.lane.b32.xlu0 %v3222, 32
        %v7077 = vpop.permute.xlu0 %7076
        %7078 = vrot.lane.b32.xlu0 %v3223, 32
        %v7079 = vpop.permute.xlu0 %7078
        %7080 = vrot.lane.b32.xlu0 %v3224, 32
        %v7081 = vpop.permute.xlu0 %7080
        %7082 = vrot.lane.b32.xlu0 %v3225, 32
        %v7083 = vpop.permute.xlu0 %7082
        %7084 = vrot.lane.b32.xlu0 %v3226, 32
        %v7085 = vpop.permute.xlu0 %7084
        %7086 = vrot.lane.b32.xlu0 %v3227, 32
        %v7087 = vpop.permute.xlu0 %7086
        %7088 = vrot.lane.b32.xlu0 %v3228, 32
        %v7089 = vpop.permute.xlu0 %7088
        %7090 = vrot.lane.b32.xlu0 %v3229, 32
        %v7091 = vpop.permute.xlu0 %7090
        %7092 = vrot.lane.b32.xlu0 %v3230, 32
        %v7093 = vpop.permute.xlu0 %7092
        %7094 = vrot.lane.b32.xlu0 %v3231, 32
        %v7095 = vpop.permute.xlu0 %7094
        %7096 = vrot.lane.b32.xlu0 %v3232, 32
        %v7097 = vpop.permute.xlu0 %7096
        %7098 = vrot.lane.b32.xlu0 %v3233, 32
        %v7099 = vpop.permute.xlu0 %7098
        %7100 = vrot.lane.b32.xlu0 %v3234, 32
        %v7101 = vpop.permute.xlu0 %7100
        %7102 = vrot.lane.b32.xlu0 %v3235, 32
        %v7103 = vpop.permute.xlu0 %7102
        %7104 = vrot.lane.b32.xlu0 %v3236, 32
        %v7105 = vpop.permute.xlu0 %7104
        %7106 = vrot.lane.b32.xlu0 %v3237, 32
        %v7107 = vpop.permute.xlu0 %7106
        %7108 = vrot.lane.b32.xlu0 %v3238, 32
        %v7109 = vpop.permute.xlu0 %7108
        %7110 = vrot.lane.b32.xlu0 %v3239, 32
        %v7111 = vpop.permute.xlu0 %7110
        %7112 = vrot.lane.b32.xlu0 %v3240, 32
        %v7113 = vpop.permute.xlu0 %7112
        %7114 = vrot.lane.b32.xlu0 %v3241, 32
        %v7115 = vpop.permute.xlu0 %7114
        %7180 = vrot.lane.b32.xlu0 %v5099, 64
        %v7181 = vpop.permute.xlu0 %7180
        %7182 = vrot.lane.b32.xlu0 %v5100, 64
        %v7183 = vpop.permute.xlu0 %7182
        %7184 = vrot.lane.b32.xlu0 %v5101, 64
        %v7185 = vpop.permute.xlu0 %7184
        %7186 = vrot.lane.b32.xlu0 %v5102, 64
        %v7187 = vpop.permute.xlu0 %7186
        %7188 = vrot.lane.b32.xlu0 %v5103, 64
        %v7189 = vpop.permute.xlu0 %7188
        %7190 = vrot.lane.b32.xlu0 %v5104, 64
        %v7191 = vpop.permute.xlu0 %7190
        %7192 = vrot.lane.b32.xlu0 %v5105, 64
        %v7193 = vpop.permute.xlu0 %7192
        %7194 = vrot.lane.b32.xlu0 %v5106, 64
        %v7195 = vpop.permute.xlu0 %7194
        %7196 = vrot.lane.b32.xlu0 %v5107, 64
        %v7197 = vpop.permute.xlu0 %7196
        %7198 = vrot.lane.b32.xlu0 %v5108, 64
        %v7199 = vpop.permute.xlu0 %7198
        %7200 = vrot.lane.b32.xlu0 %v5109, 64
        %v7201 = vpop.permute.xlu0 %7200
        %7202 = vrot.lane.b32.xlu0 %v5110, 64
        %v7203 = vpop.permute.xlu0 %7202
        %7204 = vrot.lane.b32.xlu0 %v5111, 64
        %v7205 = vpop.permute.xlu0 %7204
        %7206 = vrot.lane.b32.xlu0 %v5112, 64
        %v7207 = vpop.permute.xlu0 %7206
        %7208 = vrot.lane.b32.xlu0 %v5113, 64
        %v7209 = vpop.permute.xlu0 %7208
        %7210 = vrot.lane.b32.xlu0 %v5114, 64
        %v7211 = vpop.permute.xlu0 %7210
        %7212 = vrot.lane.b32.xlu0 %v5115, 64
        %v7213 = vpop.permute.xlu0 %7212
        %7214 = vrot.lane.b32.xlu0 %v5116, 64
        %v7215 = vpop.permute.xlu0 %7214
        %7216 = vrot.lane.b32.xlu0 %v5117, 64
        %v7217 = vpop.permute.xlu0 %7216
        %7218 = vrot.lane.b32.xlu0 %v5118, 64
        %v7219 = vpop.permute.xlu0 %7218
        %7220 = vrot.lane.b32.xlu0 %v5119, 64
        %v7221 = vpop.permute.xlu0 %7220
        %7222 = vrot.lane.b32.xlu0 %v5120, 64
        %v7223 = vpop.permute.xlu0 %7222
        %7224 = vrot.lane.b32.xlu0 %v5121, 64
        %v7225 = vpop.permute.xlu0 %7224
        %7226 = vrot.lane.b32.xlu0 %v5122, 64
        %v7227 = vpop.permute.xlu0 %7226
        %7228 = vrot.lane.b32.xlu0 %v5123, 64
        %v7229 = vpop.permute.xlu0 %7228
        %7230 = vrot.lane.b32.xlu0 %v5124, 64
        %v7231 = vpop.permute.xlu0 %7230
        %7232 = vrot.lane.b32.xlu0 %v5125, 64
        %v7233 = vpop.permute.xlu0 %7232
        %7234 = vrot.lane.b32.xlu0 %v5126, 64
        %v7235 = vpop.permute.xlu0 %7234
        %7236 = vrot.lane.b32.xlu0 %v5127, 64
        %v7237 = vpop.permute.xlu0 %7236
        %7238 = vrot.lane.b32.xlu0 %v5128, 64
        %v7239 = vpop.permute.xlu0 %7238
        %7240 = vrot.lane.b32.xlu0 %v5129, 64
        %v7241 = vpop.permute.xlu0 %7240
        %7242 = vrot.lane.b32.xlu0 %v5130, 64
        %v7243 = vpop.permute.xlu0 %7242
        %7308 = vrot.lane.b32.xlu0 %v6988, 96
        %v7309 = vpop.permute.xlu0 %7308
        %7310 = vrot.lane.b32.xlu0 %v6989, 96
        %v7311 = vpop.permute.xlu0 %7310
        %7312 = vrot.lane.b32.xlu0 %v6990, 96
        %v7313 = vpop.permute.xlu0 %7312
        %7314 = vrot.lane.b32.xlu0 %v6991, 96
        %v7315 = vpop.permute.xlu0 %7314
        %7316 = vrot.lane.b32.xlu0 %v6992, 96
        %v7317 = vpop.permute.xlu0 %7316
        %7318 = vrot.lane.b32.xlu0 %v6993, 96
        %v7319 = vpop.permute.xlu0 %7318
        %7320 = vrot.lane.b32.xlu0 %v6994, 96
        %v7321 = vpop.permute.xlu0 %7320
        %7322 = vrot.lane.b32.xlu0 %v6995, 96
        %v7323 = vpop.permute.xlu0 %7322
        %7324 = vrot.lane.b32.xlu0 %v6996, 96
        %v7325 = vpop.permute.xlu0 %7324
        %7326 = vrot.lane.b32.xlu0 %v6997, 96
        %v7327 = vpop.permute.xlu0 %7326
        %7328 = vrot.lane.b32.xlu0 %v6998, 96
        %v7329 = vpop.permute.xlu0 %7328
        %7330 = vrot.lane.b32.xlu0 %v6999, 96
        %v7331 = vpop.permute.xlu0 %7330
        %7332 = vrot.lane.b32.xlu0 %v7000, 96
        %v7333 = vpop.permute.xlu0 %7332
        %7334 = vrot.lane.b32.xlu0 %v7001, 96
        %v7335 = vpop.permute.xlu0 %7334
        %7336 = vrot.lane.b32.xlu0 %v7002, 96
        %v7337 = vpop.permute.xlu0 %7336
        %7338 = vrot.lane.b32.xlu0 %v7003, 96
        %v7339 = vpop.permute.xlu0 %7338
        %7340 = vrot.lane.b32.xlu0 %v7004, 96
        %v7341 = vpop.permute.xlu0 %7340
        %7342 = vrot.lane.b32.xlu0 %v7005, 96
        %v7343 = vpop.permute.xlu0 %7342
        %7344 = vrot.lane.b32.xlu0 %v7006, 96
        %v7345 = vpop.permute.xlu0 %7344
        %7346 = vrot.lane.b32.xlu0 %v7007, 96
        %v7347 = vpop.permute.xlu0 %7346
        %7348 = vrot.lane.b32.xlu0 %v7008, 96
        %v7349 = vpop.permute.xlu0 %7348
        %7350 = vrot.lane.b32.xlu0 %v7009, 96
        %v7351 = vpop.permute.xlu0 %7350
        %7352 = vrot.lane.b32.xlu0 %v7010, 96
        %v7353 = vpop.permute.xlu0 %7352
        %7354 = vrot.lane.b32.xlu0 %v7011, 96
        %v7355 = vpop.permute.xlu0 %7354
        %7356 = vrot.lane.b32.xlu0 %v7012, 96
        %v7357 = vpop.permute.xlu0 %7356
        %7358 = vrot.lane.b32.xlu0 %v7013, 96
        %v7359 = vpop.permute.xlu0 %7358
        %7360 = vrot.lane.b32.xlu0 %v7014, 96
        %v7361 = vpop.permute.xlu0 %7360
        %7362 = vrot.lane.b32.xlu0 %v7015, 96
        %v7363 = vpop.permute.xlu0 %7362
        %7364 = vrot.lane.b32.xlu0 %v7016, 96
        %v7365 = vpop.permute.xlu0 %7364
        %7366 = vrot.lane.b32.xlu0 %v7017, 96
        %v7367 = vpop.permute.xlu0 %7366
        %7368 = vrot.lane.b32.xlu0 %v7018, 96
        %v7369 = vpop.permute.xlu0 %7368
        %7370 = vrot.lane.b32.xlu0 %v7019, 96
        %v7371 = vpop.permute.xlu0 %7370
        %v7404 = vsel %vm2856, %v221, %v7053
        %v7405 = vsel %vm2856, %v222, %v7055
        %v7406 = vsel %vm2856, %v223, %v7057
        %v7407 = vsel %vm2856, %v224, %v7059
        %v7408 = vsel %vm2856, %v225, %v7061
        %v7409 = vsel %vm2856, %v226, %v7063
        %v7410 = vsel %vm2856, %v227, %v7065
        %v7411 = vsel %vm2856, %v228, %v7067
        %v7412 = vsel %vm2856, %v229, %v7069
        %v7413 = vsel %vm2856, %v230, %v7071
        %v7414 = vsel %vm2856, %v231, %v7073
        %v7415 = vsel %vm2856, %v232, %v7075
        %v7416 = vsel %vm2856, %v233, %v7077
        %v7417 = vsel %vm2856, %v234, %v7079
        %v7418 = vsel %vm2856, %v235, %v7081
        %v7419 = vsel %vm2856, %v236, %v7083
        %v7420 = vsel %vm2856, %v237, %v7085
        %v7421 = vsel %vm2856, %v238, %v7087
        %v7422 = vsel %vm2856, %v239, %v7089
        %v7423 = vsel %vm2856, %v240, %v7091
        %v7424 = vsel %vm2856, %v241, %v7093
        %v7425 = vsel %vm2856, %v242, %v7095
        %v7426 = vsel %vm2856, %v243, %v7097
        %v7427 = vsel %vm2856, %v244, %v7099
        %v7428 = vsel %vm2856, %v245, %v7101
        %v7429 = vsel %vm2856, %v246, %v7103
        %v7430 = vsel %vm2856, %v247, %v7105
        %v7431 = vsel %vm2856, %v248, %v7107
        %v7432 = vsel %vm2856, %v249, %v7109
        %v7433 = vsel %vm2856, %v250, %v7111
        %v7434 = vsel %vm2856, %v251, %v7113
        %v7435 = vsel %vm2856, %v252, %v7115
        %vm7436 = vcmask 523264
        %v7437 = vsel %vm7436, %v7404, %v7181
        %v7438 = vsel %vm7436, %v7405, %v7183
        %v7439 = vsel %vm7436, %v7406, %v7185
        %v7440 = vsel %vm7436, %v7407, %v7187
        %v7441 = vsel %vm7436, %v7408, %v7189
        %v7442 = vsel %vm7436, %v7409, %v7191
        %v7443 = vsel %vm7436, %v7410, %v7193
        %v7444 = vsel %vm7436, %v7411, %v7195
        %v7445 = vsel %vm7436, %v7412, %v7197
        %v7446 = vsel %vm7436, %v7413, %v7199
        %v7447 = vsel %vm7436, %v7414, %v7201
        %v7448 = vsel %vm7436, %v7415, %v7203
        %v7449 = vsel %vm7436, %v7416, %v7205
        %v7450 = vsel %vm7436, %v7417, %v7207
        %v7451 = vsel %vm7436, %v7418, %v7209
        %v7452 = vsel %vm7436, %v7419, %v7211
        %v7453 = vsel %vm7436, %v7420, %v7213
        %v7454 = vsel %vm7436, %v7421, %v7215
        %v7455 = vsel %vm7436, %v7422, %v7217
        %v7456 = vsel %vm7436, %v7423, %v7219
        %v7457 = vsel %vm7436, %v7424, %v7221
        %v7458 = vsel %vm7436, %v7425, %v7223
        %v7459 = vsel %vm7436, %v7426, %v7225
        %v7460 = vsel %vm7436, %v7427, %v7227
        %v7461 = vsel %vm7436, %v7428, %v7229
        %v7462 = vsel %vm7436, %v7429, %v7231
        %v7463 = vsel %vm7436, %v7430, %v7233
        %v7464 = vsel %vm7436, %v7431, %v7235
        %v7465 = vsel %vm7436, %v7432, %v7237
        %v7466 = vsel %vm7436, %v7433, %v7239
        %v7467 = vsel %vm7436, %v7434, %v7241
        %v7468 = vsel %vm7436, %v7435, %v7243
        %vm7469 = vcmask 785408
        %v7470 = vsel %vm7469, %v7437, %v7309
        %v7471 = vsel %vm7469, %v7438, %v7311
        %v7472 = vsel %vm7469, %v7439, %v7313
        %v7473 = vsel %vm7469, %v7440, %v7315
        %v7474 = vsel %vm7469, %v7441, %v7317
        %v7475 = vsel %vm7469, %v7442, %v7319
        %v7476 = vsel %vm7469, %v7443, %v7321
        %v7477 = vsel %vm7469, %v7444, %v7323
        %v7478 = vsel %vm7469, %v7445, %v7325
        %v7479 = vsel %vm7469, %v7446, %v7327
        %v7480 = vsel %vm7469, %v7447, %v7329
        %v7481 = vsel %vm7469, %v7448, %v7331
        %v7482 = vsel %vm7469, %v7449, %v7333
        %v7483 = vsel %vm7469, %v7450, %v7335
        %v7484 = vsel %vm7469, %v7451, %v7337
        %v7485 = vsel %vm7469, %v7452, %v7339
        %v7486 = vsel %vm7469, %v7453, %v7341
        %v7487 = vsel %vm7469, %v7454, %v7343
        %v7488 = vsel %vm7469, %v7455, %v7345
        %v7489 = vsel %vm7469, %v7456, %v7347
        %v7490 = vsel %vm7469, %v7457, %v7349
        %v7491 = vsel %vm7469, %v7458, %v7351
        %v7492 = vsel %vm7469, %v7459, %v7353
        %v7493 = vsel %vm7469, %v7460, %v7355
        %v7494 = vsel %vm7469, %v7461, %v7357
        %v7495 = vsel %vm7469, %v7462, %v7359
        %v7496 = vsel %vm7469, %v7463, %v7361
        %v7497 = vsel %vm7469, %v7464, %v7363
        %v7498 = vsel %vm7469, %v7465, %v7365
        %v7499 = vsel %vm7469, %v7466, %v7367
        %v7500 = vsel %vm7469, %v7467, %v7369
        %v7501 = vsel %vm7469, %v7468, %v7371
        %7502 = vst [vmem:[%s207] sm:$0x3] %v7470
        %7503 = vst [vmem:[%s207 + $0x2] sm:$0x3] %v7471
        %7504 = vst [vmem:[%s207 + $0x4] sm:$0x3] %v7472
        %7505 = vst [vmem:[%s207 + $0x6] sm:$0x3] %v7473
        %7506 = vst [vmem:[%s207 + $0x8] sm:$0x3] %v7474
        %7507 = vst [vmem:[%s207 + $0xa] sm:$0x3] %v7475
        %7508 = vst [vmem:[%s207 + $0xc] sm:$0x3] %v7476
        %7509 = vst [vmem:[%s207 + $0xe] sm:$0x3] %v7477
        %7510 = vst [vmem:[%s207 + $0x10] sm:$0x3] %v7478
        %7511 = vst [vmem:[%s207 + $0x12] sm:$0x3] %v7479
        %7512 = vst [vmem:[%s207 + $0x14] sm:$0x3] %v7480
        %7513 = vst [vmem:[%s207 + $0x16] sm:$0x3] %v7481
        %7514 = vst [vmem:[%s207 + $0x18] sm:$0x3] %v7482
        %7515 = vst [vmem:[%s207 + $0x1a] sm:$0x3] %v7483
        %7516 = vst [vmem:[%s207 + $0x1c] sm:$0x3] %v7484
        %7517 = vst [vmem:[%s207 + $0x1e] sm:$0x3] %v7485
        %7518 = vst [vmem:[%s207 + $0x20] sm:$0x3] %v7486
        %7519 = vst [vmem:[%s207 + $0x22] sm:$0x3] %v7487
        %7520 = vst [vmem:[%s207 + $0x24] sm:$0x3] %v7488
        %7521 = vst [vmem:[%s207 + $0x26] sm:$0x3] %v7489
        %7522 = vst [vmem:[%s207 + $0x28] sm:$0x3] %v7490
        %7523 = vst [vmem:[%s207 + $0x2a] sm:$0x3] %v7491
        %7524 = vst [vmem:[%s207 + $0x2c] sm:$0x3] %v7492
        %7525 = vst [vmem:[%s207 + $0x2e] sm:$0x3] %v7493
        %7526 = vst [vmem:[%s207 + $0x30] sm:$0x3] %v7494
        %7527 = vst [vmem:[%s207 + $0x32] sm:$0x3] %v7495
        %7528 = vst [vmem:[%s207 + $0x34] sm:$0x3] %v7496
        %7529 = vst [vmem:[%s207 + $0x36] sm:$0x3] %v7497
        %7530 = vst [vmem:[%s207 + $0x38] sm:$0x3] %v7498
        %7531 = vst [vmem:[%s207 + $0x3a] sm:$0x3] %v7499
        %7532 = vst [vmem:[%s207 + $0x3c] sm:$0x3] %v7500
        %7533 = vst [vmem:[%s207 + $0x3e] sm:$0x3] %v7501
        %s7534 = sand.u32 %s120, 1
        %s7535 = scalar_lea.sflag [#allocation3], %s7534
        %s7536 = sand.u32 %s120, 1
        %s7537 = smul.addr %s7536, 64
        %s7538 = scalar_lea.vmem [#allocation2], %s7537
        // Predicated region
        $region37: #{tpu_custom_call.1} parent=35 // pred_check
          %p7539 = pneg %p130
        $region38: #{tpu_custom_call.1} parent=35 // pred_check_branch
          %7541 = sbr.rel (%p7539) target = $region40
        $region39: #{tpu_custom_call.1} parent=35 // pred_region
          %s7542 = smul.u32 32, %s18
          %s7544 = ssub.s32 1024, 1024
          %7545 = vsyncadd %s7535, %s7544
          %s7546 = smul.addr %s7542, 32
          %s7547 = scalar_lea.hbm %s4, %s7546
          %s7548 = sshll.u32 %s7538, 4
          %s7549 = int_to_ptr.vmem [resolvable:$true] %s7548
          %7554 = dma.vmem_to_hbm [thread:$0]  %s7549, 1024, %s7547, %s7535, 32, 32, 2
        $region40: #{tpu_custom_call.1} parent=35 // pred_fallthru
          _
      $region36: #{tpu_custom_call.1} parent=5 // pred_fallthru
        _
      %p7555 = scmp.le.s32.totalorder 2, %s13
      // Predicated region
      $region41: #{tpu_custom_call.1} parent=5 // pred_check
        %p7556 = pneg %p7555
      $region42: #{tpu_custom_call.1} parent=5 // pred_check_branch
        %7558 = sbr.rel (%p7556) target = $region44
      $region43: #{tpu_custom_call.1} parent=5 // pred_region
        %s7559 = ssub.s32 %s13, 2
        // Predicated region
        $region45: #{tpu_custom_call.1} parent=43 // pred_check
          %p7560 = pneg %p136
        $region46: #{tpu_custom_call.1} parent=43 // pred_check_branch
          %7562 = sbr.rel (%p7560) target = $region48
        $region47: #{tpu_custom_call.1} parent=43 // pred_region
          %s7563 = sand.u32 %s121, 1
          %s7564 = scalar_lea.sflag [#allocation3], %s7563
          %s7565 = sand.u32 %s121, 1
          %s7566 = smul.addr %s7565, 64
          %s7567 = scalar_lea.vmem [#allocation2], %s7566
          %7568 = dma.done %s7564, 1024
        $region48: #{tpu_custom_call.1} parent=43 // pred_fallthru
          _
      $region44: #{tpu_custom_call.1} parent=5 // pred_fallthru
        _
    $region6: #{tpu_custom_call.1} parent=1 // loop_footer
      %s17 = sadd.s32 1, %s13
    $region7: #{tpu_custom_call.1} parent=1 // loop_footer_branch
      %12 = sbr.rel target = $region3
    $region8: #{tpu_custom_call.1} parent=1 // loop_exit
      _
    %7569 = vsyncpa [#allocation3], 1
    %s7570 = scalar_lea.sflag [#allocation3], 1
    %7571 = vsyncpa %s7570, 1

</llo_original>
